<compile_context>
chip_gen: v7x
topology: tpu7x:2x2x1
jax: 0.10.0
libtpu: 0.0.40
codegen_flags: <defaults>
</compile_context>

<pallas_src>
import jax
import jax.numpy as jnp
from jax import lax
from jax.experimental import pallas as pl
from jax.experimental.pallas import tpu as pltpu


def _round_up(x, m):
    return ((x + m - 1) // m) * m


def conv_block_forward(x_nchw, weight_oihw, stride=1, padding=1, *, tn=256, eps=1e-5):
    """x_nchw: (N, C_in, H, W) f32, weight_oihw: (C_out, C_in, KH, KW) f32 -> NCHW f32.

    tn: output-channel tile (multiple of 128).  256 feeds the full v6e/v7x MXU width and
        halves channel-tile re-streams; on v5e 128 already saturates the 4x128x128 MXUs.
    """
    N, Cin, H, W = x_nchw.shape
    Cout, Cin_w, KH, KW = weight_oihw.shape
    assert Cin_w == Cin
    s, p = stride, padding

    Ho = (H + 2 * p - KH) // s + 1
    Wo = (W + 2 * p - KW) // s + 1
    Hp, Wp = H + 2 * p, W + 2 * p
    HoWo = Ho * Wo

    # bf16 operands (2x MXU throughput, half the HBM bytes); cast before the layout ops.
    x_bf = x_nchw.astype(jnp.bfloat16)
    xp = jnp.pad(jnp.transpose(x_bf, (0, 2, 3, 1)),
                 ((0, 0), (p, p), (p, p), (0, 0)))              # (N, Hp, Wp, Cin) bf16

    C_pad = _round_up(Cout, 128)                                # lane-dense channels
    tn = max(128, (tn // 128) * 128)
    if C_pad % tn != 0:
        tn = 128
    tn = min(tn, C_pad)
    n_c = C_pad // tn

    w_bf = weight_oihw.astype(jnp.bfloat16)
    w_k = jnp.transpose(w_bf, (2, 3, 1, 0)).reshape(KH * KW, Cin, Cout)
    w_k = jnp.pad(w_k, ((0, 0), (0, 0), (0, C_pad - Cout)))     # (KH*KW, Cin, C_pad)

    R = 8 if HoWo % 8 == 0 else 1                               # sublane-partial stats rows
    inv_m = 1.0 / float(N * HoWo)                               # exact count (no pad rows)

    # ---------------- Pass 1: fused im2col conv-as-matmul + BN statistics ----------------
    def conv_stats_kernel(x_ref, w_ref, y_ref, mean_ref, rstd_ref, sum_ref, sq_ref):
        n = pl.program_id(1)                    # image index (stats accumulation axis)

        # Convolution = sum over KH*KW shifted windows of (HoWo, Cin) x (Cin, tn) matmuls,
        # accumulated in f32 on the MXU.  The window slices come straight from the
        # VMEM-resident padded image block (no patches array in HBM).
        acc = None
        for i in range(KH):
            for jj in range(KW):
                if s == 1:
                    xw = x_ref[0, i:i + Ho, jj:jj + Wo, :]
                else:
                    xw = x_ref[0, pl.ds(i, Ho, s), pl.ds(jj, Wo, s), :]
                lhs = xw.reshape(HoWo, Cin)
                d = jnp.dot(lhs, w_ref[i * KW + jj],
                            preferred_element_type=jnp.float32)
                acc = d if acc is None else acc + d

        y_ref[0] = acc.astype(y_ref.dtype)      # bf16 intermediate, re-read in pass 2

        # Sublane-preserving partial sums (VPU adds only); 8->1 reduce deferred to epilogue.
        ps = acc.reshape(HoWo // R, R, tn).sum(axis=0)
        pq = (acc * acc).reshape(HoWo // R, R, tn).sum(axis=0)

        @pl.when(n == 0)
        def _():
            sum_ref[...] = jnp.zeros_like(sum_ref)
            sq_ref[...] = jnp.zeros_like(sq_ref)

        sum_ref[...] += ps
        sq_ref[...] += pq

        @pl.when(n == pl.num_programs(1) - 1)
        def _():
            tot = jnp.sum(sum_ref[...], axis=0, keepdims=True)
            tot_sq = jnp.sum(sq_ref[...], axis=0, keepdims=True)
            mean = tot * inv_m
            var = jnp.maximum(tot_sq * inv_m - mean * mean, 0.0)   # clamp cancellation
            mean_ref[...] = mean
            rstd_ref[...] = lax.rsqrt(var + eps)

    y, mean, rstd = pl.pallas_call(
        conv_stats_kernel,
        out_shape=(
            jax.ShapeDtypeStruct((N, HoWo, C_pad), jnp.bfloat16),   # raw conv, bf16
            jax.ShapeDtypeStruct((1, C_pad), jnp.float32),          # mean
            jax.ShapeDtypeStruct((1, C_pad), jnp.float32),          # rsqrt(var+eps)
        ),
        grid_spec=pltpu.PrefetchScalarGridSpec(
            num_scalar_prefetch=0,
            grid=(n_c, N),                                          # stats-accum axis last
            in_specs=[
                pl.BlockSpec((1, Hp, Wp, Cin), lambda j, n: (n, 0, 0, 0)),   # padded image
                pl.BlockSpec((KH * KW, Cin, tn), lambda j, n: (0, 0, j)),    # weights
            ],
            out_specs=(
                pl.BlockSpec((1, HoWo, tn), lambda j, n: (n, 0, j)),
                pl.BlockSpec((1, tn), lambda j, n: (0, j)),
                pl.BlockSpec((1, tn), lambda j, n: (0, j)),
            ),
            scratch_shapes=[pltpu.VMEM((R, tn), jnp.float32),       # running sum
                            pltpu.VMEM((R, tn), jnp.float32)],      # running sumsq
        ),
        compiler_params=pltpu.CompilerParams(
            dimension_semantics=("parallel", "arbitrary"),
            vmem_limit_bytes=40 * 1024 * 1024,                      # v7x-safe budget
        ),
    )(xp, w_k)

    # ---------------- Pass 2: apply batch-norm + fold NHWC->NCHW transpose ----------------
    def bn_apply_kernel(y_ref, mean_ref, rstd_ref, o_ref):
        yv = y_ref[0].astype(jnp.float32)                  # (HoWo, tn)
        norm = (yv - mean_ref[...]) * rstd_ref[...]
        o_ref[0] = norm.T                                  # (tn, HoWo): NCHW layout

    out_t = pl.pallas_call(
        bn_apply_kernel,
        out_shape=jax.ShapeDtypeStruct((N, C_pad, HoWo), jnp.float32),
        grid=(N, n_c),
        in_specs=[
            pl.BlockSpec((1, HoWo, tn), lambda n, j: (n, 0, j)),
            pl.BlockSpec((1, tn), lambda n, j: (0, j)),
            pl.BlockSpec((1, tn), lambda n, j: (0, j)),
        ],
        out_specs=pl.BlockSpec((1, tn, HoWo), lambda n, j: (n, j, 0)),
        compiler_params=pltpu.CompilerParams(
            dimension_semantics=("parallel", "parallel"),
            vmem_limit_bytes=40 * 1024 * 1024,
        ),
    )(y, mean, rstd)

    # Channel slice is a no-op when Cout % 128 == 0; the last-dim split reshape is free.
    out = out_t[:, :Cout, :].reshape(N, Cout, Ho, Wo)
    return out


def _reference(x_nchw, weight_oihw, stride=1, padding=1):
    y = lax.conv_general_dilated(
        x_nchw, weight_oihw,
        window_strides=(stride, stride),
        padding=((padding, padding), (padding, padding)),
        dimension_numbers=("NCHW", "OIHW", "NCHW"),
    )
    mean = jnp.mean(y, axis=(0, 2, 3), keepdims=True)
    var = jnp.mean((y - mean) ** 2, axis=(0, 2, 3), keepdims=True)
    return (y - mean) * lax.rsqrt(var + 1e-5)


if __name__ == "__main__":
    key = jax.random.PRNGKey(0)
    kx, kw = jax.random.split(key)

    # ConvBlock(4, 8, kernel_size=3) at small shapes.
    N, Cin, H, W = 2, 4, 16, 16
    Cout, KH, KW = 8, 3, 3

    x = jax.random.normal(kx, (N, Cin, H, W), dtype=jnp.float32)
    fan_in = Cin * KH * KW
    bound = 1.0 / (fan_in ** 0.5)
    weight = jax.random.uniform(kw, (Cout, Cin, KH, KW),
                                minval=-bound, maxval=bound, dtype=jnp.float32)

    fwd = jax.jit(conv_block_forward,
                  static_argnames=("stride", "padding", "tn", "eps"))
    out = jax.block_until_ready(fwd(x, weight, stride=1, padding=1))

    # Reference on the same bf16-quantized operands the kernel consumes; the kernel
    # additionally stores the conv intermediate in bf16, hence the 2e-2 tolerance.
    xq = x.astype(jnp.bfloat16).astype(jnp.float32)
    wq = weight.astype(jnp.bfloat16).astype(jnp.float32)
    ref = jax.block_until_ready(_reference(xq, wq, stride=1, padding=1))

    assert out.shape == (N, Cout, H, W)
    assert jnp.allclose(out, ref, atol=2e-2, rtol=2e-2), \
        float(jnp.max(jnp.abs(out - ref)))

    print("KERNEL_OK")
</pallas_src>

<mosaic_0001>
module attributes {stable_mosaic.version = 11 : i64} {
  func.func @bn_apply_kernel(%arg0: i32, %arg1: i32, %arg2: memref<1x256x128xbf16, #tpu.memory_space<vmem>>, %arg3: memref<1x128xf32, #tpu.memory_space<vmem>>, %arg4: memref<1x128xf32, #tpu.memory_space<vmem>>, %arg5: memref<1x128x256xf32, #tpu.memory_space<vmem>>) attributes {dimension_semantics = [#tpu.dimension_semantics<parallel>, #tpu.dimension_semantics<parallel>], iteration_bounds = array<i64: 2, 1>, scalar_prefetch = 0 : i64, scratch_operands = 0 : i64, tpu.core_type = #tpu.core_type<tc>, window_params = [{transform_indices = @transform_0, window_bounds = array<i64: 1, 256, 128>}, {transform_indices = @transform_1, window_bounds = array<i64: 1, 128>}, {transform_indices = @transform_2, window_bounds = array<i64: 1, 128>}, {transform_indices = @transform_3, window_bounds = array<i64: 1, 128, 256>}]} {
    %c0 = arith.constant 0 : index
    %c0_0 = arith.constant 0 : index
    %c0_1 = arith.constant 0 : index
    %0 = vector.load %arg2[%c0, %c0_0, %c0_1] : memref<1x256x128xbf16, #tpu.memory_space<vmem>>, vector<1x256x128xbf16>
    %1 = vector.shape_cast %0 : vector<1x256x128xbf16> to vector<256x128xbf16>
    %2 = arith.extf %1 : vector<256x128xbf16> to vector<256x128xf32>
    %c0_2 = arith.constant 0 : index
    %c0_3 = arith.constant 0 : index
    %3 = vector.load %arg3[%c0_2, %c0_3] : memref<1x128xf32, #tpu.memory_space<vmem>>, vector<1x128xf32>
    %4 = vector.broadcast %3 : vector<1x128xf32> to vector<256x128xf32>
    %5 = arith.subf %2, %4 : vector<256x128xf32>
    %c0_4 = arith.constant 0 : index
    %c0_5 = arith.constant 0 : index
    %6 = vector.load %arg4[%c0_4, %c0_5] : memref<1x128xf32, #tpu.memory_space<vmem>>, vector<1x128xf32>
    %7 = vector.broadcast %6 : vector<1x128xf32> to vector<256x128xf32>
    %8 = arith.mulf %5, %7 : vector<256x128xf32>
    %9 = tpu.transpose %8, [1, 0] : vector<256x128xf32> -> vector<128x256xf32>
    %c0_6 = arith.constant 0 : index
    %c0_7 = arith.constant 0 : index
    %c0_8 = arith.constant 0 : index
    %10 = vector.load %arg5[%c0_6, %c0_7, %c0_8] : memref<1x128x256xf32, #tpu.memory_space<vmem>>, vector<1x128x256xf32>
    %11 = vector.shape_cast %10 : vector<1x128x256xf32> to vector<128x256xf32>
    %12 = vector.shape_cast %9 : vector<128x256xf32> to vector<1x128x256xf32>
    tpu.vector_store %arg5[%c0_6, %c0_7, %c0_8], %12 {strides = array<i32>} : memref<1x128x256xf32, #tpu.memory_space<vmem>>, vector<1x128x256xf32>,
    return
  }
  func.func @transform_0(%arg0: i32, %arg1: i32) -> (i32, i32, i32) {
    %c0_i32 = arith.constant 0 : i32
    %c0_i32_0 = arith.constant 0 : i32
    return %arg0, %c0_i32, %arg1 : i32, i32, i32
  }
  func.func @transform_1(%arg0: i32, %arg1: i32) -> (i32, i32) {
    %c0_i32 = arith.constant 0 : i32
    %c0_i32_0 = arith.constant 0 : i32
    return %c0_i32, %arg1 : i32, i32
  }
  func.func @transform_2(%arg0: i32, %arg1: i32) -> (i32, i32) {
    %c0_i32 = arith.constant 0 : i32
    %c0_i32_0 = arith.constant 0 : i32
    return %c0_i32, %arg1 : i32, i32
  }
  func.func @transform_3(%arg0: i32, %arg1: i32) -> (i32, i32, i32) {
    %c0_i32 = arith.constant 0 : i32
    %c0_i32_0 = arith.constant 0 : i32
    return %arg0, %arg1, %c0_i32 : i32, i32, i32
  }
}

module attributes {stable_mosaic.version = 11 : i64} {
  func.func @conv_stats_kernel(%arg0: i32, %arg1: i32, %arg2: memref<1x18x18x4xbf16, #tpu.memory_space<vmem>>, %arg3: memref<9x4x128xbf16, #tpu.memory_space<vmem>>, %arg4: memref<1x256x128xbf16, #tpu.memory_space<vmem>>, %arg5: memref<1x128xf32, #tpu.memory_space<vmem>>, %arg6: memref<1x128xf32, #tpu.memory_space<vmem>>, %arg7: memref<8x128xf32, #tpu.memory_space<vmem>>, %arg8: memref<8x128xf32, #tpu.memory_space<vmem>>) attributes {dimension_semantics = [#tpu.dimension_semantics<parallel>, #tpu.dimension_semantics<arbitrary>], iteration_bounds = array<i64: 1, 2>, scalar_prefetch = 0 : i64, scratch_operands = 2 : i64, tpu.core_type = #tpu.core_type<tc>, window_params = [{transform_indices = @transform_0, window_bounds = array<i64: 1, 18, 18, 4>}, {transform_indices = @transform_1, window_bounds = array<i64: 9, 4, 128>}, {transform_indices = @transform_2, window_bounds = array<i64: 1, 256, 128>}, {transform_indices = @transform_3, window_bounds = array<i64: 1, 128>}, {transform_indices = @transform_4, window_bounds = array<i64: 1, 128>}]} {
    %c0 = arith.constant 0 : index
    %c0_0 = arith.constant 0 : index
    %c0_1 = arith.constant 0 : index
    %c0_2 = arith.constant 0 : index
    %0 = vector.load %arg2[%c0, %c0_0, %c0_1, %c0_2] : memref<1x18x18x4xbf16, #tpu.memory_space<vmem>>, vector<1x16x16x4xbf16>
    %1 = vector.shape_cast %0 : vector<1x16x16x4xbf16> to vector<16x16x4xbf16>
    %2 = vector.shape_cast %1 : vector<16x16x4xbf16> to vector<256x4xbf16>
    %c0_3 = arith.constant 0 : index
    %c0_4 = arith.constant 0 : index
    %c0_5 = arith.constant 0 : index
    %3 = vector.load %arg3[%c0_3, %c0_4, %c0_5] : memref<9x4x128xbf16, #tpu.memory_space<vmem>>, vector<1x4x128xbf16>
    %4 = vector.shape_cast %3 : vector<1x4x128xbf16> to vector<4x128xbf16>
    %cst = arith.constant dense<0.000000e+00> : vector<256x128xf32>
    %5 = tpu.matmul %2, %4, %cst {dimension_numbers = #tpu.dot_dimension_numbers<[1], [0], [0], [1], [0, 0, 1, 1], [], []>} : vector<256x4xbf16>, vector<4x128xbf16>, vector<256x128xf32> -> vector<256x128xf32>
    %c0_6 = arith.constant 0 : index
    %c0_7 = arith.constant 0 : index
    %c1 = arith.constant 1 : index
    %c0_8 = arith.constant 0 : index
    %6 = vector.load %arg2[%c0_6, %c0_7, %c1, %c0_8] : memref<1x18x18x4xbf16, #tpu.memory_space<vmem>>, vector<1x16x16x4xbf16>
    %7 = vector.shape_cast %6 : vector<1x16x16x4xbf16> to vector<16x16x4xbf16>
    %8 = vector.shape_cast %7 : vector<16x16x4xbf16> to vector<256x4xbf16>
    %c1_9 = arith.constant 1 : index
    %c0_10 = arith.constant 0 : index
    %c0_11 = arith.constant 0 : index
    %9 = vector.load %arg3[%c1_9, %c0_10, %c0_11] : memref<9x4x128xbf16, #tpu.memory_space<vmem>>, vector<1x4x128xbf16>
    %10 = vector.shape_cast %9 : vector<1x4x128xbf16> to vector<4x128xbf16>
    %cst_12 = arith.constant dense<0.000000e+00> : vector<256x128xf32>
    %11 = tpu.matmul %8, %10, %cst_12 {dimension_numbers = #tpu.dot_dimension_numbers<[1], [0], [0], [1], [0, 0, 1, 1], [], []>} : vector<256x4xbf16>, vector<4x128xbf16>, vector<256x128xf32> -> vector<256x128xf32>
    %12 = arith.addf %5, %11 : vector<256x128xf32>
    %c0_13 = arith.constant 0 : index
    %c0_14 = arith.constant 0 : index
    %c2 = arith.constant 2 : index
    %c0_15 = arith.constant 0 : index
    %13 = vector.load %arg2[%c0_13, %c0_14, %c2, %c0_15] : memref<1x18x18x4xbf16, #tpu.memory_space<vmem>>, vector<1x16x16x4xbf16>
    %14 = vector.shape_cast %13 : vector<1x16x16x4xbf16> to vector<16x16x4xbf16>
    %15 = vector.shape_cast %14 : vector<16x16x4xbf16> to vector<256x4xbf16>
    %c2_16 = arith.constant 2 : index
    %c0_17 = arith.constant 0 : index
    %c0_18 = arith.constant 0 : index
    %16 = vector.load %arg3[%c2_16, %c0_17, %c0_18] : memref<9x4x128xbf16, #tpu.memory_space<vmem>>, vector<1x4x128xbf16>
    %17 = vector.shape_cast %16 : vector<1x4x128xbf16> to vector<4x128xbf16>
    %cst_19 = arith.constant dense<0.000000e+00> : vector<256x128xf32>
    %18 = tpu.matmul %15, %17, %cst_19 {dimension_numbers = #tpu.dot_dimension_numbers<[1], [0], [0], [1], [0, 0, 1, 1], [], []>} : vector<256x4xbf16>, vector<4x128xbf16>, vector<256x128xf32> -> vector<256x128xf32>
    %19 = arith.addf %12, %18 : vector<256x128xf32>
    %c0_20 = arith.constant 0 : index
    %c1_21 = arith.constant 1 : index
    %c0_22 = arith.constant 0 : index
    %c0_23 = arith.constant 0 : index
    %20 = vector.load %arg2[%c0_20, %c1_21, %c0_22, %c0_23] : memref<1x18x18x4xbf16, #tpu.memory_space<vmem>>, vector<1x16x16x4xbf16>
    %21 = vector.shape_cast %20 : vector<1x16x16x4xbf16> to vector<16x16x4xbf16>
    %22 = vector.shape_cast %21 : vector<16x16x4xbf16> to vector<256x4xbf16>
    %c3 = arith.constant 3 : index
    %c0_24 = arith.constant 0 : index
    %c0_25 = arith.constant 0 : index
    %23 = vector.load %arg3[%c3, %c0_24, %c0_25] : memref<9x4x128xbf16, #tpu.memory_space<vmem>>, vector<1x4x128xbf16>
    %24 = vector.shape_cast %23 : vector<1x4x128xbf16> to vector<4x128xbf16>
    %cst_26 = arith.constant dense<0.000000e+00> : vector<256x128xf32>
    %25 = tpu.matmul %22, %24, %cst_26 {dimension_numbers = #tpu.dot_dimension_numbers<[1], [0], [0], [1], [0, 0, 1, 1], [], []>} : vector<256x4xbf16>, vector<4x128xbf16>, vector<256x128xf32> -> vector<256x128xf32>
    %26 = arith.addf %19, %25 : vector<256x128xf32>
    %c0_27 = arith.constant 0 : index
    %c1_28 = arith.constant 1 : index
    %c1_29 = arith.constant 1 : index
    %c0_30 = arith.constant 0 : index
    %27 = vector.load %arg2[%c0_27, %c1_28, %c1_29, %c0_30] : memref<1x18x18x4xbf16, #tpu.memory_space<vmem>>, vector<1x16x16x4xbf16>
    %28 = vector.shape_cast %27 : vector<1x16x16x4xbf16> to vector<16x16x4xbf16>
    %29 = vector.shape_cast %28 : vector<16x16x4xbf16> to vector<256x4xbf16>
    %c4 = arith.constant 4 : index
    %c0_31 = arith.constant 0 : index
    %c0_32 = arith.constant 0 : index
    %30 = vector.load %arg3[%c4, %c0_31, %c0_32] : memref<9x4x128xbf16, #tpu.memory_space<vmem>>, vector<1x4x128xbf16>
    %31 = vector.shape_cast %30 : vector<1x4x128xbf16> to vector<4x128xbf16>
    %cst_33 = arith.constant dense<0.000000e+00> : vector<256x128xf32>
    %32 = tpu.matmul %29, %31, %cst_33 {dimension_numbers = #tpu.dot_dimension_numbers<[1], [0], [0], [1], [0, 0, 1, 1], [], []>} : vector<256x4xbf16>, vector<4x128xbf16>, vector<256x128xf32> -> vector<256x128xf32>
    %33 = arith.addf %26, %32 : vector<256x128xf32>
    %c0_34 = arith.constant 0 : index
    %c1_35 = arith.constant 1 : index
    %c2_36 = arith.constant 2 : index
    %c0_37 = arith.constant 0 : index
    %34 = vector.load %arg2[%c0_34, %c1_35, %c2_36, %c0_37] : memref<1x18x18x4xbf16, #tpu.memory_space<vmem>>, vector<1x16x16x4xbf16>
    %35 = vector.shape_cast %34 : vector<1x16x16x4xbf16> to vector<16x16x4xbf16>
    %36 = vector.shape_cast %35 : vector<16x16x4xbf16> to vector<256x4xbf16>
    %c5 = arith.constant 5 : index
    %c0_38 = arith.constant 0 : index
    %c0_39 = arith.constant 0 : index
    %37 = vector.load %arg3[%c5, %c0_38, %c0_39] : memref<9x4x128xbf16, #tpu.memory_space<vmem>>, vector<1x4x128xbf16>
    %38 = vector.shape_cast %37 : vector<1x4x128xbf16> to vector<4x128xbf16>
    %cst_40 = arith.constant dense<0.000000e+00> : vector<256x128xf32>
    %39 = tpu.matmul %36, %38, %cst_40 {dimension_numbers = #tpu.dot_dimension_numbers<[1], [0], [0], [1], [0, 0, 1, 1], [], []>} : vector<256x4xbf16>, vector<4x128xbf16>, vector<256x128xf32> -> vector<256x128xf32>
    %40 = arith.addf %33, %39 : vector<256x128xf32>
    %c0_41 = arith.constant 0 : index
    %c2_42 = arith.constant 2 : index
    %c0_43 = arith.constant 0 : index
    %c0_44 = arith.constant 0 : index
    %41 = vector.load %arg2[%c0_41, %c2_42, %c0_43, %c0_44] : memref<1x18x18x4xbf16, #tpu.memory_space<vmem>>, vector<1x16x16x4xbf16>
    %42 = vector.shape_cast %41 : vector<1x16x16x4xbf16> to vector<16x16x4xbf16>
    %43 = vector.shape_cast %42 : vector<16x16x4xbf16> to vector<256x4xbf16>
    %c6 = arith.constant 6 : index
    %c0_45 = arith.constant 0 : index
    %c0_46 = arith.constant 0 : index
    %44 = vector.load %arg3[%c6, %c0_45, %c0_46] : memref<9x4x128xbf16, #tpu.memory_space<vmem>>, vector<1x4x128xbf16>
    %45 = vector.shape_cast %44 : vector<1x4x128xbf16> to vector<4x128xbf16>
    %cst_47 = arith.constant dense<0.000000e+00> : vector<256x128xf32>
    %46 = tpu.matmul %43, %45, %cst_47 {dimension_numbers = #tpu.dot_dimension_numbers<[1], [0], [0], [1], [0, 0, 1, 1], [], []>} : vector<256x4xbf16>, vector<4x128xbf16>, vector<256x128xf32> -> vector<256x128xf32>
    %47 = arith.addf %40, %46 : vector<256x128xf32>
    %c0_48 = arith.constant 0 : index
    %c2_49 = arith.constant 2 : index
    %c1_50 = arith.constant 1 : index
    %c0_51 = arith.constant 0 : index
    %48 = vector.load %arg2[%c0_48, %c2_49, %c1_50, %c0_51] : memref<1x18x18x4xbf16, #tpu.memory_space<vmem>>, vector<1x16x16x4xbf16>
    %49 = vector.shape_cast %48 : vector<1x16x16x4xbf16> to vector<16x16x4xbf16>
    %50 = vector.shape_cast %49 : vector<16x16x4xbf16> to vector<256x4xbf16>
    %c7 = arith.constant 7 : index
    %c0_52 = arith.constant 0 : index
    %c0_53 = arith.constant 0 : index
    %51 = vector.load %arg3[%c7, %c0_52, %c0_53] : memref<9x4x128xbf16, #tpu.memory_space<vmem>>, vector<1x4x128xbf16>
    %52 = vector.shape_cast %51 : vector<1x4x128xbf16> to vector<4x128xbf16>
    %cst_54 = arith.constant dense<0.000000e+00> : vector<256x128xf32>
    %53 = tpu.matmul %50, %52, %cst_54 {dimension_numbers = #tpu.dot_dimension_numbers<[1], [0], [0], [1], [0, 0, 1, 1], [], []>} : vector<256x4xbf16>, vector<4x128xbf16>, vector<256x128xf32> -> vector<256x128xf32>
    %54 = arith.addf %47, %53 : vector<256x128xf32>
    %c0_55 = arith.constant 0 : index
    %c2_56 = arith.constant 2 : index
    %c2_57 = arith.constant 2 : index
    %c0_58 = arith.constant 0 : index
    %55 = vector.load %arg2[%c0_55, %c2_56, %c2_57, %c0_58] : memref<1x18x18x4xbf16, #tpu.memory_space<vmem>>, vector<1x16x16x4xbf16>
    %56 = vector.shape_cast %55 : vector<1x16x16x4xbf16> to vector<16x16x4xbf16>
    %57 = vector.shape_cast %56 : vector<16x16x4xbf16> to vector<256x4xbf16>
    %c8 = arith.constant 8 : index
    %c0_59 = arith.constant 0 : index
    %c0_60 = arith.constant 0 : index
    %58 = vector.load %arg3[%c8, %c0_59, %c0_60] : memref<9x4x128xbf16, #tpu.memory_space<vmem>>, vector<1x4x128xbf16>
    %59 = vector.shape_cast %58 : vector<1x4x128xbf16> to vector<4x128xbf16>
    %cst_61 = arith.constant dense<0.000000e+00> : vector<256x128xf32>
    %60 = tpu.matmul %57, %59, %cst_61 {dimension_numbers = #tpu.dot_dimension_numbers<[1], [0], [0], [1], [0, 0, 1, 1], [], []>} : vector<256x4xbf16>, vector<4x128xbf16>, vector<256x128xf32> -> vector<256x128xf32>
    %61 = arith.addf %54, %60 : vector<256x128xf32>
    %62 = arith.truncf %61 : vector<256x128xf32> to vector<256x128xbf16>
    %c0_62 = arith.constant 0 : index
    %c0_63 = arith.constant 0 : index
    %c0_64 = arith.constant 0 : index
    %63 = vector.load %arg4[%c0_62, %c0_63, %c0_64] : memref<1x256x128xbf16, #tpu.memory_space<vmem>>, vector<1x256x128xbf16>
    %64 = vector.shape_cast %63 : vector<1x256x128xbf16> to vector<256x128xbf16>
    %65 = vector.shape_cast %62 : vector<256x128xbf16> to vector<1x256x128xbf16>
    tpu.vector_store %arg4[%c0_62, %c0_63, %c0_64], %65 {strides = array<i32>} : memref<1x256x128xbf16, #tpu.memory_space<vmem>>, vector<1x256x128xbf16>,
    %66 = vector.shape_cast %61 : vector<256x128xf32> to vector<32x8x128xf32>
    %cst_65 = arith.constant dense<0.000000e+00> : vector<8x128xf32>
    %67 = vector.multi_reduction <add>, %66, %cst_65 [0] : vector<32x8x128xf32> to vector<8x128xf32>
    %68 = arith.mulf %61, %61 : vector<256x128xf32>
    %69 = vector.shape_cast %68 : vector<256x128xf32> to vector<32x8x128xf32>
    %cst_66 = arith.constant dense<0.000000e+00> : vector<8x128xf32>
    %70 = vector.multi_reduction <add>, %69, %cst_66 [0] : vector<32x8x128xf32> to vector<8x128xf32>
    %c0_i32 = arith.constant 0 : i32
    %71 = arith.cmpi eq, %arg1, %c0_i32 : i32
    %72 = arith.extui %71 : i1 to i32
    %c0_i32_67 = arith.constant 0 : i32
    %73 = arith.cmpi ne, %72, %c0_i32_67 : i32
    scf.if %73 {
      %cst_77 = arith.constant 0.000000e+00 : f32
      %83 = vector.broadcast %cst_77 : f32 to vector<8x128xf32>
      %c0_78 = arith.constant 0 : index
      %c0_79 = arith.constant 0 : index
      %84 = vector.load %arg7[%c0_78, %c0_79] : memref<8x128xf32, #tpu.memory_space<vmem>>, vector<8x128xf32>
      tpu.vector_store %arg7[%c0_78, %c0_79], %83 {strides = array<i32>} : memref<8x128xf32, #tpu.memory_space<vmem>>, vector<8x128xf32>,
      %cst_80 = arith.constant 0.000000e+00 : f32
      %85 = vector.broadcast %cst_80 : f32 to vector<8x128xf32>
      %c0_81 = arith.constant 0 : index
      %c0_82 = arith.constant 0 : index
      %86 = vector.load %arg8[%c0_81, %c0_82] : memref<8x128xf32, #tpu.memory_space<vmem>>, vector<8x128xf32>
      tpu.vector_store %arg8[%c0_81, %c0_82], %85 {strides = array<i32>} : memref<8x128xf32, #tpu.memory_space<vmem>>, vector<8x128xf32>,
    } else {
    }
    %c0_68 = arith.constant 0 : index
    %c0_69 = arith.constant 0 : index
    %74 = vector.load %arg7[%c0_68, %c0_69] : memref<8x128xf32, #tpu.memory_space<vmem>>, vector<8x128xf32>
    %75 = arith.addf %74, %67 : vector<8x128xf32>
    %c0_70 = arith.constant 0 : index
    %c0_71 = arith.constant 0 : index
    %76 = vector.load %arg7[%c0_70, %c0_71] : memref<8x128xf32, #tpu.memory_space<vmem>>, vector<8x128xf32>
    tpu.vector_store %arg7[%c0_70, %c0_71], %75 {strides = array<i32>} : memref<8x128xf32, #tpu.memory_space<vmem>>, vector<8x128xf32>,
    %c0_72 = arith.constant 0 : index
    %c0_73 = arith.constant 0 : index
    %77 = vector.load %arg8[%c0_72, %c0_73] : memref<8x128xf32, #tpu.memory_space<vmem>>, vector<8x128xf32>
    %78 = arith.addf %77, %70 : vector<8x128xf32>
    %c0_74 = arith.constant 0 : index
    %c0_75 = arith.constant 0 : index
    %79 = vector.load %arg8[%c0_74, %c0_75] : memref<8x128xf32, #tpu.memory_space<vmem>>, vector<8x128xf32>
    tpu.vector_store %arg8[%c0_74, %c0_75], %78 {strides = array<i32>} : memref<8x128xf32, #tpu.memory_space<vmem>>, vector<8x128xf32>,
    %c1_i32 = arith.constant 1 : i32
    %80 = arith.cmpi eq, %arg1, %c1_i32 : i32
    %81 = arith.extui %80 : i1 to i32
    %c0_i32_76 = arith.constant 0 : i32
    %82 = arith.cmpi ne, %81, %c0_i32_76 : i32
    scf.if %82 {
      %c0_77 = arith.constant 0 : index
      %c0_78 = arith.constant 0 : index
      %83 = vector.load %arg7[%c0_77, %c0_78] : memref<8x128xf32, #tpu.memory_space<vmem>>, vector<8x128xf32>
      %cst_79 = arith.constant dense<0.000000e+00> : vector<128xf32>
      %84 = vector.multi_reduction <add>, %83, %cst_79 [0] : vector<8x128xf32> to vector<128xf32>
      %85 = vector.shape_cast %84 : vector<128xf32> to vector<1x128xf32>
      %c0_80 = arith.constant 0 : index
      %c0_81 = arith.constant 0 : index
      %86 = vector.load %arg8[%c0_80, %c0_81] : memref<8x128xf32, #tpu.memory_space<vmem>>, vector<8x128xf32>
      %cst_82 = arith.constant dense<0.000000e+00> : vector<128xf32>
      %87 = vector.multi_reduction <add>, %86, %cst_82 [0] : vector<8x128xf32> to vector<128xf32>
      %88 = vector.shape_cast %87 : vector<128xf32> to vector<1x128xf32>
      %cst_83 = arith.constant 0.001953125 : f32
      %89 = vector.broadcast %cst_83 : f32 to vector<1x128xf32>
      %90 = arith.mulf %85, %89 : vector<1x128xf32>
      %cst_84 = arith.constant 0.001953125 : f32
      %91 = vector.broadcast %cst_84 : f32 to vector<1x128xf32>
      %92 = arith.mulf %88, %91 : vector<1x128xf32>
      %93 = arith.mulf %90, %90 : vector<1x128xf32>
      %94 = arith.subf %92, %93 : vector<1x128xf32>
      %cst_85 = arith.constant 0.000000e+00 : f32
      %95 = vector.broadcast %cst_85 : f32 to vector<1x128xf32>
      %96 = arith.maximumf %94, %95 : vector<1x128xf32>
      %c0_86 = arith.constant 0 : index
      %c0_87 = arith.constant 0 : index
      %97 = vector.load %arg5[%c0_86, %c0_87] : memref<1x128xf32, #tpu.memory_space<vmem>>, vector<1x128xf32>
      tpu.vector_store %arg5[%c0_86, %c0_87], %90 {strides = array<i32>} : memref<1x128xf32, #tpu.memory_space<vmem>>, vector<1x128xf32>,
      %cst_88 = arith.constant 9.99999974E-6 : f32
      %98 = vector.broadcast %cst_88 : f32 to vector<1x128xf32>
      %99 = arith.addf %96, %98 : vector<1x128xf32>
      %100 = math.rsqrt %99 : vector<1x128xf32>
      %c0_89 = arith.constant 0 : index
      %c0_90 = arith.constant 0 : index
      %101 = vector.load %arg6[%c0_89, %c0_90] : memref<1x128xf32, #tpu.memory_space<vmem>>, vector<1x128xf32>
      tpu.vector_store %arg6[%c0_89, %c0_90], %100 {strides = array<i32>} : memref<1x128xf32, #tpu.memory_space<vmem>>, vector<1x128xf32>,
    } else {
    }
    return
  }
  func.func @transform_0(%arg0: i32, %arg1: i32) -> (i32, i32, i32, i32) {
    %c0_i32 = arith.constant 0 : i32
    %c0_i32_0 = arith.constant 0 : i32
    %c0_i32_1 = arith.constant 0 : i32
    %c0_i32_2 = arith.constant 0 : i32
    return %arg1, %c0_i32, %c0_i32_0, %c0_i32_1 : i32, i32, i32, i32
  }
  func.func @transform_1(%arg0: i32, %arg1: i32) -> (i32, i32, i32) {
    %c0_i32 = arith.constant 0 : i32
    %c0_i32_0 = arith.constant 0 : i32
    %c0_i32_1 = arith.constant 0 : i32
    return %c0_i32, %c0_i32_0, %arg0 : i32, i32, i32
  }
  func.func @transform_2(%arg0: i32, %arg1: i32) -> (i32, i32, i32) {
    %c0_i32 = arith.constant 0 : i32
    %c0_i32_0 = arith.constant 0 : i32
    return %arg1, %c0_i32, %arg0 : i32, i32, i32
  }
  func.func @transform_3(%arg0: i32, %arg1: i32) -> (i32, i32) {
    %c0_i32 = arith.constant 0 : i32
    %c0_i32_0 = arith.constant 0 : i32
    return %c0_i32, %arg0 : i32, i32
  }
  func.func @transform_4(%arg0: i32, %arg1: i32) -> (i32, i32) {
    %c0_i32 = arith.constant 0 : i32
    %c0_i32_0 = arith.constant 0 : i32
    return %c0_i32, %arg0 : i32, i32
  }
}

</mosaic_0001>

<llo_original>
// kernel: conv_block_forward.3
$region0: #{conv_block_forward.3}
  #allocation0 [shape = 'u32[]', space=smem, size = 0x4, offset = 0x4, fixed_abs, tag = 'smem constant byte address 0x4 - core index']
  #allocation1 [shape = 'u32[144,128]{1,0:T(1,128)}', space=vmem, size = 0x12000, scoped, tag = 'internal scratch']
  %s0 = inlined_call_operand.vmem [shape: bf16[2,256,128], index: 0, kind: input, shape index: {}]
  %s1 = inlined_call_operand.vmem [shape: f32[1,128], index: 1, kind: input, shape index: {}]
  %s2 = inlined_call_operand.vmem [shape: f32[1,128], index: 2, kind: input, shape index: {}]
  %s3 = inlined_call_operand.vmem [shape: f32[2,128,256], index: 3, kind: output, shape index: {}]
  %s4 = sld [smem:[#allocation0]]
  $region45: #{conv_block_forward.3} parent=0
    _
  %s6 = ssub.s32 1, %s4
  %s7 = scalar_select 0, %s6, %s4
  loop: start=0, step=1, limit=4
  $region2: #{conv_block_forward.3} parent=0 // loop_pre_header
    _
  $region3: #{conv_block_forward.3} parent=0 // loop_header
    %s9 = sphi 0, %s13
    %p10 = scmp.ge.s32.totalorder %s9, 4
    %s16 = sphi 0, %s28
    %s17 = sphi 0, %s24
    %s18 = sphi 0, %s16
    %s19 = sphi 0, %s17
    %s20 = sphi 0, %s18
    %s21 = sphi 0, %s19
    %s33 = sphi 0, %s35
    %s36 = sphi 0, %s33
    %s37 = sphi 0, %s36
    %s53 = sphi 0, %s37
    %s59 = sphi 0, %s61
    %s62 = sphi 0, %s59
    %s63 = sphi 0, %s62
    %s79 = sphi 0, %s63
    %s85 = sphi 0, %s87
    %s88 = sphi 0, %s85
    %s89 = sphi 0, %s88
    %s105 = sphi 0, %s89
    %s113 = sphi 0, %s115
    %s116 = sphi 0, %s113
    %s117 = sphi 0, %s116
    %s133 = sphi 0, %s117
  $region4: #{conv_block_forward.3} parent=0 // loop_header_branch
    %12 = sbr.rel (%p10) target = $region8
  $region5: #{conv_block_forward.3} parent=0 // loop_body
    %s14 = ssub.s32 %s9, 1
    %s15 = ssub.s32 %s9, 2
    %s22 = sadd.s32 1, %s17
    %p23 = scmp.ge.s32.totalorder %s22, 1
    %s24 = scalar_select %p23, 0, %s22
    %s25 = sadd.s32 1, %s16
    %s26 = scalar_select %p23, %s25, %s16
    %p27 = scmp.ge.s32.totalorder %s26, 2
    %s28 = scalar_select %p27, 0, %s26
    %s29 = ssub.s32 %s16, %s28
    %s30 = ssub.s32 %s17, %s24
    %s31 = sor.u32 %s29, %s30
    %p32 = scmp.eq.s32.totalorder %s31, 0
    %s34 = sadd.s32 %s33, 1
    %s35 = scalar_select %p32, %s33, %s34
    %p38 = pneg %p32
    %p39 = scmp.eq.s32.totalorder %s9, 1
    %p40 = por %p38, %p39
    %p41 = scmp.ne.s32.totalorder %s33, %s36
    %p42 = scmp.eq.s32.totalorder %s9, 0
    %p43 = por %p41, %p42
    %p44 = scmp.ne.s32.totalorder %s33, %s36
    %p45 = scmp.eq.s32.totalorder %s14, 1
    %p46 = por %p44, %p45
    %p47 = scmp.ne.s32.totalorder %s36, %s37
    %p48 = scmp.eq.s32.totalorder %s14, 0
    %p49 = por %p47, %p48
    %p50 = scmp.ne.s32.totalorder %s36, %s37
    %p51 = scmp.eq.s32.totalorder %s15, 1
    %p52 = por %p50, %p51
    %p54 = scmp.ne.s32.totalorder %s37, %s53
    %p55 = scmp.eq.s32.totalorder %s15, 0
    %p56 = por %p54, %p55
    %s57 = ssub.s32 %s17, %s24
    %p58 = scmp.eq.s32.totalorder %s57, 0
    %s60 = sadd.s32 %s59, 1
    %s61 = scalar_select %p58, %s59, %s60
    %p64 = pneg %p58
    %p65 = scmp.eq.s32.totalorder %s9, 1
    %p66 = por %p64, %p65
    %p67 = scmp.ne.s32.totalorder %s59, %s62
    %p68 = scmp.eq.s32.totalorder %s9, 0
    %p69 = por %p67, %p68
    %p70 = scmp.ne.s32.totalorder %s59, %s62
    %p71 = scmp.eq.s32.totalorder %s14, 1
    %p72 = por %p70, %p71
    %p73 = scmp.ne.s32.totalorder %s62, %s63
    %p74 = scmp.eq.s32.totalorder %s14, 0
    %p75 = por %p73, %p74
    %p76 = scmp.ne.s32.totalorder %s62, %s63
    %p77 = scmp.eq.s32.totalorder %s15, 1
    %p78 = por %p76, %p77
    %p80 = scmp.ne.s32.totalorder %s63, %s79
    %p81 = scmp.eq.s32.totalorder %s15, 0
    %p82 = por %p80, %p81
    %s83 = ssub.s32 %s17, %s24
    %p84 = scmp.eq.s32.totalorder %s83, 0
    %s86 = sadd.s32 %s85, 1
    %s87 = scalar_select %p84, %s85, %s86
    %p90 = pneg %p84
    %p91 = scmp.eq.s32.totalorder %s9, 1
    %p92 = por %p90, %p91
    %p93 = scmp.ne.s32.totalorder %s85, %s88
    %p94 = scmp.eq.s32.totalorder %s9, 0
    %p95 = por %p93, %p94
    %p96 = scmp.ne.s32.totalorder %s85, %s88
    %p97 = scmp.eq.s32.totalorder %s14, 1
    %p98 = por %p96, %p97
    %p99 = scmp.ne.s32.totalorder %s88, %s89
    %p100 = scmp.eq.s32.totalorder %s14, 0
    %p101 = por %p99, %p100
    %p102 = scmp.ne.s32.totalorder %s88, %s89
    %p103 = scmp.eq.s32.totalorder %s15, 1
    %p104 = por %p102, %p103
    %p106 = scmp.ne.s32.totalorder %s89, %s105
    %p107 = scmp.eq.s32.totalorder %s15, 0
    %p108 = por %p106, %p107
    %s109 = ssub.s32 %s16, %s28
    %s110 = ssub.s32 %s17, %s24
    %s111 = sor.u32 %s109, %s110
    %p112 = scmp.eq.s32.totalorder %s111, 0
    %s114 = sadd.s32 %s113, 1
    %s115 = scalar_select %p112, %s113, %s114
    %p118 = pneg %p112
    %p119 = scmp.eq.s32.totalorder %s9, 1
    %p120 = por %p118, %p119
    %p121 = scmp.ne.s32.totalorder %s113, %s116
    %p122 = scmp.eq.s32.totalorder %s9, 0
    %p123 = por %p121, %p122
    %p124 = scmp.ne.s32.totalorder %s113, %s116
    %p125 = scmp.eq.s32.totalorder %s14, 1
    %p126 = por %p124, %p125
    %p127 = scmp.ne.s32.totalorder %s116, %s117
    %p128 = scmp.eq.s32.totalorder %s14, 0
    %p129 = por %p127, %p128
    %p130 = scmp.ne.s32.totalorder %s116, %s117
    %p131 = scmp.eq.s32.totalorder %s15, 1
    %p132 = por %p130, %p131
    %p134 = scmp.ne.s32.totalorder %s117, %s133
    %p135 = scmp.eq.s32.totalorder %s15, 0
    %p136 = por %p134, %p135
    %p137 = scmp.le.s32.totalorder 1, %s9
    %p138 = scmp.lt.s32.totalorder %s9, 3
    %p139 = pnand %p137, %p138
    %p140 = pneg %p139
    // Predicated region
    $region9: #{conv_block_forward.3} parent=5 // pred_check
      _
    $region10: #{conv_block_forward.3} parent=5 // pred_check_branch
      %142 = sbr.rel (%p139) target = $region12
    $region11: #{conv_block_forward.3} parent=5 // pred_region
      %s143 = ssub.s32 %s9, 1
      // Predicated region
      $region13: #{conv_block_forward.3} parent=11 // pred_check
        %p144 = pneg %p75
      $region14: #{conv_block_forward.3} parent=11 // pred_check_branch
        %146 = sbr.rel (%p144) target = $region16
      $region15: #{conv_block_forward.3} parent=11 // pred_region
        %p147 = scmp.lt.s32.totalorder %s19, 0
        %s148 = scalar_select %p147, %s19, 0
        %s149 = scalar_lea.vmem %s1, %s148
      $region16: #{conv_block_forward.3} parent=11 // pred_fallthru
        _
      // Predicated region
      $region17: #{conv_block_forward.3} parent=11 // pred_check
        %p150 = pneg %p101
      $region18: #{conv_block_forward.3} parent=11 // pred_check_branch
        %152 = sbr.rel (%p150) target = $region20
      $region19: #{conv_block_forward.3} parent=11 // pred_region
        %p153 = scmp.lt.s32.totalorder %s19, 0
        %s154 = scalar_select %p153, %s19, 0
        %s155 = scalar_lea.vmem %s2, %s154
      $region20: #{conv_block_forward.3} parent=11 // pred_fallthru
        _
    $region12: #{conv_block_forward.3} parent=5 // pred_fallthru
      _
    %p156 = scmp.lt.s32.totalorder %s9, 2
    // Predicated region
    $region21: #{conv_block_forward.3} parent=5 // pred_check
      %p157 = pneg %p156
    $region22: #{conv_block_forward.3} parent=5 // pred_check_branch
      %159 = sbr.rel (%p157) target = $region24
    $region23: #{conv_block_forward.3} parent=5 // pred_region
      // Predicated region
      $region25: #{conv_block_forward.3} parent=23 // pred_check
        %p160 = pneg %p43
      $region26: #{conv_block_forward.3} parent=23 // pred_check_branch
        %162 = sbr.rel (%p160) target = $region28
      $region27: #{conv_block_forward.3} parent=23 // pred_region
        %p163 = scmp.lt.s32.totalorder %s16, 1
        %s164 = scalar_select %p163, %s16, 1
        %p165 = scmp.lt.s32.totalorder %s17, 0
        %s166 = scalar_select %p165, %s17, 0
        %s167 = smul.addr %s164, 32
        %s168 = sadd.s32 %s166, %s167
        %s169 = smul.addr %s168, 4
        %s170 = scalar_lea.vmem %s0, %s169
      $region28: #{conv_block_forward.3} parent=23 // pred_fallthru
        _
    $region24: #{conv_block_forward.3} parent=5 // pred_fallthru
      _
    %p171 = scmp.le.s32.totalorder 1, %s9
    %p172 = scmp.lt.s32.totalorder %s9, 3
    %p173 = pnand %p171, %p172
    %p174 = pneg %p173
    // Predicated region
    $region29: #{conv_block_forward.3} parent=5 // pred_check
      _
    $region30: #{conv_block_forward.3} parent=5 // pred_check_branch
      %176 = sbr.rel (%p173) target = $region32
    $region31: #{conv_block_forward.3} parent=5 // pred_region
      %s177 = ssub.s32 %s9, 1
      %p178 = scmp.lt.s32.totalorder %s18, 1
      %s179 = scalar_select %p178, %s18, 1
      %p180 = scmp.lt.s32.totalorder %s19, 0
      %s181 = scalar_select %p180, %s19, 0
      %s182 = smul.addr %s179, 32
      %s183 = sadd.s32 %s181, %s182
      %s184 = smul.addr %s183, 4
      %s185 = scalar_lea.vmem %s0, %s184
      %p186 = pneg %p49
      %p187 = pneg %p46
      %p188 = scmp.lt.s32.totalorder %s19, 0
      %s189 = scalar_select %p188, %s19, 0
      %s190 = scalar_lea.vmem %s1, %s189
      %p191 = pneg %p75
      %p192 = pneg %p72
      %p193 = scmp.lt.s32.totalorder %s19, 0
      %s194 = scalar_select %p193, %s19, 0
      %s195 = scalar_lea.vmem %s2, %s194
      %p196 = pneg %p101
      %p197 = pneg %p98
      %p198 = pneg %p129
      %p199 = pneg %p126
      %s200 = smul.u32 16, %s19
      %p201 = scmp.lt.s32.totalorder %s18, 1
      %s202 = scalar_select %p201, %s18, 1
      %p203 = scmp.lt.s32.totalorder %s200, 15
      %s204 = scalar_select %p203, %s200, 15
      %s205 = smul.addr %s204, 2
      %s206 = smul.addr %s202, 32
      %s207 = sadd.s32 %s205, %s206
      %s208 = smul.addr %s207, 8
      %s209 = scalar_lea.vmem %s3, %s208
      %p210 = scmp.lt.s32.totalorder %s18, 1
      %s211 = scalar_select %p210, %s18, 1
      %p212 = scmp.lt.s32.totalorder %s19, 0
      %s213 = scalar_select %p212, %s19, 0
      %s214 = smul.addr %s211, 32
      %s215 = sadd.s32 %s213, %s214
      %s216 = smul.addr %s215, 4
      %s217 = scalar_lea.vmem %s0, %s216
      %p218 = scmp.lt.s32.totalorder %s19, 0
      %s219 = scalar_select %p218, %s19, 0
      %s220 = scalar_lea.vmem %s1, %s219
      %p221 = scmp.lt.s32.totalorder %s19, 0
      %s222 = scalar_select %p221, %s19, 0
      %s223 = scalar_lea.vmem %s2, %s222
      %s224 = smul.u32 16, %s19
      %p225 = scmp.lt.s32.totalorder %s18, 1
      %s226 = scalar_select %p225, %s18, 1
      %p227 = scmp.lt.s32.totalorder %s224, 15
      %s228 = scalar_select %p227, %s224, 15
      %s229 = smul.addr %s228, 2
      %s230 = smul.addr %s226, 32
      %s231 = sadd.s32 %s229, %s230
      %s232 = smul.addr %s231, 8
      %s233 = scalar_lea.vmem %s3, %s232
      %s234 = smul.u32 16, %s19
      %v235 = vld [vmem:[%s217] sm:$0xf]
      %v236 = vld [vmem:[%s217 + $0x4] sm:$0xf]
      %v237 = vld [vmem:[%s217 + $0x8] sm:$0xf]
      %v238 = vld [vmem:[%s217 + $0xc] sm:$0xf]
      %v239 = vld [vmem:[%s217 + $0x10] sm:$0xf]
      %v240 = vld [vmem:[%s217 + $0x14] sm:$0xf]
      %v241 = vld [vmem:[%s217 + $0x18] sm:$0xf]
      %v242 = vld [vmem:[%s217 + $0x1c] sm:$0xf]
      %v243 = vld [vmem:[%s217 + $0x20] sm:$0xf]
      %v244 = vld [vmem:[%s217 + $0x24] sm:$0xf]
      %v245 = vld [vmem:[%s217 + $0x28] sm:$0xf]
      %v246 = vld [vmem:[%s217 + $0x2c] sm:$0xf]
      %v247 = vld [vmem:[%s217 + $0x30] sm:$0xf]
      %v248 = vld [vmem:[%s217 + $0x34] sm:$0xf]
      %v249 = vld [vmem:[%s217 + $0x38] sm:$0xf]
      %v250 = vld [vmem:[%s217 + $0x3c] sm:$0xf]
      %v251 = vld [vmem:[%s217 + $0x40] sm:$0xf]
      %v252 = vld [vmem:[%s217 + $0x44] sm:$0xf]
      %v253 = vld [vmem:[%s217 + $0x48] sm:$0xf]
      %v254 = vld [vmem:[%s217 + $0x4c] sm:$0xf]
      %v255 = vld [vmem:[%s217 + $0x50] sm:$0xf]
      %v256 = vld [vmem:[%s217 + $0x54] sm:$0xf]
      %v257 = vld [vmem:[%s217 + $0x58] sm:$0xf]
      %v258 = vld [vmem:[%s217 + $0x5c] sm:$0xf]
      %v259 = vld [vmem:[%s217 + $0x60] sm:$0xf]
      %v260 = vld [vmem:[%s217 + $0x64] sm:$0xf]
      %v261 = vld [vmem:[%s217 + $0x68] sm:$0xf]
      %v262 = vld [vmem:[%s217 + $0x6c] sm:$0xf]
      %v263 = vld [vmem:[%s217 + $0x70] sm:$0xf]
      %v264 = vld [vmem:[%s217 + $0x74] sm:$0xf]
      %v265 = vld [vmem:[%s217 + $0x78] sm:$0xf]
      %v266 = vld [vmem:[%s217 + $0x7c] sm:$0xf]
      %v267 = vunpack.c.l.bf16 %v235
      %v268 = vunpack.c.l.bf16 %v236
      %v269 = vunpack.c.l.bf16 %v237
      %v270 = vunpack.c.l.bf16 %v238
      %v271 = vunpack.c.l.bf16 %v239
      %v272 = vunpack.c.l.bf16 %v240
      %v273 = vunpack.c.l.bf16 %v241
      %v274 = vunpack.c.l.bf16 %v242
      %v275 = vunpack.c.l.bf16 %v243
      %v276 = vunpack.c.l.bf16 %v244
      %v277 = vunpack.c.l.bf16 %v245
      %v278 = vunpack.c.l.bf16 %v246
      %v279 = vunpack.c.l.bf16 %v247
      %v280 = vunpack.c.l.bf16 %v248
      %v281 = vunpack.c.l.bf16 %v249
      %v282 = vunpack.c.l.bf16 %v250
      %v283 = vunpack.c.l.bf16 %v251
      %v284 = vunpack.c.l.bf16 %v252
      %v285 = vunpack.c.l.bf16 %v253
      %v286 = vunpack.c.l.bf16 %v254
      %v287 = vunpack.c.l.bf16 %v255
      %v288 = vunpack.c.l.bf16 %v256
      %v289 = vunpack.c.l.bf16 %v257
      %v290 = vunpack.c.l.bf16 %v258
      %v291 = vunpack.c.l.bf16 %v259
      %v292 = vunpack.c.l.bf16 %v260
      %v293 = vunpack.c.l.bf16 %v261
      %v294 = vunpack.c.l.bf16 %v262
      %v295 = vunpack.c.l.bf16 %v263
      %v296 = vunpack.c.l.bf16 %v264
      %v297 = vunpack.c.l.bf16 %v265
      %v298 = vunpack.c.l.bf16 %v266
      %v299 = vld [vmem:[%s220] sm:$0x1]
      %v301 = vlaneseq
      %v302 = vshrl.u32 %v301, 7
      %v303 = vsub.s32 0, %v302
      %v304 = vrot.slane %v299, %v303
      %v306 = vsub.f32 %v267, %v304
      %v307 = vsub.f32 %v268, %v304
      %v308 = vsub.f32 %v269, %v304
      %v309 = vsub.f32 %v270, %v304
      %v310 = vsub.f32 %v271, %v304
      %v311 = vsub.f32 %v272, %v304
      %v312 = vsub.f32 %v273, %v304
      %v313 = vsub.f32 %v274, %v304
      %v314 = vsub.f32 %v275, %v304
      %v315 = vsub.f32 %v276, %v304
      %v316 = vsub.f32 %v277, %v304
      %v317 = vsub.f32 %v278, %v304
      %v318 = vsub.f32 %v279, %v304
      %v319 = vsub.f32 %v280, %v304
      %v320 = vsub.f32 %v281, %v304
      %v321 = vsub.f32 %v282, %v304
      %v322 = vsub.f32 %v283, %v304
      %v323 = vsub.f32 %v284, %v304
      %v324 = vsub.f32 %v285, %v304
      %v325 = vsub.f32 %v286, %v304
      %v326 = vsub.f32 %v287, %v304
      %v327 = vsub.f32 %v288, %v304
      %v328 = vsub.f32 %v289, %v304
      %v329 = vsub.f32 %v290, %v304
      %v330 = vsub.f32 %v291, %v304
      %v331 = vsub.f32 %v292, %v304
      %v332 = vsub.f32 %v293, %v304
      %v333 = vsub.f32 %v294, %v304
      %v334 = vsub.f32 %v295, %v304
      %v335 = vsub.f32 %v296, %v304
      %v336 = vsub.f32 %v297, %v304
      %v337 = vsub.f32 %v298, %v304
      %v338 = vld [vmem:[%s223] sm:$0x1]
      %v340 = vlaneseq
      %v341 = vshrl.u32 %v340, 7
      %v342 = vsub.s32 0, %v341
      %v343 = vrot.slane %v338, %v342
      %v345 = vmul.f32 %v306, %v343
      %v346 = vmul.f32 %v307, %v343
      %v347 = vmul.f32 %v308, %v343
      %v348 = vmul.f32 %v309, %v343
      %v349 = vmul.f32 %v310, %v343
      %v350 = vmul.f32 %v311, %v343
      %v351 = vmul.f32 %v312, %v343
      %v352 = vmul.f32 %v313, %v343
      %v353 = vmul.f32 %v314, %v343
      %v354 = vmul.f32 %v315, %v343
      %v355 = vmul.f32 %v316, %v343
      %v356 = vmul.f32 %v317, %v343
      %v357 = vmul.f32 %v318, %v343
      %v358 = vmul.f32 %v319, %v343
      %v359 = vmul.f32 %v320, %v343
      %v360 = vmul.f32 %v321, %v343
      %v361 = vmul.f32 %v322, %v343
      %v362 = vmul.f32 %v323, %v343
      %v363 = vmul.f32 %v324, %v343
      %v364 = vmul.f32 %v325, %v343
      %v365 = vmul.f32 %v326, %v343
      %v366 = vmul.f32 %v327, %v343
      %v367 = vmul.f32 %v328, %v343
      %v368 = vmul.f32 %v329, %v343
      %v369 = vmul.f32 %v330, %v343
      %v370 = vmul.f32 %v331, %v343
      %v371 = vmul.f32 %v332, %v343
      %v372 = vmul.f32 %v333, %v343
      %v373 = vmul.f32 %v334, %v343
      %v374 = vmul.f32 %v335, %v343
      %v375 = vmul.f32 %v336, %v343
      %v376 = vmul.f32 %v337, %v343
      %377 = vxpose.xlu0.b32.start [1/16] %v345, 128
      %378 = vxpose.xlu0.b32.cont [2/16] %v346, 128
      %379 = vxpose.xlu0.b32.cont [3/16] %v347, 128
      %380 = vxpose.xlu0.b32.cont [4/16] %v348, 128
      %381 = vxpose.xlu0.b32.cont [5/16] %v349, 128
      %382 = vxpose.xlu0.b32.cont [6/16] %v350, 128
      %383 = vxpose.xlu0.b32.cont [7/16] %v351, 128
      %384 = vxpose.xlu0.b32.cont [8/16] %v352, 128
      %385 = vxpose.xlu0.b32.cont [9/16] %v353, 128
      %386 = vxpose.xlu0.b32.cont [10/16] %v354, 128
      %387 = vxpose.xlu0.b32.cont [11/16] %v355, 128
      %388 = vxpose.xlu0.b32.cont [12/16] %v356, 128
      %389 = vxpose.xlu0.b32.cont [13/16] %v357, 128
      %390 = vxpose.xlu0.b32.cont [14/16] %v358, 128
      %391 = vxpose.xlu0.b32.cont [15/16] %v359, 128
      %392 = vxpose.xlu0.b32.end [16/16] %v360, 128
      %v393 = vpop.trf.xlu0
      %v394 = vpop.trf.xlu0
      %v395 = vpop.trf.xlu0
      %v396 = vpop.trf.xlu0
      %v397 = vpop.trf.xlu0
      %v398 = vpop.trf.xlu0
      %v399 = vpop.trf.xlu0
      %v400 = vpop.trf.xlu0
      %v401 = vpop.trf.xlu0
      %v402 = vpop.trf.xlu0
      %v403 = vpop.trf.xlu0
      %v404 = vpop.trf.xlu0
      %v405 = vpop.trf.xlu0
      %v406 = vpop.trf.xlu0
      %v407 = vpop.trf.xlu0
      %v408 = vpop.trf.xlu0
      %409 = vxpose.xlu0.b32.start [1/16] %v361, 128
      %410 = vxpose.xlu0.b32.cont [2/16] %v362, 128
      %411 = vxpose.xlu0.b32.cont [3/16] %v363, 128
      %412 = vxpose.xlu0.b32.cont [4/16] %v364, 128
      %413 = vxpose.xlu0.b32.cont [5/16] %v365, 128
      %414 = vxpose.xlu0.b32.cont [6/16] %v366, 128
      %415 = vxpose.xlu0.b32.cont [7/16] %v367, 128
      %416 = vxpose.xlu0.b32.cont [8/16] %v368, 128
      %417 = vxpose.xlu0.b32.cont [9/16] %v369, 128
      %418 = vxpose.xlu0.b32.cont [10/16] %v370, 128
      %419 = vxpose.xlu0.b32.cont [11/16] %v371, 128
      %420 = vxpose.xlu0.b32.cont [12/16] %v372, 128
      %421 = vxpose.xlu0.b32.cont [13/16] %v373, 128
      %422 = vxpose.xlu0.b32.cont [14/16] %v374, 128
      %423 = vxpose.xlu0.b32.cont [15/16] %v375, 128
      %424 = vxpose.xlu0.b32.end [16/16] %v376, 128
      %v425 = vpop.trf.xlu0
      %v426 = vpop.trf.xlu0
      %v427 = vpop.trf.xlu0
      %v428 = vpop.trf.xlu0
      %v429 = vpop.trf.xlu0
      %v430 = vpop.trf.xlu0
      %v431 = vpop.trf.xlu0
      %v432 = vpop.trf.xlu0
      %v433 = vpop.trf.xlu0
      %v434 = vpop.trf.xlu0
      %v435 = vpop.trf.xlu0
      %v436 = vpop.trf.xlu0
      %v437 = vpop.trf.xlu0
      %v438 = vpop.trf.xlu0
      %v439 = vpop.trf.xlu0
      %v440 = vpop.trf.xlu0
      %441 = vst [vmem:[%s233] sm:$0xff] %v393
      %442 = vst [vmem:[%s233 + $0x8] sm:$0xff] %v425
      %443 = vst [vmem:[%s233 + $0x10] sm:$0xff] %v394
      %444 = vst [vmem:[%s233 + $0x18] sm:$0xff] %v426
      %445 = vst [vmem:[%s233 + $0x20] sm:$0xff] %v395
      %446 = vst [vmem:[%s233 + $0x28] sm:$0xff] %v427
      %447 = vst [vmem:[%s233 + $0x30] sm:$0xff] %v396
      %448 = vst [vmem:[%s233 + $0x38] sm:$0xff] %v428
      %449 = vst [vmem:[%s233 + $0x40] sm:$0xff] %v397
      %450 = vst [vmem:[%s233 + $0x48] sm:$0xff] %v429
      %451 = vst [vmem:[%s233 + $0x50] sm:$0xff] %v398
      %452 = vst [vmem:[%s233 + $0x58] sm:$0xff] %v430
      %453 = vst [vmem:[%s233 + $0x60] sm:$0xff] %v399
      %454 = vst [vmem:[%s233 + $0x68] sm:$0xff] %v431
      %455 = vst [vmem:[%s233 + $0x70] sm:$0xff] %v400
      %456 = vst [vmem:[%s233 + $0x78] sm:$0xff] %v432
      %457 = vst [vmem:[%s233 + $0x80] sm:$0xff] %v401
      %458 = vst [vmem:[%s233 + $0x88] sm:$0xff] %v433
      %459 = vst [vmem:[%s233 + $0x90] sm:$0xff] %v402
      %460 = vst [vmem:[%s233 + $0x98] sm:$0xff] %v434
      %461 = vst [vmem:[%s233 + $0xa0] sm:$0xff] %v403
      %462 = vst [vmem:[%s233 + $0xa8] sm:$0xff] %v435
      %463 = vst [vmem:[%s233 + $0xb0] sm:$0xff] %v404
      %464 = vst [vmem:[%s233 + $0xb8] sm:$0xff] %v436
      %465 = vst [vmem:[%s233 + $0xc0] sm:$0xff] %v405
      %466 = vst [vmem:[%s233 + $0xc8] sm:$0xff] %v437
      %467 = vst [vmem:[%s233 + $0xd0] sm:$0xff] %v406
      %468 = vst [vmem:[%s233 + $0xd8] sm:$0xff] %v438
      %469 = vst [vmem:[%s233 + $0xe0] sm:$0xff] %v407
      %470 = vst [vmem:[%s233 + $0xe8] sm:$0xff] %v439
      %471 = vst [vmem:[%s233 + $0xf0] sm:$0xff] %v408
      %472 = vst [vmem:[%s233 + $0xf8] sm:$0xff] %v440
      %s473 = smul.u32 16, %s19
      %p474 = scmp.lt.s32.totalorder %s18, 1
      %s475 = scalar_select %p474, %s18, 1
      %p476 = scmp.lt.s32.totalorder %s473, 15
      %s477 = scalar_select %p476, %s473, 15
      %s478 = smul.addr %s477, 2
      %s479 = smul.addr %s475, 32
      %s480 = sadd.s32 %s478, %s479
      %s481 = smul.addr %s480, 8
      %s482 = scalar_lea.vmem %s3, %s481
      // Predicated region
      $region33: #{conv_block_forward.3} parent=31 // pred_check
        %p483 = pneg %p126
      $region34: #{conv_block_forward.3} parent=31 // pred_check_branch
        %485 = sbr.rel (%p483) target = $region36
      $region35: #{conv_block_forward.3} parent=31 // pred_region
        %s486 = smul.u32 16, %s19
      $region36: #{conv_block_forward.3} parent=31 // pred_fallthru
        _
    $region32: #{conv_block_forward.3} parent=5 // pred_fallthru
      _
    %p487 = scmp.le.s32.totalorder 2, %s9
    // Predicated region
    $region37: #{conv_block_forward.3} parent=5 // pred_check
      %p488 = pneg %p487
    $region38: #{conv_block_forward.3} parent=5 // pred_check_branch
      %490 = sbr.rel (%p488) target = $region40
    $region39: #{conv_block_forward.3} parent=5 // pred_region
      %s491 = ssub.s32 %s9, 2
      // Predicated region
      $region41: #{conv_block_forward.3} parent=39 // pred_check
        %p492 = pneg %p132
      $region42: #{conv_block_forward.3} parent=39 // pred_check_branch
        %494 = sbr.rel (%p492) target = $region44
      $region43: #{conv_block_forward.3} parent=39 // pred_region
        %s495 = smul.u32 16, %s21
        %p496 = scmp.lt.s32.totalorder %s20, 1
        %s497 = scalar_select %p496, %s20, 1
        %p498 = scmp.lt.s32.totalorder %s495, 15
        %s499 = scalar_select %p498, %s495, 15
        %s500 = smul.addr %s499, 2
        %s501 = smul.addr %s497, 32
        %s502 = sadd.s32 %s500, %s501
        %s503 = smul.addr %s502, 8
        %s504 = scalar_lea.vmem %s3, %s503
      $region44: #{conv_block_forward.3} parent=39 // pred_fallthru
        _
    $region40: #{conv_block_forward.3} parent=5 // pred_fallthru
      _
  $region6: #{conv_block_forward.3} parent=0 // loop_footer
    %s13 = sadd.s32 1, %s9
  $region7: #{conv_block_forward.3} parent=0 // loop_footer_branch
    %8 = sbr.rel target = $region3
  $region8: #{conv_block_forward.3} parent=0 // loop_exit
    _

// kernel: conv_block_forward.2
$region0: #{conv_block_forward.2}
  #allocation0 [shape = 'u32[]', space=smem, size = 0x4, offset = 0x4, fixed_abs, tag = 'smem constant byte address 0x4 - core index']
  #allocation1 [shape = 'u32[144,128]{1,0:T(1,128)}', space=vmem, size = 0x12000, scoped, tag = 'internal scratch']
  #allocation2 [shape = 'f32[8,128]{1,0:T(8,128)}', space=vmem, size = 0x1000, scoped, tag = 'scratch operand']
  #allocation3 [shape = 'f32[8,128]{1,0:T(8,128)}', space=vmem, size = 0x1000, scoped, tag = 'scratch operand']
  %s0 = inlined_call_operand.vmem [shape: bf16[2,18,18,4], index: 0, kind: input, shape index: {}]
  %s1 = inlined_call_operand.vmem [shape: bf16[9,4,128], index: 1, kind: input, shape index: {}]
  %s2 = inlined_call_operand.vmem [shape: bf16[2,256,128], index: 2, kind: output, shape index: {0}]
  %s3 = inlined_call_operand.vmem [shape: f32[1,128], index: 3, kind: output, shape index: {1}]
  %s4 = inlined_call_operand.vmem [shape: f32[1,128], index: 4, kind: output, shape index: {2}]
  %5 = xla_tuple %s2, %s3, %s4
  %s6 = sld [smem:[#allocation0]]
  $region65: #{conv_block_forward.2} parent=0
    _
  %s8 = ssub.s32 1, %s6
  %s9 = scalar_select 0, %s8, %s6
  loop: start=0, step=1, limit=4
  $region2: #{conv_block_forward.2} parent=0 // loop_pre_header
    _
  $region3: #{conv_block_forward.2} parent=0 // loop_header
    %s11 = sphi 0, %s15
    %p12 = scmp.ge.s32.totalorder %s11, 4
    %s18 = sphi 0, %s30
    %s19 = sphi 0, %s26
    %s20 = sphi 0, %s18
    %s21 = sphi 0, %s19
    %s22 = sphi 0, %s20
    %s23 = sphi 0, %s21
    %s33 = sphi 0, %s35
    %s36 = sphi 0, %s33
    %s37 = sphi 0, %s36
    %s53 = sphi 0, %s37
    %s59 = sphi 0, %s61
    %s62 = sphi 0, %s59
    %s63 = sphi 0, %s62
    %s79 = sphi 0, %s63
    %s87 = sphi 0, %s89
    %s90 = sphi 0, %s87
    %s91 = sphi 0, %s90
    %s107 = sphi 0, %s91
    %s113 = sphi 0, %s115
    %s116 = sphi 0, %s113
    %s117 = sphi 0, %s116
    %s133 = sphi 0, %s117
    %s139 = sphi 0, %s141
    %s142 = sphi 0, %s139
    %s143 = sphi 0, %s142
    %s159 = sphi 0, %s143
  $region4: #{conv_block_forward.2} parent=0 // loop_header_branch
    %14 = sbr.rel (%p12) target = $region8
  $region5: #{conv_block_forward.2} parent=0 // loop_body
    %s16 = ssub.s32 %s11, 1
    %s17 = ssub.s32 %s11, 2
    %s24 = sadd.s32 1, %s19
    %p25 = scmp.ge.s32.totalorder %s24, 2
    %s26 = scalar_select %p25, 0, %s24
    %s27 = sadd.s32 1, %s18
    %s28 = scalar_select %p25, %s27, %s18
    %p29 = scmp.ge.s32.totalorder %s28, 1
    %s30 = scalar_select %p29, 0, %s28
    %s31 = ssub.s32 %s19, %s26
    %p32 = scmp.eq.s32.totalorder %s31, 0
    %s34 = sadd.s32 %s33, 1
    %s35 = scalar_select %p32, %s33, %s34
    %p38 = pneg %p32
    %p39 = scmp.eq.s32.totalorder %s11, 1
    %p40 = por %p38, %p39
    %p41 = scmp.ne.s32.totalorder %s33, %s36
    %p42 = scmp.eq.s32.totalorder %s11, 0
    %p43 = por %p41, %p42
    %p44 = scmp.ne.s32.totalorder %s33, %s36
    %p45 = scmp.eq.s32.totalorder %s16, 1
    %p46 = por %p44, %p45
    %p47 = scmp.ne.s32.totalorder %s36, %s37
    %p48 = scmp.eq.s32.totalorder %s16, 0
    %p49 = por %p47, %p48
    %p50 = scmp.ne.s32.totalorder %s36, %s37
    %p51 = scmp.eq.s32.totalorder %s17, 1
    %p52 = por %p50, %p51
    %p54 = scmp.ne.s32.totalorder %s37, %s53
    %p55 = scmp.eq.s32.totalorder %s17, 0
    %p56 = por %p54, %p55
    %s57 = ssub.s32 %s18, %s30
    %p58 = scmp.eq.s32.totalorder %s57, 0
    %s60 = sadd.s32 %s59, 1
    %s61 = scalar_select %p58, %s59, %s60
    %p64 = pneg %p58
    %p65 = scmp.eq.s32.totalorder %s11, 1
    %p66 = por %p64, %p65
    %p67 = scmp.ne.s32.totalorder %s59, %s62
    %p68 = scmp.eq.s32.totalorder %s11, 0
    %p69 = por %p67, %p68
    %p70 = scmp.ne.s32.totalorder %s59, %s62
    %p71 = scmp.eq.s32.totalorder %s16, 1
    %p72 = por %p70, %p71
    %p73 = scmp.ne.s32.totalorder %s62, %s63
    %p74 = scmp.eq.s32.totalorder %s16, 0
    %p75 = por %p73, %p74
    %p76 = scmp.ne.s32.totalorder %s62, %s63
    %p77 = scmp.eq.s32.totalorder %s17, 1
    %p78 = por %p76, %p77
    %p80 = scmp.ne.s32.totalorder %s63, %s79
    %p81 = scmp.eq.s32.totalorder %s17, 0
    %p82 = por %p80, %p81
    %s83 = ssub.s32 %s19, %s26
    %s84 = ssub.s32 %s18, %s30
    %s85 = sor.u32 %s83, %s84
    %p86 = scmp.eq.s32.totalorder %s85, 0
    %s88 = sadd.s32 %s87, 1
    %s89 = scalar_select %p86, %s87, %s88
    %p92 = pneg %p86
    %p93 = scmp.eq.s32.totalorder %s11, 1
    %p94 = por %p92, %p93
    %p95 = scmp.ne.s32.totalorder %s87, %s90
    %p96 = scmp.eq.s32.totalorder %s11, 0
    %p97 = por %p95, %p96
    %p98 = scmp.ne.s32.totalorder %s87, %s90
    %p99 = scmp.eq.s32.totalorder %s16, 1
    %p100 = por %p98, %p99
    %p101 = scmp.ne.s32.totalorder %s90, %s91
    %p102 = scmp.eq.s32.totalorder %s16, 0
    %p103 = por %p101, %p102
    %p104 = scmp.ne.s32.totalorder %s90, %s91
    %p105 = scmp.eq.s32.totalorder %s17, 1
    %p106 = por %p104, %p105
    %p108 = scmp.ne.s32.totalorder %s91, %s107
    %p109 = scmp.eq.s32.totalorder %s17, 0
    %p110 = por %p108, %p109
    %s111 = ssub.s32 %s18, %s30
    %p112 = scmp.eq.s32.totalorder %s111, 0
    %s114 = sadd.s32 %s113, 1
    %s115 = scalar_select %p112, %s113, %s114
    %p118 = pneg %p112
    %p119 = scmp.eq.s32.totalorder %s11, 1
    %p120 = por %p118, %p119
    %p121 = scmp.ne.s32.totalorder %s113, %s116
    %p122 = scmp.eq.s32.totalorder %s11, 0
    %p123 = por %p121, %p122
    %p124 = scmp.ne.s32.totalorder %s113, %s116
    %p125 = scmp.eq.s32.totalorder %s16, 1
    %p126 = por %p124, %p125
    %p127 = scmp.ne.s32.totalorder %s116, %s117
    %p128 = scmp.eq.s32.totalorder %s16, 0
    %p129 = por %p127, %p128
    %p130 = scmp.ne.s32.totalorder %s116, %s117
    %p131 = scmp.eq.s32.totalorder %s17, 1
    %p132 = por %p130, %p131
    %p134 = scmp.ne.s32.totalorder %s117, %s133
    %p135 = scmp.eq.s32.totalorder %s17, 0
    %p136 = por %p134, %p135
    %s137 = ssub.s32 %s18, %s30
    %p138 = scmp.eq.s32.totalorder %s137, 0
    %s140 = sadd.s32 %s139, 1
    %s141 = scalar_select %p138, %s139, %s140
    %p144 = pneg %p138
    %p145 = scmp.eq.s32.totalorder %s11, 1
    %p146 = por %p144, %p145
    %p147 = scmp.ne.s32.totalorder %s139, %s142
    %p148 = scmp.eq.s32.totalorder %s11, 0
    %p149 = por %p147, %p148
    %p150 = scmp.ne.s32.totalorder %s139, %s142
    %p151 = scmp.eq.s32.totalorder %s16, 1
    %p152 = por %p150, %p151
    %p153 = scmp.ne.s32.totalorder %s142, %s143
    %p154 = scmp.eq.s32.totalorder %s16, 0
    %p155 = por %p153, %p154
    %p156 = scmp.ne.s32.totalorder %s142, %s143
    %p157 = scmp.eq.s32.totalorder %s17, 1
    %p158 = por %p156, %p157
    %p160 = scmp.ne.s32.totalorder %s143, %s159
    %p161 = scmp.eq.s32.totalorder %s17, 0
    %p162 = por %p160, %p161
    %p163 = scmp.le.s32.totalorder 1, %s11
    %p164 = scmp.lt.s32.totalorder %s11, 3
    %p165 = pnand %p163, %p164
    %p166 = pneg %p165
    // Predicated region
    $region9: #{conv_block_forward.2} parent=5 // pred_check
      _
    $region10: #{conv_block_forward.2} parent=5 // pred_check_branch
      %168 = sbr.rel (%p165) target = $region12
    $region11: #{conv_block_forward.2} parent=5 // pred_region
      %s169 = ssub.s32 %s11, 1
      // Predicated region
      $region13: #{conv_block_forward.2} parent=11 // pred_check
        %p170 = pneg %p75
      $region14: #{conv_block_forward.2} parent=11 // pred_check_branch
        %172 = sbr.rel (%p170) target = $region16
      $region15: #{conv_block_forward.2} parent=11 // pred_region
        %p173 = scmp.lt.s32.totalorder %s20, 0
        %s174 = scalar_select %p173, %s20, 0
        %s175 = smul.addr %s174, 2
        %s176 = scalar_lea.vmem %s1, %s175
      $region16: #{conv_block_forward.2} parent=11 // pred_fallthru
        _
    $region12: #{conv_block_forward.2} parent=5 // pred_fallthru
      _
    %p177 = scmp.lt.s32.totalorder %s11, 2
    // Predicated region
    $region17: #{conv_block_forward.2} parent=5 // pred_check
      %p178 = pneg %p177
    $region18: #{conv_block_forward.2} parent=5 // pred_check_branch
      %180 = sbr.rel (%p178) target = $region20
    $region19: #{conv_block_forward.2} parent=5 // pred_region
      // Predicated region
      $region21: #{conv_block_forward.2} parent=19 // pred_check
        %p181 = pneg %p43
      $region22: #{conv_block_forward.2} parent=19 // pred_check_branch
        %183 = sbr.rel (%p181) target = $region24
      $region23: #{conv_block_forward.2} parent=19 // pred_region
        %p184 = scmp.lt.s32.totalorder %s19, 1
        %s185 = scalar_select %p184, %s19, 1
        %s186 = smul.addr %s185, 54
        %s187 = smul.addr %s186, 4
        %s188 = scalar_lea.vmem %s0, %s187
      $region24: #{conv_block_forward.2} parent=19 // pred_fallthru
        _
    $region20: #{conv_block_forward.2} parent=5 // pred_fallthru
      _
    %p189 = scmp.le.s32.totalorder 1, %s11
    %p190 = scmp.lt.s32.totalorder %s11, 3
    %p191 = pnand %p189, %p190
    %p192 = pneg %p191
    // Predicated region
    $region25: #{conv_block_forward.2} parent=5 // pred_check
      _
    $region26: #{conv_block_forward.2} parent=5 // pred_check_branch
      %194 = sbr.rel (%p191) target = $region28
    $region27: #{conv_block_forward.2} parent=5 // pred_region
      %s195 = ssub.s32 %s11, 1
      %p196 = scmp.lt.s32.totalorder %s21, 1
      %s197 = scalar_select %p196, %s21, 1
      %s198 = smul.addr %s197, 54
      %s199 = smul.addr %s198, 4
      %s200 = scalar_lea.vmem %s0, %s199
      %p201 = pneg %p49
      %p202 = pneg %p46
      %p203 = scmp.lt.s32.totalorder %s20, 0
      %s204 = scalar_select %p203, %s20, 0
      %s205 = smul.addr %s204, 2
      %s206 = scalar_lea.vmem %s1, %s205
      %p207 = pneg %p75
      %p208 = pneg %p72
      %p209 = pneg %p103
      %p210 = pneg %p100
      %p211 = scmp.lt.s32.totalorder %s21, 1
      %s212 = scalar_select %p211, %s21, 1
      %p213 = scmp.lt.s32.totalorder %s20, 0
      %s214 = scalar_select %p213, %s20, 0
      %s215 = smul.addr %s212, 32
      %s216 = sadd.s32 %s214, %s215
      %s217 = smul.addr %s216, 4
      %s218 = scalar_lea.vmem %s2, %s217
      %p219 = pneg %p129
      %p220 = pneg %p126
      %p221 = scmp.lt.s32.totalorder %s20, 0
      %s222 = scalar_select %p221, %s20, 0
      %s223 = scalar_lea.vmem %s3, %s222
      %p224 = pneg %p155
      %p225 = pneg %p152
      %p226 = scmp.lt.s32.totalorder %s20, 0
      %s227 = scalar_select %p226, %s20, 0
      %s228 = scalar_lea.vmem %s4, %s227
      %p229 = scmp.lt.s32.totalorder %s21, 1
      %s230 = scalar_select %p229, %s21, 1
      %s231 = smul.addr %s230, 54
      %s232 = smul.addr %s231, 4
      %s233 = scalar_lea.vmem %s0, %s232
      %p234 = scmp.lt.s32.totalorder %s20, 0
      %s235 = scalar_select %p234, %s20, 0
      %s236 = smul.addr %s235, 2
      %s237 = scalar_lea.vmem %s1, %s236
      %p238 = scmp.lt.s32.totalorder %s21, 1
      %s239 = scalar_select %p238, %s21, 1
      %p240 = scmp.lt.s32.totalorder %s20, 0
      %s241 = scalar_select %p240, %s20, 0
      %s242 = smul.addr %s239, 32
      %s243 = sadd.s32 %s241, %s242
      %s244 = smul.addr %s243, 4
      %s245 = scalar_lea.vmem %s2, %s244
      %p246 = scmp.lt.s32.totalorder %s20, 0
      %s247 = scalar_select %p246, %s20, 0
      %s248 = scalar_lea.vmem %s3, %s247
      %p249 = scmp.lt.s32.totalorder %s20, 0
      %s250 = scalar_select %p249, %s20, 0
      %s251 = scalar_lea.vmem %s4, %s250
      %v253 = vld [vmem:[%s233] sm:$0xf]
      %v254 = vld [vmem:[%s233 + $0x4] sm:$0xf]
      %v255 = vld [vmem:[%s233 + $0xc] sm:$0xf]
      %v256 = vld [vmem:[%s233 + $0x10] sm:$0xf]
      %v257 = vld [vmem:[%s233 + $0x18] sm:$0xf]
      %v258 = vld [vmem:[%s233 + $0x1c] sm:$0xf]
      %v259 = vld [vmem:[%s233 + $0x24] sm:$0xf]
      %v260 = vld [vmem:[%s233 + $0x28] sm:$0xf]
      %v261 = vld [vmem:[%s233 + $0x30] sm:$0xf]
      %v262 = vld [vmem:[%s233 + $0x34] sm:$0xf]
      %v263 = vld [vmem:[%s233 + $0x3c] sm:$0xf]
      %v264 = vld [vmem:[%s233 + $0x40] sm:$0xf]
      %v265 = vld [vmem:[%s233 + $0x48] sm:$0xf]
      %v266 = vld [vmem:[%s233 + $0x4c] sm:$0xf]
      %v267 = vld [vmem:[%s233 + $0x54] sm:$0xf]
      %v268 = vld [vmem:[%s233 + $0x58] sm:$0xf]
      %v269 = vld [vmem:[%s233 + $0x60] sm:$0xf]
      %v270 = vld [vmem:[%s233 + $0x64] sm:$0xf]
      %v271 = vld [vmem:[%s233 + $0x6c] sm:$0xf]
      %v272 = vld [vmem:[%s233 + $0x70] sm:$0xf]
      %v273 = vld [vmem:[%s233 + $0x78] sm:$0xf]
      %v274 = vld [vmem:[%s233 + $0x7c] sm:$0xf]
      %v275 = vld [vmem:[%s233 + $0x84] sm:$0xf]
      %v276 = vld [vmem:[%s233 + $0x88] sm:$0xf]
      %v277 = vld [vmem:[%s233 + $0x90] sm:$0xf]
      %v278 = vld [vmem:[%s233 + $0x94] sm:$0xf]
      %v279 = vld [vmem:[%s233 + $0x9c] sm:$0xf]
      %v280 = vld [vmem:[%s233 + $0xa0] sm:$0xf]
      %v281 = vld [vmem:[%s233 + $0xa8] sm:$0xf]
      %v282 = vld [vmem:[%s233 + $0xac] sm:$0xf]
      %v283 = vld [vmem:[%s233 + $0xb4] sm:$0xf]
      %v284 = vld [vmem:[%s233 + $0xb8] sm:$0xf]
      %v285 = vld [vmem:[%s237] sm:$0x3]
      %v286 = vld [vmem:[%s233 + $0x8] sm:$0x1]
      %v287 = vld [vmem:[%s233 + $0x14] sm:$0x1]
      %v288 = vld [vmem:[%s233 + $0x20] sm:$0x1]
      %v289 = vld [vmem:[%s233 + $0x2c] sm:$0x1]
      %v290 = vld [vmem:[%s233 + $0x38] sm:$0x1]
      %v291 = vld [vmem:[%s233 + $0x44] sm:$0x1]
      %v292 = vld [vmem:[%s233 + $0x50] sm:$0x1]
      %v293 = vld [vmem:[%s233 + $0x5c] sm:$0x1]
      %v294 = vld [vmem:[%s233 + $0x68] sm:$0x1]
      %v295 = vld [vmem:[%s233 + $0x74] sm:$0x1]
      %v296 = vld [vmem:[%s233 + $0x80] sm:$0x1]
      %v297 = vld [vmem:[%s233 + $0x8c] sm:$0x1]
      %v298 = vld [vmem:[%s233 + $0x98] sm:$0x1]
      %v299 = vld [vmem:[%s233 + $0xa4] sm:$0x1]
      %v300 = vld [vmem:[%s233 + $0xb0] sm:$0x1]
      %v301 = vld [vmem:[%s233 + $0xbc] sm:$0x1]
      %vm302 = vsmask.f32 3328
      %vm303 = vsmask.f32 7440
      %vm304 = vmor %vm302, %vm303
      %v306 = vshrl.u32 %v253, 16
      %v308 = vrot.slane %v306, 4
      %v309 = vshll.u32 %v253, 16
      %v311 = vrot.slane %v309, 5
      %v312 = vor.u32 %v308, %v311
      %v313 = vrot.slane %v312, 4
      %v315 = vshll.u32 %v254, 16
      %v317 = vrot.slane %v315, 5
      %v318 = vsel %vm304, %v313, %v317
      %v319 = vshrl.u32 %v254, 16
      %v321 = vrot.slane %v319, 4
      %v322 = vor.u32 %v321, %v317
      %v323 = vrot.slane %v322, 4
      %v325 = vshll.u32 %v286, 16
      %v327 = vrot.slane %v325, 5
      %v328 = vsel %vm304, %v323, %v327
      %v330 = vshrl.u32 %v255, 16
      %v332 = vrot.slane %v330, 4
      %v333 = vshll.u32 %v255, 16
      %v335 = vrot.slane %v333, 5
      %v336 = vor.u32 %v332, %v335
      %v337 = vrot.slane %v336, 4
      %v339 = vshll.u32 %v256, 16
      %v341 = vrot.slane %v339, 5
      %v342 = vsel %vm304, %v337, %v341
      %v343 = vshrl.u32 %v256, 16
      %v345 = vrot.slane %v343, 4
      %v346 = vor.u32 %v345, %v341
      %v347 = vrot.slane %v346, 4
      %v349 = vshll.u32 %v287, 16
      %v351 = vrot.slane %v349, 5
      %v352 = vsel %vm304, %v347, %v351
      %v354 = vshrl.u32 %v257, 16
      %v356 = vrot.slane %v354, 4
      %v357 = vshll.u32 %v257, 16
      %v359 = vrot.slane %v357, 5
      %v360 = vor.u32 %v356, %v359
      %v361 = vrot.slane %v360, 4
      %v363 = vshll.u32 %v258, 16
      %v365 = vrot.slane %v363, 5
      %v366 = vsel %vm304, %v361, %v365
      %v367 = vshrl.u32 %v258, 16
      %v369 = vrot.slane %v367, 4
      %v370 = vor.u32 %v369, %v365
      %v371 = vrot.slane %v370, 4
      %v373 = vshll.u32 %v288, 16
      %v375 = vrot.slane %v373, 5
      %v376 = vsel %vm304, %v371, %v375
      %v378 = vshrl.u32 %v259, 16
      %v380 = vrot.slane %v378, 4
      %v381 = vshll.u32 %v259, 16
      %v383 = vrot.slane %v381, 5
      %v384 = vor.u32 %v380, %v383
      %v385 = vrot.slane %v384, 4
      %v387 = vshll.u32 %v260, 16
      %v389 = vrot.slane %v387, 5
      %v390 = vsel %vm304, %v385, %v389
      %v391 = vshrl.u32 %v260, 16
      %v393 = vrot.slane %v391, 4
      %v394 = vor.u32 %v393, %v389
      %v395 = vrot.slane %v394, 4
      %v397 = vshll.u32 %v289, 16
      %v399 = vrot.slane %v397, 5
      %v400 = vsel %vm304, %v395, %v399
      %v402 = vshrl.u32 %v261, 16
      %v404 = vrot.slane %v402, 4
      %v405 = vshll.u32 %v261, 16
      %v407 = vrot.slane %v405, 5
      %v408 = vor.u32 %v404, %v407
      %v409 = vrot.slane %v408, 4
      %v411 = vshll.u32 %v262, 16
      %v413 = vrot.slane %v411, 5
      %v414 = vsel %vm304, %v409, %v413
      %v415 = vshrl.u32 %v262, 16
      %v417 = vrot.slane %v415, 4
      %v418 = vor.u32 %v417, %v413
      %v419 = vrot.slane %v418, 4
      %v421 = vshll.u32 %v290, 16
      %v423 = vrot.slane %v421, 5
      %v424 = vsel %vm304, %v419, %v423
      %v426 = vshrl.u32 %v263, 16
      %v428 = vrot.slane %v426, 4
      %v429 = vshll.u32 %v263, 16
      %v431 = vrot.slane %v429, 5
      %v432 = vor.u32 %v428, %v431
      %v433 = vrot.slane %v432, 4
      %v435 = vshll.u32 %v264, 16
      %v437 = vrot.slane %v435, 5
      %v438 = vsel %vm304, %v433, %v437
      %v439 = vshrl.u32 %v264, 16
      %v441 = vrot.slane %v439, 4
      %v442 = vor.u32 %v441, %v437
      %v443 = vrot.slane %v442, 4
      %v445 = vshll.u32 %v291, 16
      %v447 = vrot.slane %v445, 5
      %v448 = vsel %vm304, %v443, %v447
      %v450 = vshrl.u32 %v265, 16
      %v452 = vrot.slane %v450, 4
      %v453 = vshll.u32 %v265, 16
      %v455 = vrot.slane %v453, 5
      %v456 = vor.u32 %v452, %v455
      %v457 = vrot.slane %v456, 4
      %v459 = vshll.u32 %v266, 16
      %v461 = vrot.slane %v459, 5
      %v462 = vsel %vm304, %v457, %v461
      %v463 = vshrl.u32 %v266, 16
      %v465 = vrot.slane %v463, 4
      %v466 = vor.u32 %v465, %v461
      %v467 = vrot.slane %v466, 4
      %v469 = vshll.u32 %v292, 16
      %v471 = vrot.slane %v469, 5
      %v472 = vsel %vm304, %v467, %v471
      %v474 = vshrl.u32 %v267, 16
      %v476 = vrot.slane %v474, 4
      %v477 = vshll.u32 %v267, 16
      %v479 = vrot.slane %v477, 5
      %v480 = vor.u32 %v476, %v479
      %v481 = vrot.slane %v480, 4
      %v483 = vshll.u32 %v268, 16
      %v485 = vrot.slane %v483, 5
      %v486 = vsel %vm304, %v481, %v485
      %v487 = vshrl.u32 %v268, 16
      %v489 = vrot.slane %v487, 4
      %v490 = vor.u32 %v489, %v485
      %v491 = vrot.slane %v490, 4
      %v493 = vshll.u32 %v293, 16
      %v495 = vrot.slane %v493, 5
      %v496 = vsel %vm304, %v491, %v495
      %v498 = vshrl.u32 %v269, 16
      %v500 = vrot.slane %v498, 4
      %v501 = vshll.u32 %v269, 16
      %v503 = vrot.slane %v501, 5
      %v504 = vor.u32 %v500, %v503
      %v505 = vrot.slane %v504, 4
      %v507 = vshll.u32 %v270, 16
      %v509 = vrot.slane %v507, 5
      %v510 = vsel %vm304, %v505, %v509
      %v511 = vshrl.u32 %v270, 16
      %v513 = vrot.slane %v511, 4
      %v514 = vor.u32 %v513, %v509
      %v515 = vrot.slane %v514, 4
      %v517 = vshll.u32 %v294, 16
      %v519 = vrot.slane %v517, 5
      %v520 = vsel %vm304, %v515, %v519
      %v522 = vshrl.u32 %v271, 16
      %v524 = vrot.slane %v522, 4
      %v525 = vshll.u32 %v271, 16
      %v527 = vrot.slane %v525, 5
      %v528 = vor.u32 %v524, %v527
      %v529 = vrot.slane %v528, 4
      %v531 = vshll.u32 %v272, 16
      %v533 = vrot.slane %v531, 5
      %v534 = vsel %vm304, %v529, %v533
      %v535 = vshrl.u32 %v272, 16
      %v537 = vrot.slane %v535, 4
      %v538 = vor.u32 %v537, %v533
      %v539 = vrot.slane %v538, 4
      %v541 = vshll.u32 %v295, 16
      %v543 = vrot.slane %v541, 5
      %v544 = vsel %vm304, %v539, %v543
      %v546 = vshrl.u32 %v273, 16
      %v548 = vrot.slane %v546, 4
      %v549 = vshll.u32 %v273, 16
      %v551 = vrot.slane %v549, 5
      %v552 = vor.u32 %v548, %v551
      %v553 = vrot.slane %v552, 4
      %v555 = vshll.u32 %v274, 16
      %v557 = vrot.slane %v555, 5
      %v558 = vsel %vm304, %v553, %v557
      %v559 = vshrl.u32 %v274, 16
      %v561 = vrot.slane %v559, 4
      %v562 = vor.u32 %v561, %v557
      %v563 = vrot.slane %v562, 4
      %v565 = vshll.u32 %v296, 16
      %v567 = vrot.slane %v565, 5
      %v568 = vsel %vm304, %v563, %v567
      %v570 = vshrl.u32 %v275, 16
      %v572 = vrot.slane %v570, 4
      %v573 = vshll.u32 %v275, 16
      %v575 = vrot.slane %v573, 5
      %v576 = vor.u32 %v572, %v575
      %v577 = vrot.slane %v576, 4
      %v579 = vshll.u32 %v276, 16
      %v581 = vrot.slane %v579, 5
      %v582 = vsel %vm304, %v577, %v581
      %v583 = vshrl.u32 %v276, 16
      %v585 = vrot.slane %v583, 4
      %v586 = vor.u32 %v585, %v581
      %v587 = vrot.slane %v586, 4
      %v589 = vshll.u32 %v297, 16
      %v591 = vrot.slane %v589, 5
      %v592 = vsel %vm304, %v587, %v591
      %v594 = vshrl.u32 %v277, 16
      %v596 = vrot.slane %v594, 4
      %v597 = vshll.u32 %v277, 16
      %v599 = vrot.slane %v597, 5
      %v600 = vor.u32 %v596, %v599
      %v601 = vrot.slane %v600, 4
      %v603 = vshll.u32 %v278, 16
      %v605 = vrot.slane %v603, 5
      %v606 = vsel %vm304, %v601, %v605
      %v607 = vshrl.u32 %v278, 16
      %v609 = vrot.slane %v607, 4
      %v610 = vor.u32 %v609, %v605
      %v611 = vrot.slane %v610, 4
      %v613 = vshll.u32 %v298, 16
      %v615 = vrot.slane %v613, 5
      %v616 = vsel %vm304, %v611, %v615
      %v618 = vshrl.u32 %v279, 16
      %v620 = vrot.slane %v618, 4
      %v621 = vshll.u32 %v279, 16
      %v623 = vrot.slane %v621, 5
      %v624 = vor.u32 %v620, %v623
      %v625 = vrot.slane %v624, 4
      %v627 = vshll.u32 %v280, 16
      %v629 = vrot.slane %v627, 5
      %v630 = vsel %vm304, %v625, %v629
      %v631 = vshrl.u32 %v280, 16
      %v633 = vrot.slane %v631, 4
      %v634 = vor.u32 %v633, %v629
      %v635 = vrot.slane %v634, 4
      %v637 = vshll.u32 %v299, 16
      %v639 = vrot.slane %v637, 5
      %v640 = vsel %vm304, %v635, %v639
      %v642 = vshrl.u32 %v281, 16
      %v644 = vrot.slane %v642, 4
      %v645 = vshll.u32 %v281, 16
      %v647 = vrot.slane %v645, 5
      %v648 = vor.u32 %v644, %v647
      %v649 = vrot.slane %v648, 4
      %v651 = vshll.u32 %v282, 16
      %v653 = vrot.slane %v651, 5
      %v654 = vsel %vm304, %v649, %v653
      %v655 = vshrl.u32 %v282, 16
      %v657 = vrot.slane %v655, 4
      %v658 = vor.u32 %v657, %v653
      %v659 = vrot.slane %v658, 4
      %v661 = vshll.u32 %v300, 16
      %v663 = vrot.slane %v661, 5
      %v664 = vsel %vm304, %v659, %v663
      %v666 = vshrl.u32 %v283, 16
      %v668 = vrot.slane %v666, 4
      %v669 = vshll.u32 %v283, 16
      %v671 = vrot.slane %v669, 5
      %v672 = vor.u32 %v668, %v671
      %v673 = vrot.slane %v672, 4
      %v675 = vshll.u32 %v284, 16
      %v677 = vrot.slane %v675, 5
      %v678 = vsel %vm304, %v673, %v677
      %v679 = vshrl.u32 %v284, 16
      %v681 = vrot.slane %v679, 4
      %v682 = vor.u32 %v681, %v677
      %v683 = vrot.slane %v682, 4
      %v685 = vshll.u32 %v301, 16
      %v687 = vrot.slane %v685, 5
      %v688 = vsel %vm304, %v683, %v687
      %s689 = scalar_lea.vmem %s237, 2
      %v690 = vld [vmem:[%s689] sm:$0x3]
      %v691 = vunpack.c.l.b16 %v318
      %v692 = vunpack.c.l.b16 %v328
      %v693 = vunpack.c.l.b16 %v342
      %v694 = vunpack.c.l.b16 %v352
      %v695 = vunpack.c.l.b16 %v366
      %v696 = vunpack.c.l.b16 %v376
      %v697 = vunpack.c.l.b16 %v390
      %v698 = vunpack.c.l.b16 %v400
      %v699 = vunpack.c.l.b16 %v414
      %v700 = vunpack.c.l.b16 %v424
      %v701 = vunpack.c.l.b16 %v438
      %v702 = vunpack.c.l.b16 %v448
      %v703 = vunpack.c.l.b16 %v462
      %v704 = vunpack.c.l.b16 %v472
      %v705 = vunpack.c.l.b16 %v486
      %v706 = vunpack.c.l.b16 %v496
      %v707 = vunpack.c.l.b16 %v510
      %v708 = vunpack.c.l.b16 %v520
      %v709 = vunpack.c.l.b16 %v534
      %v710 = vunpack.c.l.b16 %v544
      %v711 = vunpack.c.l.b16 %v558
      %v712 = vunpack.c.l.b16 %v568
      %v713 = vunpack.c.l.b16 %v582
      %v714 = vunpack.c.l.b16 %v592
      %v715 = vunpack.c.l.b16 %v606
      %v716 = vunpack.c.l.b16 %v616
      %v717 = vunpack.c.l.b16 %v630
      %v718 = vunpack.c.l.b16 %v640
      %v719 = vunpack.c.l.b16 %v654
      %v720 = vunpack.c.l.b16 %v664
      %v721 = vunpack.c.l.b16 %v678
      %v722 = vunpack.c.l.b16 %v688
      %v723 = vpack.c.b16 %v692, %v691
      %v724 = vpack.c.b16 %v694, %v693
      %v725 = vpack.c.b16 %v696, %v695
      %v726 = vpack.c.b16 %v698, %v697
      %v727 = vpack.c.b16 %v700, %v699
      %v728 = vpack.c.b16 %v702, %v701
      %v729 = vpack.c.b16 %v704, %v703
      %v730 = vpack.c.b16 %v706, %v705
      %v731 = vpack.c.b16 %v708, %v707
      %v732 = vpack.c.b16 %v710, %v709
      %v733 = vpack.c.b16 %v712, %v711
      %v734 = vpack.c.b16 %v714, %v713
      %v735 = vpack.c.b16 %v716, %v715
      %v736 = vpack.c.b16 %v718, %v717
      %v737 = vpack.c.b16 %v720, %v719
      %v738 = vpack.c.b16 %v722, %v721
      %vm739 = vcmask 31744
      %v741 = vsel %vm739, %v723, 0
      %v744 = vsel %vm739, %v724, 0
      %v747 = vsel %vm739, %v725, 0
      %v750 = vsel %vm739, %v726, 0
      %v753 = vsel %vm739, %v727, 0
      %v756 = vsel %vm739, %v728, 0
      %v759 = vsel %vm739, %v729, 0
      %v762 = vsel %vm739, %v730, 0
      %v765 = vsel %vm739, %v731, 0
      %v768 = vsel %vm739, %v732, 0
      %v771 = vsel %vm739, %v733, 0
      %v774 = vsel %vm739, %v734, 0
      %v777 = vsel %vm739, %v735, 0
      %v780 = vsel %vm739, %v736, 0
      %v783 = vsel %vm739, %v737, 0
      %v786 = vsel %vm739, %v738, 0
      %vm788 = vcmask 1041408
      %v790 = vsel %vm788, %v690, 0
      %792 = vmatprep.subr.bf16.mxu0 0
      %793 = vmatpush1.bf16.msra.mxu0 %v790
      %794 = vmatprep.subr.bf16.mxu0 0
      %795 = vmatpush1.bf16.msra.mxu0 0
      %796 = vmatprep.subr.bf16.mxu0 0
      %797 = vmatpush1.bf16.msra.mxu0 0
      %798 = vmatprep.subr.bf16.mxu0 0
      %799 = vmatpush1.bf16.msra.mxu0 0
      %800 = vmatprep.subr.bf16.mxu0 0
      %801 = vmatpush1.bf16.msra.mxu0 0
      %802 = vmatprep.subr.bf16.mxu0 0
      %803 = vmatpush1.bf16.msra.mxu0 0
      %804 = vmatprep.subr.bf16.mxu0 0
      %805 = vmatpush1.bf16.msra.mxu0 0
      %806 = vmatprep.subr.bf16.mxu0 0
      %807 = vmatpush1.bf16.msra.mxu0 0
      %808 = vmatprep.subr.bf16.mxu0 0
      %809 = vmatpush1.bf16.msra.mxu0 0
      %810 = vmatprep.subr.bf16.mxu0 0
      %811 = vmatpush1.bf16.msra.mxu0 0
      %812 = vmatprep.subr.bf16.mxu0 0
      %813 = vmatpush1.bf16.msra.mxu0 0
      %814 = vmatprep.subr.bf16.mxu0 0
      %815 = vmatpush1.bf16.msra.mxu0 0
      %816 = vmatprep.subr.bf16.mxu0 0
      %817 = vmatpush1.bf16.msra.mxu0 0
      %818 = vmatprep.subr.bf16.mxu0 0
      %819 = vmatpush1.bf16.msra.mxu0 0
      %820 = vmatprep.subr.bf16.mxu0 0
      %821 = vmatpush1.bf16.msra.mxu0 0
      %822 = vmatprep.subr.bf16.mxu0 0
      %823 = vmatpush1.bf16.msra.mxu0 0
      %824 = vmatprep.mubr.bf16.mxu0 0
      %825 = vmatmul.mubr.bf16.gmra.mrb[0].mxu0 %v741
      %v826 = vpop.f32.mrb[0].mxu0
      %v827 = vadd.f32 0.0, %v826
      %v828 = vpop.f32.mrb[0].mxu0
      %v829 = vpop.f32.mrb[0].mxu0
      %v830 = vadd.f32 0.0, %v829
      %v831 = vpop.f32.mrb[0].mxu0
      %832 = vmatprep.mubr.bf16.mxu0 0
      %833 = vmatmul.mubr.bf16.gmra.mrb[0].mxu0 %v744
      %v834 = vpop.f32.mrb[0].mxu0
      %v835 = vadd.f32 0.0, %v834
      %v836 = vpop.f32.mrb[0].mxu0
      %v837 = vpop.f32.mrb[0].mxu0
      %v838 = vadd.f32 0.0, %v837
      %v839 = vpop.f32.mrb[0].mxu0
      %840 = vmatprep.mubr.bf16.mxu0 0
      %841 = vmatmul.mubr.bf16.gmra.mrb[0].mxu0 %v747
      %v842 = vpop.f32.mrb[0].mxu0
      %v843 = vadd.f32 0.0, %v842
      %v844 = vpop.f32.mrb[0].mxu0
      %v845 = vpop.f32.mrb[0].mxu0
      %v846 = vadd.f32 0.0, %v845
      %v847 = vpop.f32.mrb[0].mxu0
      %848 = vmatprep.mubr.bf16.mxu0 0
      %849 = vmatmul.mubr.bf16.gmra.mrb[0].mxu0 %v750
      %v850 = vpop.f32.mrb[0].mxu0
      %v851 = vadd.f32 0.0, %v850
      %v852 = vpop.f32.mrb[0].mxu0
      %v853 = vpop.f32.mrb[0].mxu0
      %v854 = vadd.f32 0.0, %v853
      %v855 = vpop.f32.mrb[0].mxu0
      %856 = vmatprep.mubr.bf16.mxu0 0
      %857 = vmatmul.mubr.bf16.gmra.mrb[0].mxu0 %v753
      %v858 = vpop.f32.mrb[0].mxu0
      %v859 = vadd.f32 0.0, %v858
      %v860 = vpop.f32.mrb[0].mxu0
      %v861 = vpop.f32.mrb[0].mxu0
      %v862 = vadd.f32 0.0, %v861
      %v863 = vpop.f32.mrb[0].mxu0
      %864 = vmatprep.mubr.bf16.mxu0 0
      %865 = vmatmul.mubr.bf16.gmra.mrb[0].mxu0 %v756
      %v866 = vpop.f32.mrb[0].mxu0
      %v867 = vadd.f32 0.0, %v866
      %v868 = vpop.f32.mrb[0].mxu0
      %v869 = vpop.f32.mrb[0].mxu0
      %v870 = vadd.f32 0.0, %v869
      %v871 = vpop.f32.mrb[0].mxu0
      %872 = vmatprep.mubr.bf16.mxu0 0
      %873 = vmatmul.mubr.bf16.gmra.mrb[0].mxu0 %v759
      %v874 = vpop.f32.mrb[0].mxu0
      %v875 = vadd.f32 0.0, %v874
      %v876 = vpop.f32.mrb[0].mxu0
      %v877 = vpop.f32.mrb[0].mxu0
      %v878 = vadd.f32 0.0, %v877
      %v879 = vpop.f32.mrb[0].mxu0
      %880 = vmatprep.mubr.bf16.mxu0 0
      %881 = vmatmul.mubr.bf16.gmra.mrb[0].mxu0 %v762
      %v882 = vpop.f32.mrb[0].mxu0
      %v883 = vadd.f32 0.0, %v882
      %v884 = vpop.f32.mrb[0].mxu0
      %v885 = vpop.f32.mrb[0].mxu0
      %v886 = vadd.f32 0.0, %v885
      %v887 = vpop.f32.mrb[0].mxu0
      %888 = vmatprep.mubr.bf16.mxu0 0
      %889 = vmatmul.mubr.bf16.gmra.mrb[0].mxu0 %v765
      %v890 = vpop.f32.mrb[0].mxu0
      %v891 = vadd.f32 0.0, %v890
      %v892 = vpop.f32.mrb[0].mxu0
      %v893 = vpop.f32.mrb[0].mxu0
      %v894 = vadd.f32 0.0, %v893
      %v895 = vpop.f32.mrb[0].mxu0
      %896 = vmatprep.mubr.bf16.mxu0 0
      %897 = vmatmul.mubr.bf16.gmra.mrb[0].mxu0 %v768
      %v898 = vpop.f32.mrb[0].mxu0
      %v899 = vadd.f32 0.0, %v898
      %v900 = vpop.f32.mrb[0].mxu0
      %v901 = vpop.f32.mrb[0].mxu0
      %v902 = vadd.f32 0.0, %v901
      %v903 = vpop.f32.mrb[0].mxu0
      %904 = vmatprep.mubr.bf16.mxu0 0
      %905 = vmatmul.mubr.bf16.gmra.mrb[0].mxu0 %v771
      %v906 = vpop.f32.mrb[0].mxu0
      %v907 = vadd.f32 0.0, %v906
      %v908 = vpop.f32.mrb[0].mxu0
      %v909 = vpop.f32.mrb[0].mxu0
      %v910 = vadd.f32 0.0, %v909
      %v911 = vpop.f32.mrb[0].mxu0
      %912 = vmatprep.mubr.bf16.mxu0 0
      %913 = vmatmul.mubr.bf16.gmra.mrb[0].mxu0 %v774
      %v914 = vpop.f32.mrb[0].mxu0
      %v915 = vadd.f32 0.0, %v914
      %v916 = vpop.f32.mrb[0].mxu0
      %v917 = vpop.f32.mrb[0].mxu0
      %v918 = vadd.f32 0.0, %v917
      %v919 = vpop.f32.mrb[0].mxu0
      %920 = vmatprep.mubr.bf16.mxu0 0
      %921 = vmatmul.mubr.bf16.gmra.mrb[0].mxu0 %v777
      %v922 = vpop.f32.mrb[0].mxu0
      %v923 = vadd.f32 0.0, %v922
      %v924 = vpop.f32.mrb[0].mxu0
      %v925 = vpop.f32.mrb[0].mxu0
      %v926 = vadd.f32 0.0, %v925
      %v927 = vpop.f32.mrb[0].mxu0
      %928 = vmatprep.mubr.bf16.mxu0 0
      %929 = vmatmul.mubr.bf16.gmra.mrb[0].mxu0 %v780
      %v930 = vpop.f32.mrb[0].mxu0
      %v931 = vadd.f32 0.0, %v930
      %v932 = vpop.f32.mrb[0].mxu0
      %v933 = vpop.f32.mrb[0].mxu0
      %v934 = vadd.f32 0.0, %v933
      %v935 = vpop.f32.mrb[0].mxu0
      %936 = vmatprep.mubr.bf16.mxu0 0
      %937 = vmatmul.mubr.bf16.gmra.mrb[0].mxu0 %v783
      %v938 = vpop.f32.mrb[0].mxu0
      %v939 = vadd.f32 0.0, %v938
      %v940 = vpop.f32.mrb[0].mxu0
      %v941 = vpop.f32.mrb[0].mxu0
      %v942 = vadd.f32 0.0, %v941
      %v943 = vpop.f32.mrb[0].mxu0
      %944 = vmatprep.mubr.bf16.mxu0 0
      %945 = vmatmul.mubr.bf16.gmra.mrb[0].mxu0 %v786
      %v946 = vpop.f32.mrb[0].mxu0
      %v947 = vadd.f32 0.0, %v946
      %v948 = vpop.f32.mrb[0].mxu0
      %v949 = vpop.f32.mrb[0].mxu0
      %v950 = vadd.f32 0.0, %v949
      %v951 = vpop.f32.mrb[0].mxu0
      %952 = vdwg.mxu0
      %v985 = vunpack.c.l.b16 %v253
      %v986 = vunpack.c.l.b16 %v254
      %v987 = vunpack.c.l.b16 %v255
      %v988 = vunpack.c.l.b16 %v256
      %v989 = vunpack.c.l.b16 %v257
      %v990 = vunpack.c.l.b16 %v258
      %v991 = vunpack.c.l.b16 %v259
      %v992 = vunpack.c.l.b16 %v260
      %v993 = vunpack.c.l.b16 %v261
      %v994 = vunpack.c.l.b16 %v262
      %v995 = vunpack.c.l.b16 %v263
      %v996 = vunpack.c.l.b16 %v264
      %v997 = vunpack.c.l.b16 %v265
      %v998 = vunpack.c.l.b16 %v266
      %v999 = vunpack.c.l.b16 %v267
      %v1000 = vunpack.c.l.b16 %v268
      %v1001 = vunpack.c.l.b16 %v269
      %v1002 = vunpack.c.l.b16 %v270
      %v1003 = vunpack.c.l.b16 %v271
      %v1004 = vunpack.c.l.b16 %v272
      %v1005 = vunpack.c.l.b16 %v273
      %v1006 = vunpack.c.l.b16 %v274
      %v1007 = vunpack.c.l.b16 %v275
      %v1008 = vunpack.c.l.b16 %v276
      %v1009 = vunpack.c.l.b16 %v277
      %v1010 = vunpack.c.l.b16 %v278
      %v1011 = vunpack.c.l.b16 %v279
      %v1012 = vunpack.c.l.b16 %v280
      %v1013 = vunpack.c.l.b16 %v281
      %v1014 = vunpack.c.l.b16 %v282
      %v1015 = vunpack.c.l.b16 %v283
      %v1016 = vunpack.c.l.b16 %v284
      %v1017 = vpack.c.b16 %v986, %v985
      %v1018 = vpack.c.b16 %v988, %v987
      %v1019 = vpack.c.b16 %v990, %v989
      %v1020 = vpack.c.b16 %v992, %v991
      %v1021 = vpack.c.b16 %v994, %v993
      %v1022 = vpack.c.b16 %v996, %v995
      %v1023 = vpack.c.b16 %v998, %v997
      %v1024 = vpack.c.b16 %v1000, %v999
      %v1025 = vpack.c.b16 %v1002, %v1001
      %v1026 = vpack.c.b16 %v1004, %v1003
      %v1027 = vpack.c.b16 %v1006, %v1005
      %v1028 = vpack.c.b16 %v1008, %v1007
      %v1029 = vpack.c.b16 %v1010, %v1009
      %v1030 = vpack.c.b16 %v1012, %v1011
      %v1031 = vpack.c.b16 %v1014, %v1013
      %v1032 = vpack.c.b16 %v1016, %v1015
      %v1034 = vsel %vm739, %v1017, 0
      %v1037 = vsel %vm739, %v1018, 0
      %v1040 = vsel %vm739, %v1019, 0
      %v1043 = vsel %vm739, %v1020, 0
      %v1046 = vsel %vm739, %v1021, 0
      %v1049 = vsel %vm739, %v1022, 0
      %v1052 = vsel %vm739, %v1023, 0
      %v1055 = vsel %vm739, %v1024, 0
      %v1058 = vsel %vm739, %v1025, 0
      %v1061 = vsel %vm739, %v1026, 0
      %v1064 = vsel %vm739, %v1027, 0
      %v1067 = vsel %vm739, %v1028, 0
      %v1070 = vsel %vm739, %v1029, 0
      %v1073 = vsel %vm739, %v1030, 0
      %v1076 = vsel %vm739, %v1031, 0
      %v1079 = vsel %vm739, %v1032, 0
      %v1082 = vsel %vm788, %v285, 0
      %1084 = vmatprep.subr.bf16.mxu0 0
      %1085 = vmatpush1.bf16.msra.mxu0 %v1082
      %1086 = vmatprep.subr.bf16.mxu0 0
      %1087 = vmatpush1.bf16.msra.mxu0 0
      %1088 = vmatprep.subr.bf16.mxu0 0
      %1089 = vmatpush1.bf16.msra.mxu0 0
      %1090 = vmatprep.subr.bf16.mxu0 0
      %1091 = vmatpush1.bf16.msra.mxu0 0
      %1092 = vmatprep.subr.bf16.mxu0 0
      %1093 = vmatpush1.bf16.msra.mxu0 0
      %1094 = vmatprep.subr.bf16.mxu0 0
      %1095 = vmatpush1.bf16.msra.mxu0 0
      %1096 = vmatprep.subr.bf16.mxu0 0
      %1097 = vmatpush1.bf16.msra.mxu0 0
      %1098 = vmatprep.subr.bf16.mxu0 0
      %1099 = vmatpush1.bf16.msra.mxu0 0
      %1100 = vmatprep.subr.bf16.mxu0 0
      %1101 = vmatpush1.bf16.msra.mxu0 0
      %1102 = vmatprep.subr.bf16.mxu0 0
      %1103 = vmatpush1.bf16.msra.mxu0 0
      %1104 = vmatprep.subr.bf16.mxu0 0
      %1105 = vmatpush1.bf16.msra.mxu0 0
      %1106 = vmatprep.subr.bf16.mxu0 0
      %1107 = vmatpush1.bf16.msra.mxu0 0
      %1108 = vmatprep.subr.bf16.mxu0 0
      %1109 = vmatpush1.bf16.msra.mxu0 0
      %1110 = vmatprep.subr.bf16.mxu0 0
      %1111 = vmatpush1.bf16.msra.mxu0 0
      %1112 = vmatprep.subr.bf16.mxu0 0
      %1113 = vmatpush1.bf16.msra.mxu0 0
      %1114 = vmatprep.subr.bf16.mxu0 0
      %1115 = vmatpush1.bf16.msra.mxu0 0
      %1116 = vmatprep.mubr.bf16.mxu0 0
      %1117 = vmatmul.mubr.bf16.gmra.mrb[0].mxu0 %v1034
      %v1118 = vpop.f32.mrb[0].mxu0
      %v1119 = vadd.f32 %v827, %v1118
      %v1120 = vpop.f32.mrb[0].mxu0
      %v1121 = vpop.f32.mrb[0].mxu0
      %v1122 = vadd.f32 %v830, %v1121
      %v1123 = vpop.f32.mrb[0].mxu0
      %1124 = vmatprep.mubr.bf16.mxu0 0
      %1125 = vmatmul.mubr.bf16.gmra.mrb[0].mxu0 %v1037
      %v1126 = vpop.f32.mrb[0].mxu0
      %v1127 = vadd.f32 %v835, %v1126
      %v1128 = vpop.f32.mrb[0].mxu0
      %v1129 = vpop.f32.mrb[0].mxu0
      %v1130 = vadd.f32 %v838, %v1129
      %v1131 = vpop.f32.mrb[0].mxu0
      %1132 = vmatprep.mubr.bf16.mxu0 0
      %1133 = vmatmul.mubr.bf16.gmra.mrb[0].mxu0 %v1040
      %v1134 = vpop.f32.mrb[0].mxu0
      %v1135 = vadd.f32 %v843, %v1134
      %v1136 = vpop.f32.mrb[0].mxu0
      %v1137 = vpop.f32.mrb[0].mxu0
      %v1138 = vadd.f32 %v846, %v1137
      %v1139 = vpop.f32.mrb[0].mxu0
      %1140 = vmatprep.mubr.bf16.mxu0 0
      %1141 = vmatmul.mubr.bf16.gmra.mrb[0].mxu0 %v1043
      %v1142 = vpop.f32.mrb[0].mxu0
      %v1143 = vadd.f32 %v851, %v1142
      %v1144 = vpop.f32.mrb[0].mxu0
      %v1145 = vpop.f32.mrb[0].mxu0
      %v1146 = vadd.f32 %v854, %v1145
      %v1147 = vpop.f32.mrb[0].mxu0
      %1148 = vmatprep.mubr.bf16.mxu0 0
      %1149 = vmatmul.mubr.bf16.gmra.mrb[0].mxu0 %v1046
      %v1150 = vpop.f32.mrb[0].mxu0
      %v1151 = vadd.f32 %v859, %v1150
      %v1152 = vpop.f32.mrb[0].mxu0
      %v1153 = vpop.f32.mrb[0].mxu0
      %v1154 = vadd.f32 %v862, %v1153
      %v1155 = vpop.f32.mrb[0].mxu0
      %1156 = vmatprep.mubr.bf16.mxu0 0
      %1157 = vmatmul.mubr.bf16.gmra.mrb[0].mxu0 %v1049
      %v1158 = vpop.f32.mrb[0].mxu0
      %v1159 = vadd.f32 %v867, %v1158
      %v1160 = vpop.f32.mrb[0].mxu0
      %v1161 = vpop.f32.mrb[0].mxu0
      %v1162 = vadd.f32 %v870, %v1161
      %v1163 = vpop.f32.mrb[0].mxu0
      %1164 = vmatprep.mubr.bf16.mxu0 0
      %1165 = vmatmul.mubr.bf16.gmra.mrb[0].mxu0 %v1052
      %v1166 = vpop.f32.mrb[0].mxu0
      %v1167 = vadd.f32 %v875, %v1166
      %v1168 = vpop.f32.mrb[0].mxu0
      %v1169 = vpop.f32.mrb[0].mxu0
      %v1170 = vadd.f32 %v878, %v1169
      %v1171 = vpop.f32.mrb[0].mxu0
      %1172 = vmatprep.mubr.bf16.mxu0 0
      %1173 = vmatmul.mubr.bf16.gmra.mrb[0].mxu0 %v1055
      %v1174 = vpop.f32.mrb[0].mxu0
      %v1175 = vadd.f32 %v883, %v1174
      %v1176 = vpop.f32.mrb[0].mxu0
      %v1177 = vpop.f32.mrb[0].mxu0
      %v1178 = vadd.f32 %v886, %v1177
      %v1179 = vpop.f32.mrb[0].mxu0
      %1180 = vmatprep.mubr.bf16.mxu0 0
      %1181 = vmatmul.mubr.bf16.gmra.mrb[0].mxu0 %v1058
      %v1182 = vpop.f32.mrb[0].mxu0
      %v1183 = vadd.f32 %v891, %v1182
      %v1184 = vpop.f32.mrb[0].mxu0
      %v1185 = vpop.f32.mrb[0].mxu0
      %v1186 = vadd.f32 %v894, %v1185
      %v1187 = vpop.f32.mrb[0].mxu0
      %1188 = vmatprep.mubr.bf16.mxu0 0
      %1189 = vmatmul.mubr.bf16.gmra.mrb[0].mxu0 %v1061
      %v1190 = vpop.f32.mrb[0].mxu0
      %v1191 = vadd.f32 %v899, %v1190
      %v1192 = vpop.f32.mrb[0].mxu0
      %v1193 = vpop.f32.mrb[0].mxu0
      %v1194 = vadd.f32 %v902, %v1193
      %v1195 = vpop.f32.mrb[0].mxu0
      %1196 = vmatprep.mubr.bf16.mxu0 0
      %1197 = vmatmul.mubr.bf16.gmra.mrb[0].mxu0 %v1064
      %v1198 = vpop.f32.mrb[0].mxu0
      %v1199 = vadd.f32 %v907, %v1198
      %v1200 = vpop.f32.mrb[0].mxu0
      %v1201 = vpop.f32.mrb[0].mxu0
      %v1202 = vadd.f32 %v910, %v1201
      %v1203 = vpop.f32.mrb[0].mxu0
      %1204 = vmatprep.mubr.bf16.mxu0 0
      %1205 = vmatmul.mubr.bf16.gmra.mrb[0].mxu0 %v1067
      %v1206 = vpop.f32.mrb[0].mxu0
      %v1207 = vadd.f32 %v915, %v1206
      %v1208 = vpop.f32.mrb[0].mxu0
      %v1209 = vpop.f32.mrb[0].mxu0
      %v1210 = vadd.f32 %v918, %v1209
      %v1211 = vpop.f32.mrb[0].mxu0
      %1212 = vmatprep.mubr.bf16.mxu0 0
      %1213 = vmatmul.mubr.bf16.gmra.mrb[0].mxu0 %v1070
      %v1214 = vpop.f32.mrb[0].mxu0
      %v1215 = vadd.f32 %v923, %v1214
      %v1216 = vpop.f32.mrb[0].mxu0
      %v1217 = vpop.f32.mrb[0].mxu0
      %v1218 = vadd.f32 %v926, %v1217
      %v1219 = vpop.f32.mrb[0].mxu0
      %1220 = vmatprep.mubr.bf16.mxu0 0
      %1221 = vmatmul.mubr.bf16.gmra.mrb[0].mxu0 %v1073
      %v1222 = vpop.f32.mrb[0].mxu0
      %v1223 = vadd.f32 %v931, %v1222
      %v1224 = vpop.f32.mrb[0].mxu0
      %v1225 = vpop.f32.mrb[0].mxu0
      %v1226 = vadd.f32 %v934, %v1225
      %v1227 = vpop.f32.mrb[0].mxu0
      %1228 = vmatprep.mubr.bf16.mxu0 0
      %1229 = vmatmul.mubr.bf16.gmra.mrb[0].mxu0 %v1076
      %v1230 = vpop.f32.mrb[0].mxu0
      %v1231 = vadd.f32 %v939, %v1230
      %v1232 = vpop.f32.mrb[0].mxu0
      %v1233 = vpop.f32.mrb[0].mxu0
      %v1234 = vadd.f32 %v942, %v1233
      %v1235 = vpop.f32.mrb[0].mxu0
      %1236 = vmatprep.mubr.bf16.mxu0 0
      %1237 = vmatmul.mubr.bf16.gmra.mrb[0].mxu0 %v1079
      %v1238 = vpop.f32.mrb[0].mxu0
      %v1239 = vadd.f32 %v947, %v1238
      %v1240 = vpop.f32.mrb[0].mxu0
      %v1241 = vpop.f32.mrb[0].mxu0
      %v1242 = vadd.f32 %v950, %v1241
      %v1243 = vpop.f32.mrb[0].mxu0
      %1244 = vdwg.mxu0
      %v1245 = vld [vmem:[%s233] sm:$0xe]
      %v1246 = vld [vmem:[%s233 + $0xc] sm:$0xe]
      %v1247 = vld [vmem:[%s233 + $0x18] sm:$0xe]
      %v1248 = vld [vmem:[%s233 + $0x24] sm:$0xe]
      %v1249 = vld [vmem:[%s233 + $0x30] sm:$0xe]
      %v1250 = vld [vmem:[%s233 + $0x3c] sm:$0xe]
      %v1251 = vld [vmem:[%s233 + $0x48] sm:$0xe]
      %v1252 = vld [vmem:[%s233 + $0x54] sm:$0xe]
      %v1253 = vld [vmem:[%s233 + $0x60] sm:$0xe]
      %v1254 = vld [vmem:[%s233 + $0x6c] sm:$0xe]
      %v1255 = vld [vmem:[%s233 + $0x78] sm:$0xe]
      %v1256 = vld [vmem:[%s233 + $0x84] sm:$0xe]
      %v1257 = vld [vmem:[%s233 + $0x90] sm:$0xe]
      %v1258 = vld [vmem:[%s233 + $0x9c] sm:$0xe]
      %v1259 = vld [vmem:[%s233 + $0xa8] sm:$0xe]
      %v1260 = vld [vmem:[%s233 + $0xb4] sm:$0xe]
      %vm1293 = vcmask 1042432
      %vm1294 = vcmask 1046532
      %vm1295 = vmor %vm1293, %vm1294
      %v1296 = vrot.slane %v1245, 5
      %v1297 = vrot.slane %v1296, 4
      %v1298 = vrot.slane %v254, 5
      %v1299 = vsel %vm1295, %v1297, %v1298
      %v1300 = vrot.slane %v1298, 4
      %v1301 = vrot.slane %v286, 5
      %v1302 = vsel %vm1295, %v1300, %v1301
      %v1303 = vrot.slane %v1246, 5
      %v1304 = vrot.slane %v1303, 4
      %v1305 = vrot.slane %v256, 5
      %v1306 = vsel %vm1295, %v1304, %v1305
      %v1307 = vrot.slane %v1305, 4
      %v1308 = vrot.slane %v287, 5
      %v1309 = vsel %vm1295, %v1307, %v1308
      %v1310 = vrot.slane %v1247, 5
      %v1311 = vrot.slane %v1310, 4
      %v1312 = vrot.slane %v258, 5
      %v1313 = vsel %vm1295, %v1311, %v1312
      %v1314 = vrot.slane %v1312, 4
      %v1315 = vrot.slane %v288, 5
      %v1316 = vsel %vm1295, %v1314, %v1315
      %v1317 = vrot.slane %v1248, 5
      %v1318 = vrot.slane %v1317, 4
      %v1319 = vrot.slane %v260, 5
      %v1320 = vsel %vm1295, %v1318, %v1319
      %v1321 = vrot.slane %v1319, 4
      %v1322 = vrot.slane %v289, 5
      %v1323 = vsel %vm1295, %v1321, %v1322
      %v1324 = vrot.slane %v1249, 5
      %v1325 = vrot.slane %v1324, 4
      %v1326 = vrot.slane %v262, 5
      %v1327 = vsel %vm1295, %v1325, %v1326
      %v1328 = vrot.slane %v1326, 4
      %v1329 = vrot.slane %v290, 5
      %v1330 = vsel %vm1295, %v1328, %v1329
      %v1331 = vrot.slane %v1250, 5
      %v1332 = vrot.slane %v1331, 4
      %v1333 = vrot.slane %v264, 5
      %v1334 = vsel %vm1295, %v1332, %v1333
      %v1335 = vrot.slane %v1333, 4
      %v1336 = vrot.slane %v291, 5
      %v1337 = vsel %vm1295, %v1335, %v1336
      %v1338 = vrot.slane %v1251, 5
      %v1339 = vrot.slane %v1338, 4
      %v1340 = vrot.slane %v266, 5
      %v1341 = vsel %vm1295, %v1339, %v1340
      %v1342 = vrot.slane %v1340, 4
      %v1343 = vrot.slane %v292, 5
      %v1344 = vsel %vm1295, %v1342, %v1343
      %v1345 = vrot.slane %v1252, 5
      %v1346 = vrot.slane %v1345, 4
      %v1347 = vrot.slane %v268, 5
      %v1348 = vsel %vm1295, %v1346, %v1347
      %v1349 = vrot.slane %v1347, 4
      %v1350 = vrot.slane %v293, 5
      %v1351 = vsel %vm1295, %v1349, %v1350
      %v1352 = vrot.slane %v1253, 5
      %v1353 = vrot.slane %v1352, 4
      %v1354 = vrot.slane %v270, 5
      %v1355 = vsel %vm1295, %v1353, %v1354
      %v1356 = vrot.slane %v1354, 4
      %v1357 = vrot.slane %v294, 5
      %v1358 = vsel %vm1295, %v1356, %v1357
      %v1359 = vrot.slane %v1254, 5
      %v1360 = vrot.slane %v1359, 4
      %v1361 = vrot.slane %v272, 5
      %v1362 = vsel %vm1295, %v1360, %v1361
      %v1363 = vrot.slane %v1361, 4
      %v1364 = vrot.slane %v295, 5
      %v1365 = vsel %vm1295, %v1363, %v1364
      %v1366 = vrot.slane %v1255, 5
      %v1367 = vrot.slane %v1366, 4
      %v1368 = vrot.slane %v274, 5
      %v1369 = vsel %vm1295, %v1367, %v1368
      %v1370 = vrot.slane %v1368, 4
      %v1371 = vrot.slane %v296, 5
      %v1372 = vsel %vm1295, %v1370, %v1371
      %v1373 = vrot.slane %v1256, 5
      %v1374 = vrot.slane %v1373, 4
      %v1375 = vrot.slane %v276, 5
      %v1376 = vsel %vm1295, %v1374, %v1375
      %v1377 = vrot.slane %v1375, 4
      %v1378 = vrot.slane %v297, 5
      %v1379 = vsel %vm1295, %v1377, %v1378
      %v1380 = vrot.slane %v1257, 5
      %v1381 = vrot.slane %v1380, 4
      %v1382 = vrot.slane %v278, 5
      %v1383 = vsel %vm1295, %v1381, %v1382
      %v1384 = vrot.slane %v1382, 4
      %v1385 = vrot.slane %v298, 5
      %v1386 = vsel %vm1295, %v1384, %v1385
      %v1387 = vrot.slane %v1258, 5
      %v1388 = vrot.slane %v1387, 4
      %v1389 = vrot.slane %v280, 5
      %v1390 = vsel %vm1295, %v1388, %v1389
      %v1391 = vrot.slane %v1389, 4
      %v1392 = vrot.slane %v299, 5
      %v1393 = vsel %vm1295, %v1391, %v1392
      %v1394 = vrot.slane %v1259, 5
      %v1395 = vrot.slane %v1394, 4
      %v1396 = vrot.slane %v282, 5
      %v1397 = vsel %vm1295, %v1395, %v1396
      %v1398 = vrot.slane %v1396, 4
      %v1399 = vrot.slane %v300, 5
      %v1400 = vsel %vm1295, %v1398, %v1399
      %v1401 = vrot.slane %v1260, 5
      %v1402 = vrot.slane %v1401, 4
      %v1403 = vrot.slane %v284, 5
      %v1404 = vsel %vm1295, %v1402, %v1403
      %v1405 = vrot.slane %v1403, 4
      %v1406 = vrot.slane %v301, 5
      %v1407 = vsel %vm1295, %v1405, %v1406
      %s1408 = scalar_lea.vmem %s237, 4
      %v1409 = vld [vmem:[%s1408] sm:$0x3]
      %v1410 = vunpack.c.l.b16 %v1299
      %v1411 = vunpack.c.l.b16 %v1302
      %v1412 = vunpack.c.l.b16 %v1306
      %v1413 = vunpack.c.l.b16 %v1309
      %v1414 = vunpack.c.l.b16 %v1313
      %v1415 = vunpack.c.l.b16 %v1316
      %v1416 = vunpack.c.l.b16 %v1320
      %v1417 = vunpack.c.l.b16 %v1323
      %v1418 = vunpack.c.l.b16 %v1327
      %v1419 = vunpack.c.l.b16 %v1330
      %v1420 = vunpack.c.l.b16 %v1334
      %v1421 = vunpack.c.l.b16 %v1337
      %v1422 = vunpack.c.l.b16 %v1341
      %v1423 = vunpack.c.l.b16 %v1344
      %v1424 = vunpack.c.l.b16 %v1348
      %v1425 = vunpack.c.l.b16 %v1351
      %v1426 = vunpack.c.l.b16 %v1355
      %v1427 = vunpack.c.l.b16 %v1358
      %v1428 = vunpack.c.l.b16 %v1362
      %v1429 = vunpack.c.l.b16 %v1365
      %v1430 = vunpack.c.l.b16 %v1369
      %v1431 = vunpack.c.l.b16 %v1372
      %v1432 = vunpack.c.l.b16 %v1376
      %v1433 = vunpack.c.l.b16 %v1379
      %v1434 = vunpack.c.l.b16 %v1383
      %v1435 = vunpack.c.l.b16 %v1386
      %v1436 = vunpack.c.l.b16 %v1390
      %v1437 = vunpack.c.l.b16 %v1393
      %v1438 = vunpack.c.l.b16 %v1397
      %v1439 = vunpack.c.l.b16 %v1400
      %v1440 = vunpack.c.l.b16 %v1404
      %v1441 = vunpack.c.l.b16 %v1407
      %v1442 = vpack.c.b16 %v1411, %v1410
      %v1443 = vpack.c.b16 %v1413, %v1412
      %v1444 = vpack.c.b16 %v1415, %v1414
      %v1445 = vpack.c.b16 %v1417, %v1416
      %v1446 = vpack.c.b16 %v1419, %v1418
      %v1447 = vpack.c.b16 %v1421, %v1420
      %v1448 = vpack.c.b16 %v1423, %v1422
      %v1449 = vpack.c.b16 %v1425, %v1424
      %v1450 = vpack.c.b16 %v1427, %v1426
      %v1451 = vpack.c.b16 %v1429, %v1428
      %v1452 = vpack.c.b16 %v1431, %v1430
      %v1453 = vpack.c.b16 %v1433, %v1432
      %v1454 = vpack.c.b16 %v1435, %v1434
      %v1455 = vpack.c.b16 %v1437, %v1436
      %v1456 = vpack.c.b16 %v1439, %v1438
      %v1457 = vpack.c.b16 %v1441, %v1440
      %v1459 = vsel %vm739, %v1442, 0
      %v1462 = vsel %vm739, %v1443, 0
      %v1465 = vsel %vm739, %v1444, 0
      %v1468 = vsel %vm739, %v1445, 0
      %v1471 = vsel %vm739, %v1446, 0
      %v1474 = vsel %vm739, %v1447, 0
      %v1477 = vsel %vm739, %v1448, 0
      %v1480 = vsel %vm739, %v1449, 0
      %v1483 = vsel %vm739, %v1450, 0
      %v1486 = vsel %vm739, %v1451, 0
      %v1489 = vsel %vm739, %v1452, 0
      %v1492 = vsel %vm739, %v1453, 0
      %v1495 = vsel %vm739, %v1454, 0
      %v1498 = vsel %vm739, %v1455, 0
      %v1501 = vsel %vm739, %v1456, 0
      %v1504 = vsel %vm739, %v1457, 0
      %v1507 = vsel %vm788, %v1409, 0
      %1509 = vmatprep.subr.bf16.mxu0 0
      %1510 = vmatpush1.bf16.msra.mxu0 %v1507
      %1511 = vmatprep.subr.bf16.mxu0 0
      %1512 = vmatpush1.bf16.msra.mxu0 0
      %1513 = vmatprep.subr.bf16.mxu0 0
      %1514 = vmatpush1.bf16.msra.mxu0 0
      %1515 = vmatprep.subr.bf16.mxu0 0
      %1516 = vmatpush1.bf16.msra.mxu0 0
      %1517 = vmatprep.subr.bf16.mxu0 0
      %1518 = vmatpush1.bf16.msra.mxu0 0
      %1519 = vmatprep.subr.bf16.mxu0 0
      %1520 = vmatpush1.bf16.msra.mxu0 0
      %1521 = vmatprep.subr.bf16.mxu0 0
      %1522 = vmatpush1.bf16.msra.mxu0 0
      %1523 = vmatprep.subr.bf16.mxu0 0
      %1524 = vmatpush1.bf16.msra.mxu0 0
      %1525 = vmatprep.subr.bf16.mxu0 0
      %1526 = vmatpush1.bf16.msra.mxu0 0
      %1527 = vmatprep.subr.bf16.mxu0 0
      %1528 = vmatpush1.bf16.msra.mxu0 0
      %1529 = vmatprep.subr.bf16.mxu0 0
      %1530 = vmatpush1.bf16.msra.mxu0 0
      %1531 = vmatprep.subr.bf16.mxu0 0
      %1532 = vmatpush1.bf16.msra.mxu0 0
      %1533 = vmatprep.subr.bf16.mxu0 0
      %1534 = vmatpush1.bf16.msra.mxu0 0
      %1535 = vmatprep.subr.bf16.mxu0 0
      %1536 = vmatpush1.bf16.msra.mxu0 0
      %1537 = vmatprep.subr.bf16.mxu0 0
      %1538 = vmatpush1.bf16.msra.mxu0 0
      %1539 = vmatprep.subr.bf16.mxu0 0
      %1540 = vmatpush1.bf16.msra.mxu0 0
      %1541 = vmatprep.mubr.bf16.mxu0 0
      %1542 = vmatmul.mubr.bf16.gmra.mrb[0].mxu0 %v1459
      %v1543 = vpop.f32.mrb[0].mxu0
      %v1544 = vadd.f32 0.0, %v1543
      %v1545 = vpop.f32.mrb[0].mxu0
      %v1546 = vpop.f32.mrb[0].mxu0
      %v1547 = vadd.f32 0.0, %v1546
      %v1548 = vpop.f32.mrb[0].mxu0
      %1549 = vmatprep.mubr.bf16.mxu0 0
      %1550 = vmatmul.mubr.bf16.gmra.mrb[0].mxu0 %v1462
      %v1551 = vpop.f32.mrb[0].mxu0
      %v1552 = vadd.f32 0.0, %v1551
      %v1553 = vpop.f32.mrb[0].mxu0
      %v1554 = vpop.f32.mrb[0].mxu0
      %v1555 = vadd.f32 0.0, %v1554
      %v1556 = vpop.f32.mrb[0].mxu0
      %1557 = vmatprep.mubr.bf16.mxu0 0
      %1558 = vmatmul.mubr.bf16.gmra.mrb[0].mxu0 %v1465
      %v1559 = vpop.f32.mrb[0].mxu0
      %v1560 = vadd.f32 0.0, %v1559
      %v1561 = vpop.f32.mrb[0].mxu0
      %v1562 = vpop.f32.mrb[0].mxu0
      %v1563 = vadd.f32 0.0, %v1562
      %v1564 = vpop.f32.mrb[0].mxu0
      %1565 = vmatprep.mubr.bf16.mxu0 0
      %1566 = vmatmul.mubr.bf16.gmra.mrb[0].mxu0 %v1468
      %v1567 = vpop.f32.mrb[0].mxu0
      %v1568 = vadd.f32 0.0, %v1567
      %v1569 = vpop.f32.mrb[0].mxu0
      %v1570 = vpop.f32.mrb[0].mxu0
      %v1571 = vadd.f32 0.0, %v1570
      %v1572 = vpop.f32.mrb[0].mxu0
      %1573 = vmatprep.mubr.bf16.mxu0 0
      %1574 = vmatmul.mubr.bf16.gmra.mrb[0].mxu0 %v1471
      %v1575 = vpop.f32.mrb[0].mxu0
      %v1576 = vadd.f32 0.0, %v1575
      %v1577 = vpop.f32.mrb[0].mxu0
      %v1578 = vpop.f32.mrb[0].mxu0
      %v1579 = vadd.f32 0.0, %v1578
      %v1580 = vpop.f32.mrb[0].mxu0
      %1581 = vmatprep.mubr.bf16.mxu0 0
      %1582 = vmatmul.mubr.bf16.gmra.mrb[0].mxu0 %v1474
      %v1583 = vpop.f32.mrb[0].mxu0
      %v1584 = vadd.f32 0.0, %v1583
      %v1585 = vpop.f32.mrb[0].mxu0
      %v1586 = vpop.f32.mrb[0].mxu0
      %v1587 = vadd.f32 0.0, %v1586
      %v1588 = vpop.f32.mrb[0].mxu0
      %1589 = vmatprep.mubr.bf16.mxu0 0
      %1590 = vmatmul.mubr.bf16.gmra.mrb[0].mxu0 %v1477
      %v1591 = vpop.f32.mrb[0].mxu0
      %v1592 = vadd.f32 0.0, %v1591
      %v1593 = vpop.f32.mrb[0].mxu0
      %v1594 = vpop.f32.mrb[0].mxu0
      %v1595 = vadd.f32 0.0, %v1594
      %v1596 = vpop.f32.mrb[0].mxu0
      %1597 = vmatprep.mubr.bf16.mxu0 0
      %1598 = vmatmul.mubr.bf16.gmra.mrb[0].mxu0 %v1480
      %v1599 = vpop.f32.mrb[0].mxu0
      %v1600 = vadd.f32 0.0, %v1599
      %v1601 = vpop.f32.mrb[0].mxu0
      %v1602 = vpop.f32.mrb[0].mxu0
      %v1603 = vadd.f32 0.0, %v1602
      %v1604 = vpop.f32.mrb[0].mxu0
      %1605 = vmatprep.mubr.bf16.mxu0 0
      %1606 = vmatmul.mubr.bf16.gmra.mrb[0].mxu0 %v1483
      %v1607 = vpop.f32.mrb[0].mxu0
      %v1608 = vadd.f32 0.0, %v1607
      %v1609 = vpop.f32.mrb[0].mxu0
      %v1610 = vpop.f32.mrb[0].mxu0
      %v1611 = vadd.f32 0.0, %v1610
      %v1612 = vpop.f32.mrb[0].mxu0
      %1613 = vmatprep.mubr.bf16.mxu0 0
      %1614 = vmatmul.mubr.bf16.gmra.mrb[0].mxu0 %v1486
      %v1615 = vpop.f32.mrb[0].mxu0
      %v1616 = vadd.f32 0.0, %v1615
      %v1617 = vpop.f32.mrb[0].mxu0
      %v1618 = vpop.f32.mrb[0].mxu0
      %v1619 = vadd.f32 0.0, %v1618
      %v1620 = vpop.f32.mrb[0].mxu0
      %1621 = vmatprep.mubr.bf16.mxu0 0
      %1622 = vmatmul.mubr.bf16.gmra.mrb[0].mxu0 %v1489
      %v1623 = vpop.f32.mrb[0].mxu0
      %v1624 = vadd.f32 0.0, %v1623
      %v1625 = vpop.f32.mrb[0].mxu0
      %v1626 = vpop.f32.mrb[0].mxu0
      %v1627 = vadd.f32 0.0, %v1626
      %v1628 = vpop.f32.mrb[0].mxu0
      %1629 = vmatprep.mubr.bf16.mxu0 0
      %1630 = vmatmul.mubr.bf16.gmra.mrb[0].mxu0 %v1492
      %v1631 = vpop.f32.mrb[0].mxu0
      %v1632 = vadd.f32 0.0, %v1631
      %v1633 = vpop.f32.mrb[0].mxu0
      %v1634 = vpop.f32.mrb[0].mxu0
      %v1635 = vadd.f32 0.0, %v1634
      %v1636 = vpop.f32.mrb[0].mxu0
      %1637 = vmatprep.mubr.bf16.mxu0 0
      %1638 = vmatmul.mubr.bf16.gmra.mrb[0].mxu0 %v1495
      %v1639 = vpop.f32.mrb[0].mxu0
      %v1640 = vadd.f32 0.0, %v1639
      %v1641 = vpop.f32.mrb[0].mxu0
      %v1642 = vpop.f32.mrb[0].mxu0
      %v1643 = vadd.f32 0.0, %v1642
      %v1644 = vpop.f32.mrb[0].mxu0
      %1645 = vmatprep.mubr.bf16.mxu0 0
      %1646 = vmatmul.mubr.bf16.gmra.mrb[0].mxu0 %v1498
      %v1647 = vpop.f32.mrb[0].mxu0
      %v1648 = vadd.f32 0.0, %v1647
      %v1649 = vpop.f32.mrb[0].mxu0
      %v1650 = vpop.f32.mrb[0].mxu0
      %v1651 = vadd.f32 0.0, %v1650
      %v1652 = vpop.f32.mrb[0].mxu0
      %1653 = vmatprep.mubr.bf16.mxu0 0
      %1654 = vmatmul.mubr.bf16.gmra.mrb[0].mxu0 %v1501
      %v1655 = vpop.f32.mrb[0].mxu0
      %v1656 = vadd.f32 0.0, %v1655
      %v1657 = vpop.f32.mrb[0].mxu0
      %v1658 = vpop.f32.mrb[0].mxu0
      %v1659 = vadd.f32 0.0, %v1658
      %v1660 = vpop.f32.mrb[0].mxu0
      %1661 = vmatprep.mubr.bf16.mxu0 0
      %1662 = vmatmul.mubr.bf16.gmra.mrb[0].mxu0 %v1504
      %v1663 = vpop.f32.mrb[0].mxu0
      %v1664 = vadd.f32 0.0, %v1663
      %v1665 = vpop.f32.mrb[0].mxu0
      %v1666 = vpop.f32.mrb[0].mxu0
      %v1667 = vadd.f32 0.0, %v1666
      %v1668 = vpop.f32.mrb[0].mxu0
      %1669 = vdwg.mxu0
      %v1670 = vadd.f32 %v1119, %v1544
      %v1671 = vadd.f32 %v1122, %v1547
      %v1672 = vadd.f32 %v1127, %v1552
      %v1673 = vadd.f32 %v1130, %v1555
      %v1674 = vadd.f32 %v1135, %v1560
      %v1675 = vadd.f32 %v1138, %v1563
      %v1676 = vadd.f32 %v1143, %v1568
      %v1677 = vadd.f32 %v1146, %v1571
      %v1678 = vadd.f32 %v1151, %v1576
      %v1679 = vadd.f32 %v1154, %v1579
      %v1680 = vadd.f32 %v1159, %v1584
      %v1681 = vadd.f32 %v1162, %v1587
      %v1682 = vadd.f32 %v1167, %v1592
      %v1683 = vadd.f32 %v1170, %v1595
      %v1684 = vadd.f32 %v1175, %v1600
      %v1685 = vadd.f32 %v1178, %v1603
      %v1686 = vadd.f32 %v1183, %v1608
      %v1687 = vadd.f32 %v1186, %v1611
      %v1688 = vadd.f32 %v1191, %v1616
      %v1689 = vadd.f32 %v1194, %v1619
      %v1690 = vadd.f32 %v1199, %v1624
      %v1691 = vadd.f32 %v1202, %v1627
      %v1692 = vadd.f32 %v1207, %v1632
      %v1693 = vadd.f32 %v1210, %v1635
      %v1694 = vadd.f32 %v1215, %v1640
      %v1695 = vadd.f32 %v1218, %v1643
      %v1696 = vadd.f32 %v1223, %v1648
      %v1697 = vadd.f32 %v1226, %v1651
      %v1698 = vadd.f32 %v1231, %v1656
      %v1699 = vadd.f32 %v1234, %v1659
      %v1700 = vadd.f32 %v1239, %v1664
      %v1701 = vadd.f32 %v1242, %v1667
      %s1702 = scalar_lea.vmem %s233, 12
      %v1703 = vld [vmem:[%s1702] sm:$0xf]
      %v1704 = vld [vmem:[%s1702 + $0x4] sm:$0xf]
      %v1705 = vld [vmem:[%s1702 + $0xc] sm:$0xf]
      %v1706 = vld [vmem:[%s1702 + $0x10] sm:$0xf]
      %v1707 = vld [vmem:[%s1702 + $0x18] sm:$0xf]
      %v1708 = vld [vmem:[%s1702 + $0x1c] sm:$0xf]
      %v1709 = vld [vmem:[%s1702 + $0x24] sm:$0xf]
      %v1710 = vld [vmem:[%s1702 + $0x28] sm:$0xf]
      %v1711 = vld [vmem:[%s1702 + $0x30] sm:$0xf]
      %v1712 = vld [vmem:[%s1702 + $0x34] sm:$0xf]
      %v1713 = vld [vmem:[%s1702 + $0x3c] sm:$0xf]
      %v1714 = vld [vmem:[%s1702 + $0x40] sm:$0xf]
      %v1715 = vld [vmem:[%s1702 + $0x48] sm:$0xf]
      %v1716 = vld [vmem:[%s1702 + $0x4c] sm:$0xf]
      %v1717 = vld [vmem:[%s1702 + $0x54] sm:$0xf]
      %v1718 = vld [vmem:[%s1702 + $0x58] sm:$0xf]
      %v1719 = vld [vmem:[%s1702 + $0x60] sm:$0xf]
      %v1720 = vld [vmem:[%s1702 + $0x64] sm:$0xf]
      %v1721 = vld [vmem:[%s1702 + $0x6c] sm:$0xf]
      %v1722 = vld [vmem:[%s1702 + $0x70] sm:$0xf]
      %v1723 = vld [vmem:[%s1702 + $0x78] sm:$0xf]
      %v1724 = vld [vmem:[%s1702 + $0x7c] sm:$0xf]
      %v1725 = vld [vmem:[%s1702 + $0x84] sm:$0xf]
      %v1726 = vld [vmem:[%s1702 + $0x88] sm:$0xf]
      %v1727 = vld [vmem:[%s1702 + $0x90] sm:$0xf]
      %v1728 = vld [vmem:[%s1702 + $0x94] sm:$0xf]
      %v1729 = vld [vmem:[%s1702 + $0x9c] sm:$0xf]
      %v1730 = vld [vmem:[%s1702 + $0xa0] sm:$0xf]
      %v1731 = vld [vmem:[%s1702 + $0xa8] sm:$0xf]
      %v1732 = vld [vmem:[%s1702 + $0xac] sm:$0xf]
      %v1733 = vld [vmem:[%s1702 + $0xb4] sm:$0xf]
      %v1734 = vld [vmem:[%s1702 + $0xb8] sm:$0xf]
      %s1735 = scalar_lea.vmem %s237, 6
      %v1736 = vld [vmem:[%s1735] sm:$0x3]
      %v1769 = vunpack.c.l.b16 %v1703
      %v1770 = vunpack.c.l.b16 %v1704
      %v1771 = vunpack.c.l.b16 %v1705
      %v1772 = vunpack.c.l.b16 %v1706
      %v1773 = vunpack.c.l.b16 %v1707
      %v1774 = vunpack.c.l.b16 %v1708
      %v1775 = vunpack.c.l.b16 %v1709
      %v1776 = vunpack.c.l.b16 %v1710
      %v1777 = vunpack.c.l.b16 %v1711
      %v1778 = vunpack.c.l.b16 %v1712
      %v1779 = vunpack.c.l.b16 %v1713
      %v1780 = vunpack.c.l.b16 %v1714
      %v1781 = vunpack.c.l.b16 %v1715
      %v1782 = vunpack.c.l.b16 %v1716
      %v1783 = vunpack.c.l.b16 %v1717
      %v1784 = vunpack.c.l.b16 %v1718
      %v1785 = vunpack.c.l.b16 %v1719
      %v1786 = vunpack.c.l.b16 %v1720
      %v1787 = vunpack.c.l.b16 %v1721
      %v1788 = vunpack.c.l.b16 %v1722
      %v1789 = vunpack.c.l.b16 %v1723
      %v1790 = vunpack.c.l.b16 %v1724
      %v1791 = vunpack.c.l.b16 %v1725
      %v1792 = vunpack.c.l.b16 %v1726
      %v1793 = vunpack.c.l.b16 %v1727
      %v1794 = vunpack.c.l.b16 %v1728
      %v1795 = vunpack.c.l.b16 %v1729
      %v1796 = vunpack.c.l.b16 %v1730
      %v1797 = vunpack.c.l.b16 %v1731
      %v1798 = vunpack.c.l.b16 %v1732
      %v1799 = vunpack.c.l.b16 %v1733
      %v1800 = vunpack.c.l.b16 %v1734
      %v1801 = vpack.c.b16 %v1770, %v1769
      %v1802 = vpack.c.b16 %v1772, %v1771
      %v1803 = vpack.c.b16 %v1774, %v1773
      %v1804 = vpack.c.b16 %v1776, %v1775
      %v1805 = vpack.c.b16 %v1778, %v1777
      %v1806 = vpack.c.b16 %v1780, %v1779
      %v1807 = vpack.c.b16 %v1782, %v1781
      %v1808 = vpack.c.b16 %v1784, %v1783
      %v1809 = vpack.c.b16 %v1786, %v1785
      %v1810 = vpack.c.b16 %v1788, %v1787
      %v1811 = vpack.c.b16 %v1790, %v1789
      %v1812 = vpack.c.b16 %v1792, %v1791
      %v1813 = vpack.c.b16 %v1794, %v1793
      %v1814 = vpack.c.b16 %v1796, %v1795
      %v1815 = vpack.c.b16 %v1798, %v1797
      %v1816 = vpack.c.b16 %v1800, %v1799
      %v1818 = vsel %vm739, %v1801, 0
      %v1821 = vsel %vm739, %v1802, 0
      %v1824 = vsel %vm739, %v1803, 0
      %v1827 = vsel %vm739, %v1804, 0
      %v1830 = vsel %vm739, %v1805, 0
      %v1833 = vsel %vm739, %v1806, 0
      %v1836 = vsel %vm739, %v1807, 0
      %v1839 = vsel %vm739, %v1808, 0
      %v1842 = vsel %vm739, %v1809, 0
      %v1845 = vsel %vm739, %v1810, 0
      %v1848 = vsel %vm739, %v1811, 0
      %v1851 = vsel %vm739, %v1812, 0
      %v1854 = vsel %vm739, %v1813, 0
      %v1857 = vsel %vm739, %v1814, 0
      %v1860 = vsel %vm739, %v1815, 0
      %v1863 = vsel %vm739, %v1816, 0
      %v1866 = vsel %vm788, %v1736, 0
      %1868 = vmatprep.subr.bf16.mxu0 0
      %1869 = vmatpush1.bf16.msra.mxu0 %v1866
      %1870 = vmatprep.subr.bf16.mxu0 0
      %1871 = vmatpush1.bf16.msra.mxu0 0
      %1872 = vmatprep.subr.bf16.mxu0 0
      %1873 = vmatpush1.bf16.msra.mxu0 0
      %1874 = vmatprep.subr.bf16.mxu0 0
      %1875 = vmatpush1.bf16.msra.mxu0 0
      %1876 = vmatprep.subr.bf16.mxu0 0
      %1877 = vmatpush1.bf16.msra.mxu0 0
      %1878 = vmatprep.subr.bf16.mxu0 0
      %1879 = vmatpush1.bf16.msra.mxu0 0
      %1880 = vmatprep.subr.bf16.mxu0 0
      %1881 = vmatpush1.bf16.msra.mxu0 0
      %1882 = vmatprep.subr.bf16.mxu0 0
      %1883 = vmatpush1.bf16.msra.mxu0 0
      %1884 = vmatprep.subr.bf16.mxu0 0
      %1885 = vmatpush1.bf16.msra.mxu0 0
      %1886 = vmatprep.subr.bf16.mxu0 0
      %1887 = vmatpush1.bf16.msra.mxu0 0
      %1888 = vmatprep.subr.bf16.mxu0 0
      %1889 = vmatpush1.bf16.msra.mxu0 0
      %1890 = vmatprep.subr.bf16.mxu0 0
      %1891 = vmatpush1.bf16.msra.mxu0 0
      %1892 = vmatprep.subr.bf16.mxu0 0
      %1893 = vmatpush1.bf16.msra.mxu0 0
      %1894 = vmatprep.subr.bf16.mxu0 0
      %1895 = vmatpush1.bf16.msra.mxu0 0
      %1896 = vmatprep.subr.bf16.mxu0 0
      %1897 = vmatpush1.bf16.msra.mxu0 0
      %1898 = vmatprep.subr.bf16.mxu0 0
      %1899 = vmatpush1.bf16.msra.mxu0 0
      %1900 = vmatprep.mubr.bf16.mxu0 0
      %1901 = vmatmul.mubr.bf16.gmra.mrb[0].mxu0 %v1818
      %v1902 = vpop.f32.mrb[0].mxu0
      %v1903 = vadd.f32 0.0, %v1902
      %v1904 = vpop.f32.mrb[0].mxu0
      %v1905 = vpop.f32.mrb[0].mxu0
      %v1906 = vadd.f32 0.0, %v1905
      %v1907 = vpop.f32.mrb[0].mxu0
      %1908 = vmatprep.mubr.bf16.mxu0 0
      %1909 = vmatmul.mubr.bf16.gmra.mrb[0].mxu0 %v1821
      %v1910 = vpop.f32.mrb[0].mxu0
      %v1911 = vadd.f32 0.0, %v1910
      %v1912 = vpop.f32.mrb[0].mxu0
      %v1913 = vpop.f32.mrb[0].mxu0
      %v1914 = vadd.f32 0.0, %v1913
      %v1915 = vpop.f32.mrb[0].mxu0
      %1916 = vmatprep.mubr.bf16.mxu0 0
      %1917 = vmatmul.mubr.bf16.gmra.mrb[0].mxu0 %v1824
      %v1918 = vpop.f32.mrb[0].mxu0
      %v1919 = vadd.f32 0.0, %v1918
      %v1920 = vpop.f32.mrb[0].mxu0
      %v1921 = vpop.f32.mrb[0].mxu0
      %v1922 = vadd.f32 0.0, %v1921
      %v1923 = vpop.f32.mrb[0].mxu0
      %1924 = vmatprep.mubr.bf16.mxu0 0
      %1925 = vmatmul.mubr.bf16.gmra.mrb[0].mxu0 %v1827
      %v1926 = vpop.f32.mrb[0].mxu0
      %v1927 = vadd.f32 0.0, %v1926
      %v1928 = vpop.f32.mrb[0].mxu0
      %v1929 = vpop.f32.mrb[0].mxu0
      %v1930 = vadd.f32 0.0, %v1929
      %v1931 = vpop.f32.mrb[0].mxu0
      %1932 = vmatprep.mubr.bf16.mxu0 0
      %1933 = vmatmul.mubr.bf16.gmra.mrb[0].mxu0 %v1830
      %v1934 = vpop.f32.mrb[0].mxu0
      %v1935 = vadd.f32 0.0, %v1934
      %v1936 = vpop.f32.mrb[0].mxu0
      %v1937 = vpop.f32.mrb[0].mxu0
      %v1938 = vadd.f32 0.0, %v1937
      %v1939 = vpop.f32.mrb[0].mxu0
      %1940 = vmatprep.mubr.bf16.mxu0 0
      %1941 = vmatmul.mubr.bf16.gmra.mrb[0].mxu0 %v1833
      %v1942 = vpop.f32.mrb[0].mxu0
      %v1943 = vadd.f32 0.0, %v1942
      %v1944 = vpop.f32.mrb[0].mxu0
      %v1945 = vpop.f32.mrb[0].mxu0
      %v1946 = vadd.f32 0.0, %v1945
      %v1947 = vpop.f32.mrb[0].mxu0
      %1948 = vmatprep.mubr.bf16.mxu0 0
      %1949 = vmatmul.mubr.bf16.gmra.mrb[0].mxu0 %v1836
      %v1950 = vpop.f32.mrb[0].mxu0
      %v1951 = vadd.f32 0.0, %v1950
      %v1952 = vpop.f32.mrb[0].mxu0
      %v1953 = vpop.f32.mrb[0].mxu0
      %v1954 = vadd.f32 0.0, %v1953
      %v1955 = vpop.f32.mrb[0].mxu0
      %1956 = vmatprep.mubr.bf16.mxu0 0
      %1957 = vmatmul.mubr.bf16.gmra.mrb[0].mxu0 %v1839
      %v1958 = vpop.f32.mrb[0].mxu0
      %v1959 = vadd.f32 0.0, %v1958
      %v1960 = vpop.f32.mrb[0].mxu0
      %v1961 = vpop.f32.mrb[0].mxu0
      %v1962 = vadd.f32 0.0, %v1961
      %v1963 = vpop.f32.mrb[0].mxu0
      %1964 = vmatprep.mubr.bf16.mxu0 0
      %1965 = vmatmul.mubr.bf16.gmra.mrb[0].mxu0 %v1842
      %v1966 = vpop.f32.mrb[0].mxu0
      %v1967 = vadd.f32 0.0, %v1966
      %v1968 = vpop.f32.mrb[0].mxu0
      %v1969 = vpop.f32.mrb[0].mxu0
      %v1970 = vadd.f32 0.0, %v1969
      %v1971 = vpop.f32.mrb[0].mxu0
      %1972 = vmatprep.mubr.bf16.mxu0 0
      %1973 = vmatmul.mubr.bf16.gmra.mrb[0].mxu0 %v1845
      %v1974 = vpop.f32.mrb[0].mxu0
      %v1975 = vadd.f32 0.0, %v1974
      %v1976 = vpop.f32.mrb[0].mxu0
      %v1977 = vpop.f32.mrb[0].mxu0
      %v1978 = vadd.f32 0.0, %v1977
      %v1979 = vpop.f32.mrb[0].mxu0
      %1980 = vmatprep.mubr.bf16.mxu0 0
      %1981 = vmatmul.mubr.bf16.gmra.mrb[0].mxu0 %v1848
      %v1982 = vpop.f32.mrb[0].mxu0
      %v1983 = vadd.f32 0.0, %v1982
      %v1984 = vpop.f32.mrb[0].mxu0
      %v1985 = vpop.f32.mrb[0].mxu0
      %v1986 = vadd.f32 0.0, %v1985
      %v1987 = vpop.f32.mrb[0].mxu0
      %1988 = vmatprep.mubr.bf16.mxu0 0
      %1989 = vmatmul.mubr.bf16.gmra.mrb[0].mxu0 %v1851
      %v1990 = vpop.f32.mrb[0].mxu0
      %v1991 = vadd.f32 0.0, %v1990
      %v1992 = vpop.f32.mrb[0].mxu0
      %v1993 = vpop.f32.mrb[0].mxu0
      %v1994 = vadd.f32 0.0, %v1993
      %v1995 = vpop.f32.mrb[0].mxu0
      %1996 = vmatprep.mubr.bf16.mxu0 0
      %1997 = vmatmul.mubr.bf16.gmra.mrb[0].mxu0 %v1854
      %v1998 = vpop.f32.mrb[0].mxu0
      %v1999 = vadd.f32 0.0, %v1998
      %v2000 = vpop.f32.mrb[0].mxu0
      %v2001 = vpop.f32.mrb[0].mxu0
      %v2002 = vadd.f32 0.0, %v2001
      %v2003 = vpop.f32.mrb[0].mxu0
      %2004 = vmatprep.mubr.bf16.mxu0 0
      %2005 = vmatmul.mubr.bf16.gmra.mrb[0].mxu0 %v1857
      %v2006 = vpop.f32.mrb[0].mxu0
      %v2007 = vadd.f32 0.0, %v2006
      %v2008 = vpop.f32.mrb[0].mxu0
      %v2009 = vpop.f32.mrb[0].mxu0
      %v2010 = vadd.f32 0.0, %v2009
      %v2011 = vpop.f32.mrb[0].mxu0
      %2012 = vmatprep.mubr.bf16.mxu0 0
      %2013 = vmatmul.mubr.bf16.gmra.mrb[0].mxu0 %v1860
      %v2014 = vpop.f32.mrb[0].mxu0
      %v2015 = vadd.f32 0.0, %v2014
      %v2016 = vpop.f32.mrb[0].mxu0
      %v2017 = vpop.f32.mrb[0].mxu0
      %v2018 = vadd.f32 0.0, %v2017
      %v2019 = vpop.f32.mrb[0].mxu0
      %2020 = vmatprep.mubr.bf16.mxu0 0
      %2021 = vmatmul.mubr.bf16.gmra.mrb[0].mxu0 %v1863
      %v2022 = vpop.f32.mrb[0].mxu0
      %v2023 = vadd.f32 0.0, %v2022
      %v2024 = vpop.f32.mrb[0].mxu0
      %v2025 = vpop.f32.mrb[0].mxu0
      %v2026 = vadd.f32 0.0, %v2025
      %v2027 = vpop.f32.mrb[0].mxu0
      %2028 = vdwg.mxu0
      %v2029 = vadd.f32 %v1670, %v1903
      %v2030 = vadd.f32 %v1671, %v1906
      %v2031 = vadd.f32 %v1672, %v1911
      %v2032 = vadd.f32 %v1673, %v1914
      %v2033 = vadd.f32 %v1674, %v1919
      %v2034 = vadd.f32 %v1675, %v1922
      %v2035 = vadd.f32 %v1676, %v1927
      %v2036 = vadd.f32 %v1677, %v1930
      %v2037 = vadd.f32 %v1678, %v1935
      %v2038 = vadd.f32 %v1679, %v1938
      %v2039 = vadd.f32 %v1680, %v1943
      %v2040 = vadd.f32 %v1681, %v1946
      %v2041 = vadd.f32 %v1682, %v1951
      %v2042 = vadd.f32 %v1683, %v1954
      %v2043 = vadd.f32 %v1684, %v1959
      %v2044 = vadd.f32 %v1685, %v1962
      %v2045 = vadd.f32 %v1686, %v1967
      %v2046 = vadd.f32 %v1687, %v1970
      %v2047 = vadd.f32 %v1688, %v1975
      %v2048 = vadd.f32 %v1689, %v1978
      %v2049 = vadd.f32 %v1690, %v1983
      %v2050 = vadd.f32 %v1691, %v1986
      %v2051 = vadd.f32 %v1692, %v1991
      %v2052 = vadd.f32 %v1693, %v1994
      %v2053 = vadd.f32 %v1694, %v1999
      %v2054 = vadd.f32 %v1695, %v2002
      %v2055 = vadd.f32 %v1696, %v2007
      %v2056 = vadd.f32 %v1697, %v2010
      %v2057 = vadd.f32 %v1698, %v2015
      %v2058 = vadd.f32 %v1699, %v2018
      %v2059 = vadd.f32 %v1700, %v2023
      %v2060 = vadd.f32 %v1701, %v2026
      %v2061 = vld [vmem:[%s1702] sm:$0xf]
      %v2062 = vld [vmem:[%s1702 + $0x4] sm:$0xf]
      %v2063 = vld [vmem:[%s1702 + $0x8] sm:$0x1]
      %v2064 = vld [vmem:[%s1702 + $0xc] sm:$0xf]
      %v2065 = vld [vmem:[%s1702 + $0x10] sm:$0xf]
      %v2066 = vld [vmem:[%s1702 + $0x14] sm:$0x1]
      %v2067 = vld [vmem:[%s1702 + $0x18] sm:$0xf]
      %v2068 = vld [vmem:[%s1702 + $0x1c] sm:$0xf]
      %v2069 = vld [vmem:[%s1702 + $0x20] sm:$0x1]
      %v2070 = vld [vmem:[%s1702 + $0x24] sm:$0xf]
      %v2071 = vld [vmem:[%s1702 + $0x28] sm:$0xf]
      %v2072 = vld [vmem:[%s1702 + $0x2c] sm:$0x1]
      %v2073 = vld [vmem:[%s1702 + $0x30] sm:$0xf]
      %v2074 = vld [vmem:[%s1702 + $0x34] sm:$0xf]
      %v2075 = vld [vmem:[%s1702 + $0x38] sm:$0x1]
      %v2076 = vld [vmem:[%s1702 + $0x3c] sm:$0xf]
      %v2077 = vld [vmem:[%s1702 + $0x40] sm:$0xf]
      %v2078 = vld [vmem:[%s1702 + $0x44] sm:$0x1]
      %v2079 = vld [vmem:[%s1702 + $0x48] sm:$0xf]
      %v2080 = vld [vmem:[%s1702 + $0x4c] sm:$0xf]
      %v2081 = vld [vmem:[%s1702 + $0x50] sm:$0x1]
      %v2082 = vld [vmem:[%s1702 + $0x54] sm:$0xf]
      %v2083 = vld [vmem:[%s1702 + $0x58] sm:$0xf]
      %v2084 = vld [vmem:[%s1702 + $0x5c] sm:$0x1]
      %v2085 = vld [vmem:[%s1702 + $0x60] sm:$0xf]
      %v2086 = vld [vmem:[%s1702 + $0x64] sm:$0xf]
      %v2087 = vld [vmem:[%s1702 + $0x68] sm:$0x1]
      %v2088 = vld [vmem:[%s1702 + $0x6c] sm:$0xf]
      %v2089 = vld [vmem:[%s1702 + $0x70] sm:$0xf]
      %v2090 = vld [vmem:[%s1702 + $0x74] sm:$0x1]
      %v2091 = vld [vmem:[%s1702 + $0x78] sm:$0xf]
      %v2092 = vld [vmem:[%s1702 + $0x7c] sm:$0xf]
      %v2093 = vld [vmem:[%s1702 + $0x80] sm:$0x1]
      %v2094 = vld [vmem:[%s1702 + $0x84] sm:$0xf]
      %v2095 = vld [vmem:[%s1702 + $0x88] sm:$0xf]
      %v2096 = vld [vmem:[%s1702 + $0x8c] sm:$0x1]
      %v2097 = vld [vmem:[%s1702 + $0x90] sm:$0xf]
      %v2098 = vld [vmem:[%s1702 + $0x94] sm:$0xf]
      %v2099 = vld [vmem:[%s1702 + $0x98] sm:$0x1]
      %v2100 = vld [vmem:[%s1702 + $0x9c] sm:$0xf]
      %v2101 = vld [vmem:[%s1702 + $0xa0] sm:$0xf]
      %v2102 = vld [vmem:[%s1702 + $0xa4] sm:$0x1]
      %v2103 = vld [vmem:[%s1702 + $0xa8] sm:$0xf]
      %v2104 = vld [vmem:[%s1702 + $0xac] sm:$0xf]
      %v2105 = vld [vmem:[%s1702 + $0xb0] sm:$0x1]
      %v2106 = vld [vmem:[%s1702 + $0xb4] sm:$0xf]
      %v2107 = vld [vmem:[%s1702 + $0xb8] sm:$0xf]
      %v2108 = vld [vmem:[%s1702 + $0xbc] sm:$0x1]
      %v2110 = vshrl.u32 %v2061, 16
      %v2112 = vrot.slane %v2110, 4
      %v2113 = vshll.u32 %v2061, 16
      %v2115 = vrot.slane %v2113, 5
      %v2116 = vor.u32 %v2112, %v2115
      %v2117 = vrot.slane %v2116, 4
      %v2119 = vshll.u32 %v2062, 16
      %v2121 = vrot.slane %v2119, 5
      %v2122 = vsel %vm304, %v2117, %v2121
      %v2123 = vshrl.u32 %v2062, 16
      %v2125 = vrot.slane %v2123, 4
      %v2126 = vor.u32 %v2125, %v2121
      %v2127 = vrot.slane %v2126, 4
      %v2129 = vshll.u32 %v2063, 16
      %v2131 = vrot.slane %v2129, 5
      %v2132 = vsel %vm304, %v2127, %v2131
      %v2134 = vshrl.u32 %v2064, 16
      %v2136 = vrot.slane %v2134, 4
      %v2137 = vshll.u32 %v2064, 16
      %v2139 = vrot.slane %v2137, 5
      %v2140 = vor.u32 %v2136, %v2139
      %v2141 = vrot.slane %v2140, 4
      %v2143 = vshll.u32 %v2065, 16
      %v2145 = vrot.slane %v2143, 5
      %v2146 = vsel %vm304, %v2141, %v2145
      %v2147 = vshrl.u32 %v2065, 16
      %v2149 = vrot.slane %v2147, 4
      %v2150 = vor.u32 %v2149, %v2145
      %v2151 = vrot.slane %v2150, 4
      %v2153 = vshll.u32 %v2066, 16
      %v2155 = vrot.slane %v2153, 5
      %v2156 = vsel %vm304, %v2151, %v2155
      %v2158 = vshrl.u32 %v2067, 16
      %v2160 = vrot.slane %v2158, 4
      %v2161 = vshll.u32 %v2067, 16
      %v2163 = vrot.slane %v2161, 5
      %v2164 = vor.u32 %v2160, %v2163
      %v2165 = vrot.slane %v2164, 4
      %v2167 = vshll.u32 %v2068, 16
      %v2169 = vrot.slane %v2167, 5
      %v2170 = vsel %vm304, %v2165, %v2169
      %v2171 = vshrl.u32 %v2068, 16
      %v2173 = vrot.slane %v2171, 4
      %v2174 = vor.u32 %v2173, %v2169
      %v2175 = vrot.slane %v2174, 4
      %v2177 = vshll.u32 %v2069, 16
      %v2179 = vrot.slane %v2177, 5
      %v2180 = vsel %vm304, %v2175, %v2179
      %v2182 = vshrl.u32 %v2070, 16
      %v2184 = vrot.slane %v2182, 4
      %v2185 = vshll.u32 %v2070, 16
      %v2187 = vrot.slane %v2185, 5
      %v2188 = vor.u32 %v2184, %v2187
      %v2189 = vrot.slane %v2188, 4
      %v2191 = vshll.u32 %v2071, 16
      %v2193 = vrot.slane %v2191, 5
      %v2194 = vsel %vm304, %v2189, %v2193
      %v2195 = vshrl.u32 %v2071, 16
      %v2197 = vrot.slane %v2195, 4
      %v2198 = vor.u32 %v2197, %v2193
      %v2199 = vrot.slane %v2198, 4
      %v2201 = vshll.u32 %v2072, 16
      %v2203 = vrot.slane %v2201, 5
      %v2204 = vsel %vm304, %v2199, %v2203
      %v2206 = vshrl.u32 %v2073, 16
      %v2208 = vrot.slane %v2206, 4
      %v2209 = vshll.u32 %v2073, 16
      %v2211 = vrot.slane %v2209, 5
      %v2212 = vor.u32 %v2208, %v2211
      %v2213 = vrot.slane %v2212, 4
      %v2215 = vshll.u32 %v2074, 16
      %v2217 = vrot.slane %v2215, 5
      %v2218 = vsel %vm304, %v2213, %v2217
      %v2219 = vshrl.u32 %v2074, 16
      %v2221 = vrot.slane %v2219, 4
      %v2222 = vor.u32 %v2221, %v2217
      %v2223 = vrot.slane %v2222, 4
      %v2225 = vshll.u32 %v2075, 16
      %v2227 = vrot.slane %v2225, 5
      %v2228 = vsel %vm304, %v2223, %v2227
      %v2230 = vshrl.u32 %v2076, 16
      %v2232 = vrot.slane %v2230, 4
      %v2233 = vshll.u32 %v2076, 16
      %v2235 = vrot.slane %v2233, 5
      %v2236 = vor.u32 %v2232, %v2235
      %v2237 = vrot.slane %v2236, 4
      %v2239 = vshll.u32 %v2077, 16
      %v2241 = vrot.slane %v2239, 5
      %v2242 = vsel %vm304, %v2237, %v2241
      %v2243 = vshrl.u32 %v2077, 16
      %v2245 = vrot.slane %v2243, 4
      %v2246 = vor.u32 %v2245, %v2241
      %v2247 = vrot.slane %v2246, 4
      %v2249 = vshll.u32 %v2078, 16
      %v2251 = vrot.slane %v2249, 5
      %v2252 = vsel %vm304, %v2247, %v2251
      %v2254 = vshrl.u32 %v2079, 16
      %v2256 = vrot.slane %v2254, 4
      %v2257 = vshll.u32 %v2079, 16
      %v2259 = vrot.slane %v2257, 5
      %v2260 = vor.u32 %v2256, %v2259
      %v2261 = vrot.slane %v2260, 4
      %v2263 = vshll.u32 %v2080, 16
      %v2265 = vrot.slane %v2263, 5
      %v2266 = vsel %vm304, %v2261, %v2265
      %v2267 = vshrl.u32 %v2080, 16
      %v2269 = vrot.slane %v2267, 4
      %v2270 = vor.u32 %v2269, %v2265
      %v2271 = vrot.slane %v2270, 4
      %v2273 = vshll.u32 %v2081, 16
      %v2275 = vrot.slane %v2273, 5
      %v2276 = vsel %vm304, %v2271, %v2275
      %v2278 = vshrl.u32 %v2082, 16
      %v2280 = vrot.slane %v2278, 4
      %v2281 = vshll.u32 %v2082, 16
      %v2283 = vrot.slane %v2281, 5
      %v2284 = vor.u32 %v2280, %v2283
      %v2285 = vrot.slane %v2284, 4
      %v2287 = vshll.u32 %v2083, 16
      %v2289 = vrot.slane %v2287, 5
      %v2290 = vsel %vm304, %v2285, %v2289
      %v2291 = vshrl.u32 %v2083, 16
      %v2293 = vrot.slane %v2291, 4
      %v2294 = vor.u32 %v2293, %v2289
      %v2295 = vrot.slane %v2294, 4
      %v2297 = vshll.u32 %v2084, 16
      %v2299 = vrot.slane %v2297, 5
      %v2300 = vsel %vm304, %v2295, %v2299
      %v2302 = vshrl.u32 %v2085, 16
      %v2304 = vrot.slane %v2302, 4
      %v2305 = vshll.u32 %v2085, 16
      %v2307 = vrot.slane %v2305, 5
      %v2308 = vor.u32 %v2304, %v2307
      %v2309 = vrot.slane %v2308, 4
      %v2311 = vshll.u32 %v2086, 16
      %v2313 = vrot.slane %v2311, 5
      %v2314 = vsel %vm304, %v2309, %v2313
      %v2315 = vshrl.u32 %v2086, 16
      %v2317 = vrot.slane %v2315, 4
      %v2318 = vor.u32 %v2317, %v2313
      %v2319 = vrot.slane %v2318, 4
      %v2321 = vshll.u32 %v2087, 16
      %v2323 = vrot.slane %v2321, 5
      %v2324 = vsel %vm304, %v2319, %v2323
      %v2326 = vshrl.u32 %v2088, 16
      %v2328 = vrot.slane %v2326, 4
      %v2329 = vshll.u32 %v2088, 16
      %v2331 = vrot.slane %v2329, 5
      %v2332 = vor.u32 %v2328, %v2331
      %v2333 = vrot.slane %v2332, 4
      %v2335 = vshll.u32 %v2089, 16
      %v2337 = vrot.slane %v2335, 5
      %v2338 = vsel %vm304, %v2333, %v2337
      %v2339 = vshrl.u32 %v2089, 16
      %v2341 = vrot.slane %v2339, 4
      %v2342 = vor.u32 %v2341, %v2337
      %v2343 = vrot.slane %v2342, 4
      %v2345 = vshll.u32 %v2090, 16
      %v2347 = vrot.slane %v2345, 5
      %v2348 = vsel %vm304, %v2343, %v2347
      %v2350 = vshrl.u32 %v2091, 16
      %v2352 = vrot.slane %v2350, 4
      %v2353 = vshll.u32 %v2091, 16
      %v2355 = vrot.slane %v2353, 5
      %v2356 = vor.u32 %v2352, %v2355
      %v2357 = vrot.slane %v2356, 4
      %v2359 = vshll.u32 %v2092, 16
      %v2361 = vrot.slane %v2359, 5
      %v2362 = vsel %vm304, %v2357, %v2361
      %v2363 = vshrl.u32 %v2092, 16
      %v2365 = vrot.slane %v2363, 4
      %v2366 = vor.u32 %v2365, %v2361
      %v2367 = vrot.slane %v2366, 4
      %v2369 = vshll.u32 %v2093, 16
      %v2371 = vrot.slane %v2369, 5
      %v2372 = vsel %vm304, %v2367, %v2371
      %v2374 = vshrl.u32 %v2094, 16
      %v2376 = vrot.slane %v2374, 4
      %v2377 = vshll.u32 %v2094, 16
      %v2379 = vrot.slane %v2377, 5
      %v2380 = vor.u32 %v2376, %v2379
      %v2381 = vrot.slane %v2380, 4
      %v2383 = vshll.u32 %v2095, 16
      %v2385 = vrot.slane %v2383, 5
      %v2386 = vsel %vm304, %v2381, %v2385
      %v2387 = vshrl.u32 %v2095, 16
      %v2389 = vrot.slane %v2387, 4
      %v2390 = vor.u32 %v2389, %v2385
      %v2391 = vrot.slane %v2390, 4
      %v2393 = vshll.u32 %v2096, 16
      %v2395 = vrot.slane %v2393, 5
      %v2396 = vsel %vm304, %v2391, %v2395
      %v2398 = vshrl.u32 %v2097, 16
      %v2400 = vrot.slane %v2398, 4
      %v2401 = vshll.u32 %v2097, 16
      %v2403 = vrot.slane %v2401, 5
      %v2404 = vor.u32 %v2400, %v2403
      %v2405 = vrot.slane %v2404, 4
      %v2407 = vshll.u32 %v2098, 16
      %v2409 = vrot.slane %v2407, 5
      %v2410 = vsel %vm304, %v2405, %v2409
      %v2411 = vshrl.u32 %v2098, 16
      %v2413 = vrot.slane %v2411, 4
      %v2414 = vor.u32 %v2413, %v2409
      %v2415 = vrot.slane %v2414, 4
      %v2417 = vshll.u32 %v2099, 16
      %v2419 = vrot.slane %v2417, 5
      %v2420 = vsel %vm304, %v2415, %v2419
      %v2422 = vshrl.u32 %v2100, 16
      %v2424 = vrot.slane %v2422, 4
      %v2425 = vshll.u32 %v2100, 16
      %v2427 = vrot.slane %v2425, 5
      %v2428 = vor.u32 %v2424, %v2427
      %v2429 = vrot.slane %v2428, 4
      %v2431 = vshll.u32 %v2101, 16
      %v2433 = vrot.slane %v2431, 5
      %v2434 = vsel %vm304, %v2429, %v2433
      %v2435 = vshrl.u32 %v2101, 16
      %v2437 = vrot.slane %v2435, 4
      %v2438 = vor.u32 %v2437, %v2433
      %v2439 = vrot.slane %v2438, 4
      %v2441 = vshll.u32 %v2102, 16
      %v2443 = vrot.slane %v2441, 5
      %v2444 = vsel %vm304, %v2439, %v2443
      %v2446 = vshrl.u32 %v2103, 16
      %v2448 = vrot.slane %v2446, 4
      %v2449 = vshll.u32 %v2103, 16
      %v2451 = vrot.slane %v2449, 5
      %v2452 = vor.u32 %v2448, %v2451
      %v2453 = vrot.slane %v2452, 4
      %v2455 = vshll.u32 %v2104, 16
      %v2457 = vrot.slane %v2455, 5
      %v2458 = vsel %vm304, %v2453, %v2457
      %v2459 = vshrl.u32 %v2104, 16
      %v2461 = vrot.slane %v2459, 4
      %v2462 = vor.u32 %v2461, %v2457
      %v2463 = vrot.slane %v2462, 4
      %v2465 = vshll.u32 %v2105, 16
      %v2467 = vrot.slane %v2465, 5
      %v2468 = vsel %vm304, %v2463, %v2467
      %v2470 = vshrl.u32 %v2106, 16
      %v2472 = vrot.slane %v2470, 4
      %v2473 = vshll.u32 %v2106, 16
      %v2475 = vrot.slane %v2473, 5
      %v2476 = vor.u32 %v2472, %v2475
      %v2477 = vrot.slane %v2476, 4
      %v2479 = vshll.u32 %v2107, 16
      %v2481 = vrot.slane %v2479, 5
      %v2482 = vsel %vm304, %v2477, %v2481
      %v2483 = vshrl.u32 %v2107, 16
      %v2485 = vrot.slane %v2483, 4
      %v2486 = vor.u32 %v2485, %v2481
      %v2487 = vrot.slane %v2486, 4
      %v2489 = vshll.u32 %v2108, 16
      %v2491 = vrot.slane %v2489, 5
      %v2492 = vsel %vm304, %v2487, %v2491
      %s2493 = scalar_lea.vmem %s237, 8
      %v2494 = vld [vmem:[%s2493] sm:$0x3]
      %v2495 = vunpack.c.l.b16 %v2122
      %v2496 = vunpack.c.l.b16 %v2132
      %v2497 = vunpack.c.l.b16 %v2146
      %v2498 = vunpack.c.l.b16 %v2156
      %v2499 = vunpack.c.l.b16 %v2170
      %v2500 = vunpack.c.l.b16 %v2180
      %v2501 = vunpack.c.l.b16 %v2194
      %v2502 = vunpack.c.l.b16 %v2204
      %v2503 = vunpack.c.l.b16 %v2218
      %v2504 = vunpack.c.l.b16 %v2228
      %v2505 = vunpack.c.l.b16 %v2242
      %v2506 = vunpack.c.l.b16 %v2252
      %v2507 = vunpack.c.l.b16 %v2266
      %v2508 = vunpack.c.l.b16 %v2276
      %v2509 = vunpack.c.l.b16 %v2290
      %v2510 = vunpack.c.l.b16 %v2300
      %v2511 = vunpack.c.l.b16 %v2314
      %v2512 = vunpack.c.l.b16 %v2324
      %v2513 = vunpack.c.l.b16 %v2338
      %v2514 = vunpack.c.l.b16 %v2348
      %v2515 = vunpack.c.l.b16 %v2362
      %v2516 = vunpack.c.l.b16 %v2372
      %v2517 = vunpack.c.l.b16 %v2386
      %v2518 = vunpack.c.l.b16 %v2396
      %v2519 = vunpack.c.l.b16 %v2410
      %v2520 = vunpack.c.l.b16 %v2420
      %v2521 = vunpack.c.l.b16 %v2434
      %v2522 = vunpack.c.l.b16 %v2444
      %v2523 = vunpack.c.l.b16 %v2458
      %v2524 = vunpack.c.l.b16 %v2468
      %v2525 = vunpack.c.l.b16 %v2482
      %v2526 = vunpack.c.l.b16 %v2492
      %v2527 = vpack.c.b16 %v2496, %v2495
      %v2528 = vpack.c.b16 %v2498, %v2497
      %v2529 = vpack.c.b16 %v2500, %v2499
      %v2530 = vpack.c.b16 %v2502, %v2501
      %v2531 = vpack.c.b16 %v2504, %v2503
      %v2532 = vpack.c.b16 %v2506, %v2505
      %v2533 = vpack.c.b16 %v2508, %v2507
      %v2534 = vpack.c.b16 %v2510, %v2509
      %v2535 = vpack.c.b16 %v2512, %v2511
      %v2536 = vpack.c.b16 %v2514, %v2513
      %v2537 = vpack.c.b16 %v2516, %v2515
      %v2538 = vpack.c.b16 %v2518, %v2517
      %v2539 = vpack.c.b16 %v2520, %v2519
      %v2540 = vpack.c.b16 %v2522, %v2521
      %v2541 = vpack.c.b16 %v2524, %v2523
      %v2542 = vpack.c.b16 %v2526, %v2525
      %v2544 = vsel %vm739, %v2527, 0
      %v2547 = vsel %vm739, %v2528, 0
      %v2550 = vsel %vm739, %v2529, 0
      %v2553 = vsel %vm739, %v2530, 0
      %v2556 = vsel %vm739, %v2531, 0
      %v2559 = vsel %vm739, %v2532, 0
      %v2562 = vsel %vm739, %v2533, 0
      %v2565 = vsel %vm739, %v2534, 0
      %v2568 = vsel %vm739, %v2535, 0
      %v2571 = vsel %vm739, %v2536, 0
      %v2574 = vsel %vm739, %v2537, 0
      %v2577 = vsel %vm739, %v2538, 0
      %v2580 = vsel %vm739, %v2539, 0
      %v2583 = vsel %vm739, %v2540, 0
      %v2586 = vsel %vm739, %v2541, 0
      %v2589 = vsel %vm739, %v2542, 0
      %v2592 = vsel %vm788, %v2494, 0
      %2594 = vmatprep.subr.bf16.mxu0 0
      %2595 = vmatpush1.bf16.msra.mxu0 %v2592
      %2596 = vmatprep.subr.bf16.mxu0 0
      %2597 = vmatpush1.bf16.msra.mxu0 0
      %2598 = vmatprep.subr.bf16.mxu0 0
      %2599 = vmatpush1.bf16.msra.mxu0 0
      %2600 = vmatprep.subr.bf16.mxu0 0
      %2601 = vmatpush1.bf16.msra.mxu0 0
      %2602 = vmatprep.subr.bf16.mxu0 0
      %2603 = vmatpush1.bf16.msra.mxu0 0
      %2604 = vmatprep.subr.bf16.mxu0 0
      %2605 = vmatpush1.bf16.msra.mxu0 0
      %2606 = vmatprep.subr.bf16.mxu0 0
      %2607 = vmatpush1.bf16.msra.mxu0 0
      %2608 = vmatprep.subr.bf16.mxu0 0
      %2609 = vmatpush1.bf16.msra.mxu0 0
      %2610 = vmatprep.subr.bf16.mxu0 0
      %2611 = vmatpush1.bf16.msra.mxu0 0
      %2612 = vmatprep.subr.bf16.mxu0 0
      %2613 = vmatpush1.bf16.msra.mxu0 0
      %2614 = vmatprep.subr.bf16.mxu0 0
      %2615 = vmatpush1.bf16.msra.mxu0 0
      %2616 = vmatprep.subr.bf16.mxu0 0
      %2617 = vmatpush1.bf16.msra.mxu0 0
      %2618 = vmatprep.subr.bf16.mxu0 0
      %2619 = vmatpush1.bf16.msra.mxu0 0
      %2620 = vmatprep.subr.bf16.mxu0 0
      %2621 = vmatpush1.bf16.msra.mxu0 0
      %2622 = vmatprep.subr.bf16.mxu0 0
      %2623 = vmatpush1.bf16.msra.mxu0 0
      %2624 = vmatprep.subr.bf16.mxu0 0
      %2625 = vmatpush1.bf16.msra.mxu0 0
      %2626 = vmatprep.mubr.bf16.mxu0 0
      %2627 = vmatmul.mubr.bf16.gmra.mrb[0].mxu0 %v2544
      %v2628 = vpop.f32.mrb[0].mxu0
      %v2629 = vadd.f32 0.0, %v2628
      %v2630 = vpop.f32.mrb[0].mxu0
      %v2631 = vpop.f32.mrb[0].mxu0
      %v2632 = vadd.f32 0.0, %v2631
      %v2633 = vpop.f32.mrb[0].mxu0
      %2634 = vmatprep.mubr.bf16.mxu0 0
      %2635 = vmatmul.mubr.bf16.gmra.mrb[0].mxu0 %v2547
      %v2636 = vpop.f32.mrb[0].mxu0
      %v2637 = vadd.f32 0.0, %v2636
      %v2638 = vpop.f32.mrb[0].mxu0
      %v2639 = vpop.f32.mrb[0].mxu0
      %v2640 = vadd.f32 0.0, %v2639
      %v2641 = vpop.f32.mrb[0].mxu0
      %2642 = vmatprep.mubr.bf16.mxu0 0
      %2643 = vmatmul.mubr.bf16.gmra.mrb[0].mxu0 %v2550
      %v2644 = vpop.f32.mrb[0].mxu0
      %v2645 = vadd.f32 0.0, %v2644
      %v2646 = vpop.f32.mrb[0].mxu0
      %v2647 = vpop.f32.mrb[0].mxu0
      %v2648 = vadd.f32 0.0, %v2647
      %v2649 = vpop.f32.mrb[0].mxu0
      %2650 = vmatprep.mubr.bf16.mxu0 0
      %2651 = vmatmul.mubr.bf16.gmra.mrb[0].mxu0 %v2553
      %v2652 = vpop.f32.mrb[0].mxu0
      %v2653 = vadd.f32 0.0, %v2652
      %v2654 = vpop.f32.mrb[0].mxu0
      %v2655 = vpop.f32.mrb[0].mxu0
      %v2656 = vadd.f32 0.0, %v2655
      %v2657 = vpop.f32.mrb[0].mxu0
      %2658 = vmatprep.mubr.bf16.mxu0 0
      %2659 = vmatmul.mubr.bf16.gmra.mrb[0].mxu0 %v2556
      %v2660 = vpop.f32.mrb[0].mxu0
      %v2661 = vadd.f32 0.0, %v2660
      %v2662 = vpop.f32.mrb[0].mxu0
      %v2663 = vpop.f32.mrb[0].mxu0
      %v2664 = vadd.f32 0.0, %v2663
      %v2665 = vpop.f32.mrb[0].mxu0
      %2666 = vmatprep.mubr.bf16.mxu0 0
      %2667 = vmatmul.mubr.bf16.gmra.mrb[0].mxu0 %v2559
      %v2668 = vpop.f32.mrb[0].mxu0
      %v2669 = vadd.f32 0.0, %v2668
      %v2670 = vpop.f32.mrb[0].mxu0
      %v2671 = vpop.f32.mrb[0].mxu0
      %v2672 = vadd.f32 0.0, %v2671
      %v2673 = vpop.f32.mrb[0].mxu0
      %2674 = vmatprep.mubr.bf16.mxu0 0
      %2675 = vmatmul.mubr.bf16.gmra.mrb[0].mxu0 %v2562
      %v2676 = vpop.f32.mrb[0].mxu0
      %v2677 = vadd.f32 0.0, %v2676
      %v2678 = vpop.f32.mrb[0].mxu0
      %v2679 = vpop.f32.mrb[0].mxu0
      %v2680 = vadd.f32 0.0, %v2679
      %v2681 = vpop.f32.mrb[0].mxu0
      %2682 = vmatprep.mubr.bf16.mxu0 0
      %2683 = vmatmul.mubr.bf16.gmra.mrb[0].mxu0 %v2565
      %v2684 = vpop.f32.mrb[0].mxu0
      %v2685 = vadd.f32 0.0, %v2684
      %v2686 = vpop.f32.mrb[0].mxu0
      %v2687 = vpop.f32.mrb[0].mxu0
      %v2688 = vadd.f32 0.0, %v2687
      %v2689 = vpop.f32.mrb[0].mxu0
      %2690 = vmatprep.mubr.bf16.mxu0 0
      %2691 = vmatmul.mubr.bf16.gmra.mrb[0].mxu0 %v2568
      %v2692 = vpop.f32.mrb[0].mxu0
      %v2693 = vadd.f32 0.0, %v2692
      %v2694 = vpop.f32.mrb[0].mxu0
      %v2695 = vpop.f32.mrb[0].mxu0
      %v2696 = vadd.f32 0.0, %v2695
      %v2697 = vpop.f32.mrb[0].mxu0
      %2698 = vmatprep.mubr.bf16.mxu0 0
      %2699 = vmatmul.mubr.bf16.gmra.mrb[0].mxu0 %v2571
      %v2700 = vpop.f32.mrb[0].mxu0
      %v2701 = vadd.f32 0.0, %v2700
      %v2702 = vpop.f32.mrb[0].mxu0
      %v2703 = vpop.f32.mrb[0].mxu0
      %v2704 = vadd.f32 0.0, %v2703
      %v2705 = vpop.f32.mrb[0].mxu0
      %2706 = vmatprep.mubr.bf16.mxu0 0
      %2707 = vmatmul.mubr.bf16.gmra.mrb[0].mxu0 %v2574
      %v2708 = vpop.f32.mrb[0].mxu0
      %v2709 = vadd.f32 0.0, %v2708
      %v2710 = vpop.f32.mrb[0].mxu0
      %v2711 = vpop.f32.mrb[0].mxu0
      %v2712 = vadd.f32 0.0, %v2711
      %v2713 = vpop.f32.mrb[0].mxu0
      %2714 = vmatprep.mubr.bf16.mxu0 0
      %2715 = vmatmul.mubr.bf16.gmra.mrb[0].mxu0 %v2577
      %v2716 = vpop.f32.mrb[0].mxu0
      %v2717 = vadd.f32 0.0, %v2716
      %v2718 = vpop.f32.mrb[0].mxu0
      %v2719 = vpop.f32.mrb[0].mxu0
      %v2720 = vadd.f32 0.0, %v2719
      %v2721 = vpop.f32.mrb[0].mxu0
      %2722 = vmatprep.mubr.bf16.mxu0 0
      %2723 = vmatmul.mubr.bf16.gmra.mrb[0].mxu0 %v2580
      %v2724 = vpop.f32.mrb[0].mxu0
      %v2725 = vadd.f32 0.0, %v2724
      %v2726 = vpop.f32.mrb[0].mxu0
      %v2727 = vpop.f32.mrb[0].mxu0
      %v2728 = vadd.f32 0.0, %v2727
      %v2729 = vpop.f32.mrb[0].mxu0
      %2730 = vmatprep.mubr.bf16.mxu0 0
      %2731 = vmatmul.mubr.bf16.gmra.mrb[0].mxu0 %v2583
      %v2732 = vpop.f32.mrb[0].mxu0
      %v2733 = vadd.f32 0.0, %v2732
      %v2734 = vpop.f32.mrb[0].mxu0
      %v2735 = vpop.f32.mrb[0].mxu0
      %v2736 = vadd.f32 0.0, %v2735
      %v2737 = vpop.f32.mrb[0].mxu0
      %2738 = vmatprep.mubr.bf16.mxu0 0
      %2739 = vmatmul.mubr.bf16.gmra.mrb[0].mxu0 %v2586
      %v2740 = vpop.f32.mrb[0].mxu0
      %v2741 = vadd.f32 0.0, %v2740
      %v2742 = vpop.f32.mrb[0].mxu0
      %v2743 = vpop.f32.mrb[0].mxu0
      %v2744 = vadd.f32 0.0, %v2743
      %v2745 = vpop.f32.mrb[0].mxu0
      %2746 = vmatprep.mubr.bf16.mxu0 0
      %2747 = vmatmul.mubr.bf16.gmra.mrb[0].mxu0 %v2589
      %v2748 = vpop.f32.mrb[0].mxu0
      %v2749 = vadd.f32 0.0, %v2748
      %v2750 = vpop.f32.mrb[0].mxu0
      %v2751 = vpop.f32.mrb[0].mxu0
      %v2752 = vadd.f32 0.0, %v2751
      %v2753 = vpop.f32.mrb[0].mxu0
      %2754 = vdwg.mxu0
      %v2755 = vadd.f32 %v2029, %v2629
      %v2756 = vadd.f32 %v2030, %v2632
      %v2757 = vadd.f32 %v2031, %v2637
      %v2758 = vadd.f32 %v2032, %v2640
      %v2759 = vadd.f32 %v2033, %v2645
      %v2760 = vadd.f32 %v2034, %v2648
      %v2761 = vadd.f32 %v2035, %v2653
      %v2762 = vadd.f32 %v2036, %v2656
      %v2763 = vadd.f32 %v2037, %v2661
      %v2764 = vadd.f32 %v2038, %v2664
      %v2765 = vadd.f32 %v2039, %v2669
      %v2766 = vadd.f32 %v2040, %v2672
      %v2767 = vadd.f32 %v2041, %v2677
      %v2768 = vadd.f32 %v2042, %v2680
      %v2769 = vadd.f32 %v2043, %v2685
      %v2770 = vadd.f32 %v2044, %v2688
      %v2771 = vadd.f32 %v2045, %v2693
      %v2772 = vadd.f32 %v2046, %v2696
      %v2773 = vadd.f32 %v2047, %v2701
      %v2774 = vadd.f32 %v2048, %v2704
      %v2775 = vadd.f32 %v2049, %v2709
      %v2776 = vadd.f32 %v2050, %v2712
      %v2777 = vadd.f32 %v2051, %v2717
      %v2778 = vadd.f32 %v2052, %v2720
      %v2779 = vadd.f32 %v2053, %v2725
      %v2780 = vadd.f32 %v2054, %v2728
      %v2781 = vadd.f32 %v2055, %v2733
      %v2782 = vadd.f32 %v2056, %v2736
      %v2783 = vadd.f32 %v2057, %v2741
      %v2784 = vadd.f32 %v2058, %v2744
      %v2785 = vadd.f32 %v2059, %v2749
      %v2786 = vadd.f32 %v2060, %v2752
      %v2787 = vld [vmem:[%s1702] sm:$0xe]
      %v2788 = vld [vmem:[%s1702 + $0xc] sm:$0xe]
      %v2789 = vld [vmem:[%s1702 + $0x18] sm:$0xe]
      %v2790 = vld [vmem:[%s1702 + $0x24] sm:$0xe]
      %v2791 = vld [vmem:[%s1702 + $0x30] sm:$0xe]
      %v2792 = vld [vmem:[%s1702 + $0x3c] sm:$0xe]
      %v2793 = vld [vmem:[%s1702 + $0x48] sm:$0xe]
      %v2794 = vld [vmem:[%s1702 + $0x54] sm:$0xe]
      %v2795 = vld [vmem:[%s1702 + $0x60] sm:$0xe]
      %v2796 = vld [vmem:[%s1702 + $0x6c] sm:$0xe]
      %v2797 = vld [vmem:[%s1702 + $0x78] sm:$0xe]
      %v2798 = vld [vmem:[%s1702 + $0x84] sm:$0xe]
      %v2799 = vld [vmem:[%s1702 + $0x90] sm:$0xe]
      %v2800 = vld [vmem:[%s1702 + $0x9c] sm:$0xe]
      %v2801 = vld [vmem:[%s1702 + $0xa8] sm:$0xe]
      %v2802 = vld [vmem:[%s1702 + $0xb4] sm:$0xe]
      %v2851 = vrot.slane %v2787, 5
      %v2852 = vrot.slane %v2851, 4
      %v2853 = vrot.slane %v2062, 5
      %v2854 = vsel %vm1295, %v2852, %v2853
      %v2855 = vrot.slane %v2853, 4
      %v2856 = vrot.slane %v2063, 5
      %v2857 = vsel %vm1295, %v2855, %v2856
      %v2858 = vrot.slane %v2788, 5
      %v2859 = vrot.slane %v2858, 4
      %v2860 = vrot.slane %v2065, 5
      %v2861 = vsel %vm1295, %v2859, %v2860
      %v2862 = vrot.slane %v2860, 4
      %v2863 = vrot.slane %v2066, 5
      %v2864 = vsel %vm1295, %v2862, %v2863
      %v2865 = vrot.slane %v2789, 5
      %v2866 = vrot.slane %v2865, 4
      %v2867 = vrot.slane %v2068, 5
      %v2868 = vsel %vm1295, %v2866, %v2867
      %v2869 = vrot.slane %v2867, 4
      %v2870 = vrot.slane %v2069, 5
      %v2871 = vsel %vm1295, %v2869, %v2870
      %v2872 = vrot.slane %v2790, 5
      %v2873 = vrot.slane %v2872, 4
      %v2874 = vrot.slane %v2071, 5
      %v2875 = vsel %vm1295, %v2873, %v2874
      %v2876 = vrot.slane %v2874, 4
      %v2877 = vrot.slane %v2072, 5
      %v2878 = vsel %vm1295, %v2876, %v2877
      %v2879 = vrot.slane %v2791, 5
      %v2880 = vrot.slane %v2879, 4
      %v2881 = vrot.slane %v2074, 5
      %v2882 = vsel %vm1295, %v2880, %v2881
      %v2883 = vrot.slane %v2881, 4
      %v2884 = vrot.slane %v2075, 5
      %v2885 = vsel %vm1295, %v2883, %v2884
      %v2886 = vrot.slane %v2792, 5
      %v2887 = vrot.slane %v2886, 4
      %v2888 = vrot.slane %v2077, 5
      %v2889 = vsel %vm1295, %v2887, %v2888
      %v2890 = vrot.slane %v2888, 4
      %v2891 = vrot.slane %v2078, 5
      %v2892 = vsel %vm1295, %v2890, %v2891
      %v2893 = vrot.slane %v2793, 5
      %v2894 = vrot.slane %v2893, 4
      %v2895 = vrot.slane %v2080, 5
      %v2896 = vsel %vm1295, %v2894, %v2895
      %v2897 = vrot.slane %v2895, 4
      %v2898 = vrot.slane %v2081, 5
      %v2899 = vsel %vm1295, %v2897, %v2898
      %v2900 = vrot.slane %v2794, 5
      %v2901 = vrot.slane %v2900, 4
      %v2902 = vrot.slane %v2083, 5
      %v2903 = vsel %vm1295, %v2901, %v2902
      %v2904 = vrot.slane %v2902, 4
      %v2905 = vrot.slane %v2084, 5
      %v2906 = vsel %vm1295, %v2904, %v2905
      %v2907 = vrot.slane %v2795, 5
      %v2908 = vrot.slane %v2907, 4
      %v2909 = vrot.slane %v2086, 5
      %v2910 = vsel %vm1295, %v2908, %v2909
      %v2911 = vrot.slane %v2909, 4
      %v2912 = vrot.slane %v2087, 5
      %v2913 = vsel %vm1295, %v2911, %v2912
      %v2914 = vrot.slane %v2796, 5
      %v2915 = vrot.slane %v2914, 4
      %v2916 = vrot.slane %v2089, 5
      %v2917 = vsel %vm1295, %v2915, %v2916
      %v2918 = vrot.slane %v2916, 4
      %v2919 = vrot.slane %v2090, 5
      %v2920 = vsel %vm1295, %v2918, %v2919
      %v2921 = vrot.slane %v2797, 5
      %v2922 = vrot.slane %v2921, 4
      %v2923 = vrot.slane %v2092, 5
      %v2924 = vsel %vm1295, %v2922, %v2923
      %v2925 = vrot.slane %v2923, 4
      %v2926 = vrot.slane %v2093, 5
      %v2927 = vsel %vm1295, %v2925, %v2926
      %v2928 = vrot.slane %v2798, 5
      %v2929 = vrot.slane %v2928, 4
      %v2930 = vrot.slane %v2095, 5
      %v2931 = vsel %vm1295, %v2929, %v2930
      %v2932 = vrot.slane %v2930, 4
      %v2933 = vrot.slane %v2096, 5
      %v2934 = vsel %vm1295, %v2932, %v2933
      %v2935 = vrot.slane %v2799, 5
      %v2936 = vrot.slane %v2935, 4
      %v2937 = vrot.slane %v2098, 5
      %v2938 = vsel %vm1295, %v2936, %v2937
      %v2939 = vrot.slane %v2937, 4
      %v2940 = vrot.slane %v2099, 5
      %v2941 = vsel %vm1295, %v2939, %v2940
      %v2942 = vrot.slane %v2800, 5
      %v2943 = vrot.slane %v2942, 4
      %v2944 = vrot.slane %v2101, 5
      %v2945 = vsel %vm1295, %v2943, %v2944
      %v2946 = vrot.slane %v2944, 4
      %v2947 = vrot.slane %v2102, 5
      %v2948 = vsel %vm1295, %v2946, %v2947
      %v2949 = vrot.slane %v2801, 5
      %v2950 = vrot.slane %v2949, 4
      %v2951 = vrot.slane %v2104, 5
      %v2952 = vsel %vm1295, %v2950, %v2951
      %v2953 = vrot.slane %v2951, 4
      %v2954 = vrot.slane %v2105, 5
      %v2955 = vsel %vm1295, %v2953, %v2954
      %v2956 = vrot.slane %v2802, 5
      %v2957 = vrot.slane %v2956, 4
      %v2958 = vrot.slane %v2107, 5
      %v2959 = vsel %vm1295, %v2957, %v2958
      %v2960 = vrot.slane %v2958, 4
      %v2961 = vrot.slane %v2108, 5
      %v2962 = vsel %vm1295, %v2960, %v2961
      %s2963 = scalar_lea.vmem %s237, 10
      %v2964 = vld [vmem:[%s2963] sm:$0x3]
      %v2965 = vunpack.c.l.b16 %v2854
      %v2966 = vunpack.c.l.b16 %v2857
      %v2967 = vunpack.c.l.b16 %v2861
      %v2968 = vunpack.c.l.b16 %v2864
      %v2969 = vunpack.c.l.b16 %v2868
      %v2970 = vunpack.c.l.b16 %v2871
      %v2971 = vunpack.c.l.b16 %v2875
      %v2972 = vunpack.c.l.b16 %v2878
      %v2973 = vunpack.c.l.b16 %v2882
      %v2974 = vunpack.c.l.b16 %v2885
      %v2975 = vunpack.c.l.b16 %v2889
      %v2976 = vunpack.c.l.b16 %v2892
      %v2977 = vunpack.c.l.b16 %v2896
      %v2978 = vunpack.c.l.b16 %v2899
      %v2979 = vunpack.c.l.b16 %v2903
      %v2980 = vunpack.c.l.b16 %v2906
      %v2981 = vunpack.c.l.b16 %v2910
      %v2982 = vunpack.c.l.b16 %v2913
      %v2983 = vunpack.c.l.b16 %v2917
      %v2984 = vunpack.c.l.b16 %v2920
      %v2985 = vunpack.c.l.b16 %v2924
      %v2986 = vunpack.c.l.b16 %v2927
      %v2987 = vunpack.c.l.b16 %v2931
      %v2988 = vunpack.c.l.b16 %v2934
      %v2989 = vunpack.c.l.b16 %v2938
      %v2990 = vunpack.c.l.b16 %v2941
      %v2991 = vunpack.c.l.b16 %v2945
      %v2992 = vunpack.c.l.b16 %v2948
      %v2993 = vunpack.c.l.b16 %v2952
      %v2994 = vunpack.c.l.b16 %v2955
      %v2995 = vunpack.c.l.b16 %v2959
      %v2996 = vunpack.c.l.b16 %v2962
      %v2997 = vpack.c.b16 %v2966, %v2965
      %v2998 = vpack.c.b16 %v2968, %v2967
      %v2999 = vpack.c.b16 %v2970, %v2969
      %v3000 = vpack.c.b16 %v2972, %v2971
      %v3001 = vpack.c.b16 %v2974, %v2973
      %v3002 = vpack.c.b16 %v2976, %v2975
      %v3003 = vpack.c.b16 %v2978, %v2977
      %v3004 = vpack.c.b16 %v2980, %v2979
      %v3005 = vpack.c.b16 %v2982, %v2981
      %v3006 = vpack.c.b16 %v2984, %v2983
      %v3007 = vpack.c.b16 %v2986, %v2985
      %v3008 = vpack.c.b16 %v2988, %v2987
      %v3009 = vpack.c.b16 %v2990, %v2989
      %v3010 = vpack.c.b16 %v2992, %v2991
      %v3011 = vpack.c.b16 %v2994, %v2993
      %v3012 = vpack.c.b16 %v2996, %v2995
      %v3014 = vsel %vm739, %v2997, 0
      %v3017 = vsel %vm739, %v2998, 0
      %v3020 = vsel %vm739, %v2999, 0
      %v3023 = vsel %vm739, %v3000, 0
      %v3026 = vsel %vm739, %v3001, 0
      %v3029 = vsel %vm739, %v3002, 0
      %v3032 = vsel %vm739, %v3003, 0
      %v3035 = vsel %vm739, %v3004, 0
      %v3038 = vsel %vm739, %v3005, 0
      %v3041 = vsel %vm739, %v3006, 0
      %v3044 = vsel %vm739, %v3007, 0
      %v3047 = vsel %vm739, %v3008, 0
      %v3050 = vsel %vm739, %v3009, 0
      %v3053 = vsel %vm739, %v3010, 0
      %v3056 = vsel %vm739, %v3011, 0
      %v3059 = vsel %vm739, %v3012, 0
      %v3062 = vsel %vm788, %v2964, 0
      %3064 = vmatprep.subr.bf16.mxu0 0
      %3065 = vmatpush1.bf16.msra.mxu0 %v3062
      %3066 = vmatprep.subr.bf16.mxu0 0
      %3067 = vmatpush1.bf16.msra.mxu0 0
      %3068 = vmatprep.subr.bf16.mxu0 0
      %3069 = vmatpush1.bf16.msra.mxu0 0
      %3070 = vmatprep.subr.bf16.mxu0 0
      %3071 = vmatpush1.bf16.msra.mxu0 0
      %3072 = vmatprep.subr.bf16.mxu0 0
      %3073 = vmatpush1.bf16.msra.mxu0 0
      %3074 = vmatprep.subr.bf16.mxu0 0
      %3075 = vmatpush1.bf16.msra.mxu0 0
      %3076 = vmatprep.subr.bf16.mxu0 0
      %3077 = vmatpush1.bf16.msra.mxu0 0
      %3078 = vmatprep.subr.bf16.mxu0 0
      %3079 = vmatpush1.bf16.msra.mxu0 0
      %3080 = vmatprep.subr.bf16.mxu0 0
      %3081 = vmatpush1.bf16.msra.mxu0 0
      %3082 = vmatprep.subr.bf16.mxu0 0
      %3083 = vmatpush1.bf16.msra.mxu0 0
      %3084 = vmatprep.subr.bf16.mxu0 0
      %3085 = vmatpush1.bf16.msra.mxu0 0
      %3086 = vmatprep.subr.bf16.mxu0 0
      %3087 = vmatpush1.bf16.msra.mxu0 0
      %3088 = vmatprep.subr.bf16.mxu0 0
      %3089 = vmatpush1.bf16.msra.mxu0 0
      %3090 = vmatprep.subr.bf16.mxu0 0
      %3091 = vmatpush1.bf16.msra.mxu0 0
      %3092 = vmatprep.subr.bf16.mxu0 0
      %3093 = vmatpush1.bf16.msra.mxu0 0
      %3094 = vmatprep.subr.bf16.mxu0 0
      %3095 = vmatpush1.bf16.msra.mxu0 0
      %3096 = vmatprep.mubr.bf16.mxu0 0
      %3097 = vmatmul.mubr.bf16.gmra.mrb[0].mxu0 %v3014
      %v3098 = vpop.f32.mrb[0].mxu0
      %v3099 = vadd.f32 0.0, %v3098
      %v3100 = vpop.f32.mrb[0].mxu0
      %v3101 = vpop.f32.mrb[0].mxu0
      %v3102 = vadd.f32 0.0, %v3101
      %v3103 = vpop.f32.mrb[0].mxu0
      %3104 = vmatprep.mubr.bf16.mxu0 0
      %3105 = vmatmul.mubr.bf16.gmra.mrb[0].mxu0 %v3017
      %v3106 = vpop.f32.mrb[0].mxu0
      %v3107 = vadd.f32 0.0, %v3106
      %v3108 = vpop.f32.mrb[0].mxu0
      %v3109 = vpop.f32.mrb[0].mxu0
      %v3110 = vadd.f32 0.0, %v3109
      %v3111 = vpop.f32.mrb[0].mxu0
      %3112 = vmatprep.mubr.bf16.mxu0 0
      %3113 = vmatmul.mubr.bf16.gmra.mrb[0].mxu0 %v3020
      %v3114 = vpop.f32.mrb[0].mxu0
      %v3115 = vadd.f32 0.0, %v3114
      %v3116 = vpop.f32.mrb[0].mxu0
      %v3117 = vpop.f32.mrb[0].mxu0
      %v3118 = vadd.f32 0.0, %v3117
      %v3119 = vpop.f32.mrb[0].mxu0
      %3120 = vmatprep.mubr.bf16.mxu0 0
      %3121 = vmatmul.mubr.bf16.gmra.mrb[0].mxu0 %v3023
      %v3122 = vpop.f32.mrb[0].mxu0
      %v3123 = vadd.f32 0.0, %v3122
      %v3124 = vpop.f32.mrb[0].mxu0
      %v3125 = vpop.f32.mrb[0].mxu0
      %v3126 = vadd.f32 0.0, %v3125
      %v3127 = vpop.f32.mrb[0].mxu0
      %3128 = vmatprep.mubr.bf16.mxu0 0
      %3129 = vmatmul.mubr.bf16.gmra.mrb[0].mxu0 %v3026
      %v3130 = vpop.f32.mrb[0].mxu0
      %v3131 = vadd.f32 0.0, %v3130
      %v3132 = vpop.f32.mrb[0].mxu0
      %v3133 = vpop.f32.mrb[0].mxu0
      %v3134 = vadd.f32 0.0, %v3133
      %v3135 = vpop.f32.mrb[0].mxu0
      %3136 = vmatprep.mubr.bf16.mxu0 0
      %3137 = vmatmul.mubr.bf16.gmra.mrb[0].mxu0 %v3029
      %v3138 = vpop.f32.mrb[0].mxu0
      %v3139 = vadd.f32 0.0, %v3138
      %v3140 = vpop.f32.mrb[0].mxu0
      %v3141 = vpop.f32.mrb[0].mxu0
      %v3142 = vadd.f32 0.0, %v3141
      %v3143 = vpop.f32.mrb[0].mxu0
      %3144 = vmatprep.mubr.bf16.mxu0 0
      %3145 = vmatmul.mubr.bf16.gmra.mrb[0].mxu0 %v3032
      %v3146 = vpop.f32.mrb[0].mxu0
      %v3147 = vadd.f32 0.0, %v3146
      %v3148 = vpop.f32.mrb[0].mxu0
      %v3149 = vpop.f32.mrb[0].mxu0
      %v3150 = vadd.f32 0.0, %v3149
      %v3151 = vpop.f32.mrb[0].mxu0
      %3152 = vmatprep.mubr.bf16.mxu0 0
      %3153 = vmatmul.mubr.bf16.gmra.mrb[0].mxu0 %v3035
      %v3154 = vpop.f32.mrb[0].mxu0
      %v3155 = vadd.f32 0.0, %v3154
      %v3156 = vpop.f32.mrb[0].mxu0
      %v3157 = vpop.f32.mrb[0].mxu0
      %v3158 = vadd.f32 0.0, %v3157
      %v3159 = vpop.f32.mrb[0].mxu0
      %3160 = vmatprep.mubr.bf16.mxu0 0
      %3161 = vmatmul.mubr.bf16.gmra.mrb[0].mxu0 %v3038
      %v3162 = vpop.f32.mrb[0].mxu0
      %v3163 = vadd.f32 0.0, %v3162
      %v3164 = vpop.f32.mrb[0].mxu0
      %v3165 = vpop.f32.mrb[0].mxu0
      %v3166 = vadd.f32 0.0, %v3165
      %v3167 = vpop.f32.mrb[0].mxu0
      %3168 = vmatprep.mubr.bf16.mxu0 0
      %3169 = vmatmul.mubr.bf16.gmra.mrb[0].mxu0 %v3041
      %v3170 = vpop.f32.mrb[0].mxu0
      %v3171 = vadd.f32 0.0, %v3170
      %v3172 = vpop.f32.mrb[0].mxu0
      %v3173 = vpop.f32.mrb[0].mxu0
      %v3174 = vadd.f32 0.0, %v3173
      %v3175 = vpop.f32.mrb[0].mxu0
      %3176 = vmatprep.mubr.bf16.mxu0 0
      %3177 = vmatmul.mubr.bf16.gmra.mrb[0].mxu0 %v3044
      %v3178 = vpop.f32.mrb[0].mxu0
      %v3179 = vadd.f32 0.0, %v3178
      %v3180 = vpop.f32.mrb[0].mxu0
      %v3181 = vpop.f32.mrb[0].mxu0
      %v3182 = vadd.f32 0.0, %v3181
      %v3183 = vpop.f32.mrb[0].mxu0
      %3184 = vmatprep.mubr.bf16.mxu0 0
      %3185 = vmatmul.mubr.bf16.gmra.mrb[0].mxu0 %v3047
      %v3186 = vpop.f32.mrb[0].mxu0
      %v3187 = vadd.f32 0.0, %v3186
      %v3188 = vpop.f32.mrb[0].mxu0
      %v3189 = vpop.f32.mrb[0].mxu0
      %v3190 = vadd.f32 0.0, %v3189
      %v3191 = vpop.f32.mrb[0].mxu0
      %3192 = vmatprep.mubr.bf16.mxu0 0
      %3193 = vmatmul.mubr.bf16.gmra.mrb[0].mxu0 %v3050
      %v3194 = vpop.f32.mrb[0].mxu0
      %v3195 = vadd.f32 0.0, %v3194
      %v3196 = vpop.f32.mrb[0].mxu0
      %v3197 = vpop.f32.mrb[0].mxu0
      %v3198 = vadd.f32 0.0, %v3197
      %v3199 = vpop.f32.mrb[0].mxu0
      %3200 = vmatprep.mubr.bf16.mxu0 0
      %3201 = vmatmul.mubr.bf16.gmra.mrb[0].mxu0 %v3053
      %v3202 = vpop.f32.mrb[0].mxu0
      %v3203 = vadd.f32 0.0, %v3202
      %v3204 = vpop.f32.mrb[0].mxu0
      %v3205 = vpop.f32.mrb[0].mxu0
      %v3206 = vadd.f32 0.0, %v3205
      %v3207 = vpop.f32.mrb[0].mxu0
      %3208 = vmatprep.mubr.bf16.mxu0 0
      %3209 = vmatmul.mubr.bf16.gmra.mrb[0].mxu0 %v3056
      %v3210 = vpop.f32.mrb[0].mxu0
      %v3211 = vadd.f32 0.0, %v3210
      %v3212 = vpop.f32.mrb[0].mxu0
      %v3213 = vpop.f32.mrb[0].mxu0
      %v3214 = vadd.f32 0.0, %v3213
      %v3215 = vpop.f32.mrb[0].mxu0
      %3216 = vmatprep.mubr.bf16.mxu0 0
      %3217 = vmatmul.mubr.bf16.gmra.mrb[0].mxu0 %v3059
      %v3218 = vpop.f32.mrb[0].mxu0
      %v3219 = vadd.f32 0.0, %v3218
      %v3220 = vpop.f32.mrb[0].mxu0
      %v3221 = vpop.f32.mrb[0].mxu0
      %v3222 = vadd.f32 0.0, %v3221
      %v3223 = vpop.f32.mrb[0].mxu0
      %3224 = vdwg.mxu0
      %v3225 = vadd.f32 %v2755, %v3099
      %v3226 = vadd.f32 %v2756, %v3102
      %v3227 = vadd.f32 %v2757, %v3107
      %v3228 = vadd.f32 %v2758, %v3110
      %v3229 = vadd.f32 %v2759, %v3115
      %v3230 = vadd.f32 %v2760, %v3118
      %v3231 = vadd.f32 %v2761, %v3123
      %v3232 = vadd.f32 %v2762, %v3126
      %v3233 = vadd.f32 %v2763, %v3131
      %v3234 = vadd.f32 %v2764, %v3134
      %v3235 = vadd.f32 %v2765, %v3139
      %v3236 = vadd.f32 %v2766, %v3142
      %v3237 = vadd.f32 %v2767, %v3147
      %v3238 = vadd.f32 %v2768, %v3150
      %v3239 = vadd.f32 %v2769, %v3155
      %v3240 = vadd.f32 %v2770, %v3158
      %v3241 = vadd.f32 %v2771, %v3163
      %v3242 = vadd.f32 %v2772, %v3166
      %v3243 = vadd.f32 %v2773, %v3171
      %v3244 = vadd.f32 %v2774, %v3174
      %v3245 = vadd.f32 %v2775, %v3179
      %v3246 = vadd.f32 %v2776, %v3182
      %v3247 = vadd.f32 %v2777, %v3187
      %v3248 = vadd.f32 %v2778, %v3190
      %v3249 = vadd.f32 %v2779, %v3195
      %v3250 = vadd.f32 %v2780, %v3198
      %v3251 = vadd.f32 %v2781, %v3203
      %v3252 = vadd.f32 %v2782, %v3206
      %v3253 = vadd.f32 %v2783, %v3211
      %v3254 = vadd.f32 %v2784, %v3214
      %v3255 = vadd.f32 %v2785, %v3219
      %v3256 = vadd.f32 %v2786, %v3222
      %s3257 = scalar_lea.vmem %s233, 24
      %v3258 = vld [vmem:[%s3257] sm:$0xf]
      %v3259 = vld [vmem:[%s3257 + $0x4] sm:$0xf]
      %v3260 = vld [vmem:[%s3257 + $0xc] sm:$0xf]
      %v3261 = vld [vmem:[%s3257 + $0x10] sm:$0xf]
      %v3262 = vld [vmem:[%s3257 + $0x18] sm:$0xf]
      %v3263 = vld [vmem:[%s3257 + $0x1c] sm:$0xf]
      %v3264 = vld [vmem:[%s3257 + $0x24] sm:$0xf]
      %v3265 = vld [vmem:[%s3257 + $0x28] sm:$0xf]
      %v3266 = vld [vmem:[%s3257 + $0x30] sm:$0xf]
      %v3267 = vld [vmem:[%s3257 + $0x34] sm:$0xf]
      %v3268 = vld [vmem:[%s3257 + $0x3c] sm:$0xf]
      %v3269 = vld [vmem:[%s3257 + $0x40] sm:$0xf]
      %v3270 = vld [vmem:[%s3257 + $0x48] sm:$0xf]
      %v3271 = vld [vmem:[%s3257 + $0x4c] sm:$0xf]
      %v3272 = vld [vmem:[%s3257 + $0x54] sm:$0xf]
      %v3273 = vld [vmem:[%s3257 + $0x58] sm:$0xf]
      %v3274 = vld [vmem:[%s3257 + $0x60] sm:$0xf]
      %v3275 = vld [vmem:[%s3257 + $0x64] sm:$0xf]
      %v3276 = vld [vmem:[%s3257 + $0x6c] sm:$0xf]
      %v3277 = vld [vmem:[%s3257 + $0x70] sm:$0xf]
      %v3278 = vld [vmem:[%s3257 + $0x78] sm:$0xf]
      %v3279 = vld [vmem:[%s3257 + $0x7c] sm:$0xf]
      %v3280 = vld [vmem:[%s3257 + $0x84] sm:$0xf]
      %v3281 = vld [vmem:[%s3257 + $0x88] sm:$0xf]
      %v3282 = vld [vmem:[%s3257 + $0x90] sm:$0xf]
      %v3283 = vld [vmem:[%s3257 + $0x94] sm:$0xf]
      %v3284 = vld [vmem:[%s3257 + $0x9c] sm:$0xf]
      %v3285 = vld [vmem:[%s3257 + $0xa0] sm:$0xf]
      %v3286 = vld [vmem:[%s3257 + $0xa8] sm:$0xf]
      %v3287 = vld [vmem:[%s3257 + $0xac] sm:$0xf]
      %v3288 = vld [vmem:[%s3257 + $0xb4] sm:$0xf]
      %v3289 = vld [vmem:[%s3257 + $0xb8] sm:$0xf]
      %s3290 = scalar_lea.vmem %s237, 12
      %v3291 = vld [vmem:[%s3290] sm:$0x3]
      %v3324 = vunpack.c.l.b16 %v3258
      %v3325 = vunpack.c.l.b16 %v3259
      %v3326 = vunpack.c.l.b16 %v3260
      %v3327 = vunpack.c.l.b16 %v3261
      %v3328 = vunpack.c.l.b16 %v3262
      %v3329 = vunpack.c.l.b16 %v3263
      %v3330 = vunpack.c.l.b16 %v3264
      %v3331 = vunpack.c.l.b16 %v3265
      %v3332 = vunpack.c.l.b16 %v3266
      %v3333 = vunpack.c.l.b16 %v3267
      %v3334 = vunpack.c.l.b16 %v3268
      %v3335 = vunpack.c.l.b16 %v3269
      %v3336 = vunpack.c.l.b16 %v3270
      %v3337 = vunpack.c.l.b16 %v3271
      %v3338 = vunpack.c.l.b16 %v3272
      %v3339 = vunpack.c.l.b16 %v3273
      %v3340 = vunpack.c.l.b16 %v3274
      %v3341 = vunpack.c.l.b16 %v3275
      %v3342 = vunpack.c.l.b16 %v3276
      %v3343 = vunpack.c.l.b16 %v3277
      %v3344 = vunpack.c.l.b16 %v3278
      %v3345 = vunpack.c.l.b16 %v3279
      %v3346 = vunpack.c.l.b16 %v3280
      %v3347 = vunpack.c.l.b16 %v3281
      %v3348 = vunpack.c.l.b16 %v3282
      %v3349 = vunpack.c.l.b16 %v3283
      %v3350 = vunpack.c.l.b16 %v3284
      %v3351 = vunpack.c.l.b16 %v3285
      %v3352 = vunpack.c.l.b16 %v3286
      %v3353 = vunpack.c.l.b16 %v3287
      %v3354 = vunpack.c.l.b16 %v3288
      %v3355 = vunpack.c.l.b16 %v3289
      %v3356 = vpack.c.b16 %v3325, %v3324
      %v3357 = vpack.c.b16 %v3327, %v3326
      %v3358 = vpack.c.b16 %v3329, %v3328
      %v3359 = vpack.c.b16 %v3331, %v3330
      %v3360 = vpack.c.b16 %v3333, %v3332
      %v3361 = vpack.c.b16 %v3335, %v3334
      %v3362 = vpack.c.b16 %v3337, %v3336
      %v3363 = vpack.c.b16 %v3339, %v3338
      %v3364 = vpack.c.b16 %v3341, %v3340
      %v3365 = vpack.c.b16 %v3343, %v3342
      %v3366 = vpack.c.b16 %v3345, %v3344
      %v3367 = vpack.c.b16 %v3347, %v3346
      %v3368 = vpack.c.b16 %v3349, %v3348
      %v3369 = vpack.c.b16 %v3351, %v3350
      %v3370 = vpack.c.b16 %v3353, %v3352
      %v3371 = vpack.c.b16 %v3355, %v3354
      %v3373 = vsel %vm739, %v3356, 0
      %v3376 = vsel %vm739, %v3357, 0
      %v3379 = vsel %vm739, %v3358, 0
      %v3382 = vsel %vm739, %v3359, 0
      %v3385 = vsel %vm739, %v3360, 0
      %v3388 = vsel %vm739, %v3361, 0
      %v3391 = vsel %vm739, %v3362, 0
      %v3394 = vsel %vm739, %v3363, 0
      %v3397 = vsel %vm739, %v3364, 0
      %v3400 = vsel %vm739, %v3365, 0
      %v3403 = vsel %vm739, %v3366, 0
      %v3406 = vsel %vm739, %v3367, 0
      %v3409 = vsel %vm739, %v3368, 0
      %v3412 = vsel %vm739, %v3369, 0
      %v3415 = vsel %vm739, %v3370, 0
      %v3418 = vsel %vm739, %v3371, 0
      %v3421 = vsel %vm788, %v3291, 0
      %3423 = vmatprep.subr.bf16.mxu0 0
      %3424 = vmatpush1.bf16.msra.mxu0 %v3421
      %3425 = vmatprep.subr.bf16.mxu0 0
      %3426 = vmatpush1.bf16.msra.mxu0 0
      %3427 = vmatprep.subr.bf16.mxu0 0
      %3428 = vmatpush1.bf16.msra.mxu0 0
      %3429 = vmatprep.subr.bf16.mxu0 0
      %3430 = vmatpush1.bf16.msra.mxu0 0
      %3431 = vmatprep.subr.bf16.mxu0 0
      %3432 = vmatpush1.bf16.msra.mxu0 0
      %3433 = vmatprep.subr.bf16.mxu0 0
      %3434 = vmatpush1.bf16.msra.mxu0 0
      %3435 = vmatprep.subr.bf16.mxu0 0
      %3436 = vmatpush1.bf16.msra.mxu0 0
      %3437 = vmatprep.subr.bf16.mxu0 0
      %3438 = vmatpush1.bf16.msra.mxu0 0
      %3439 = vmatprep.subr.bf16.mxu0 0
      %3440 = vmatpush1.bf16.msra.mxu0 0
      %3441 = vmatprep.subr.bf16.mxu0 0
      %3442 = vmatpush1.bf16.msra.mxu0 0
      %3443 = vmatprep.subr.bf16.mxu0 0
      %3444 = vmatpush1.bf16.msra.mxu0 0
      %3445 = vmatprep.subr.bf16.mxu0 0
      %3446 = vmatpush1.bf16.msra.mxu0 0
      %3447 = vmatprep.subr.bf16.mxu0 0
      %3448 = vmatpush1.bf16.msra.mxu0 0
      %3449 = vmatprep.subr.bf16.mxu0 0
      %3450 = vmatpush1.bf16.msra.mxu0 0
      %3451 = vmatprep.subr.bf16.mxu0 0
      %3452 = vmatpush1.bf16.msra.mxu0 0
      %3453 = vmatprep.subr.bf16.mxu0 0
      %3454 = vmatpush1.bf16.msra.mxu0 0
      %3455 = vmatprep.mubr.bf16.mxu0 0
      %3456 = vmatmul.mubr.bf16.gmra.mrb[0].mxu0 %v3373
      %v3457 = vpop.f32.mrb[0].mxu0
      %v3458 = vadd.f32 0.0, %v3457
      %v3459 = vpop.f32.mrb[0].mxu0
      %v3460 = vpop.f32.mrb[0].mxu0
      %v3461 = vadd.f32 0.0, %v3460
      %v3462 = vpop.f32.mrb[0].mxu0
      %3463 = vmatprep.mubr.bf16.mxu0 0
      %3464 = vmatmul.mubr.bf16.gmra.mrb[0].mxu0 %v3376
      %v3465 = vpop.f32.mrb[0].mxu0
      %v3466 = vadd.f32 0.0, %v3465
      %v3467 = vpop.f32.mrb[0].mxu0
      %v3468 = vpop.f32.mrb[0].mxu0
      %v3469 = vadd.f32 0.0, %v3468
      %v3470 = vpop.f32.mrb[0].mxu0
      %3471 = vmatprep.mubr.bf16.mxu0 0
      %3472 = vmatmul.mubr.bf16.gmra.mrb[0].mxu0 %v3379
      %v3473 = vpop.f32.mrb[0].mxu0
      %v3474 = vadd.f32 0.0, %v3473
      %v3475 = vpop.f32.mrb[0].mxu0
      %v3476 = vpop.f32.mrb[0].mxu0
      %v3477 = vadd.f32 0.0, %v3476
      %v3478 = vpop.f32.mrb[0].mxu0
      %3479 = vmatprep.mubr.bf16.mxu0 0
      %3480 = vmatmul.mubr.bf16.gmra.mrb[0].mxu0 %v3382
      %v3481 = vpop.f32.mrb[0].mxu0
      %v3482 = vadd.f32 0.0, %v3481
      %v3483 = vpop.f32.mrb[0].mxu0
      %v3484 = vpop.f32.mrb[0].mxu0
      %v3485 = vadd.f32 0.0, %v3484
      %v3486 = vpop.f32.mrb[0].mxu0
      %3487 = vmatprep.mubr.bf16.mxu0 0
      %3488 = vmatmul.mubr.bf16.gmra.mrb[0].mxu0 %v3385
      %v3489 = vpop.f32.mrb[0].mxu0
      %v3490 = vadd.f32 0.0, %v3489
      %v3491 = vpop.f32.mrb[0].mxu0
      %v3492 = vpop.f32.mrb[0].mxu0
      %v3493 = vadd.f32 0.0, %v3492
      %v3494 = vpop.f32.mrb[0].mxu0
      %3495 = vmatprep.mubr.bf16.mxu0 0
      %3496 = vmatmul.mubr.bf16.gmra.mrb[0].mxu0 %v3388
      %v3497 = vpop.f32.mrb[0].mxu0
      %v3498 = vadd.f32 0.0, %v3497
      %v3499 = vpop.f32.mrb[0].mxu0
      %v3500 = vpop.f32.mrb[0].mxu0
      %v3501 = vadd.f32 0.0, %v3500
      %v3502 = vpop.f32.mrb[0].mxu0
      %3503 = vmatprep.mubr.bf16.mxu0 0
      %3504 = vmatmul.mubr.bf16.gmra.mrb[0].mxu0 %v3391
      %v3505 = vpop.f32.mrb[0].mxu0
      %v3506 = vadd.f32 0.0, %v3505
      %v3507 = vpop.f32.mrb[0].mxu0
      %v3508 = vpop.f32.mrb[0].mxu0
      %v3509 = vadd.f32 0.0, %v3508
      %v3510 = vpop.f32.mrb[0].mxu0
      %3511 = vmatprep.mubr.bf16.mxu0 0
      %3512 = vmatmul.mubr.bf16.gmra.mrb[0].mxu0 %v3394
      %v3513 = vpop.f32.mrb[0].mxu0
      %v3514 = vadd.f32 0.0, %v3513
      %v3515 = vpop.f32.mrb[0].mxu0
      %v3516 = vpop.f32.mrb[0].mxu0
      %v3517 = vadd.f32 0.0, %v3516
      %v3518 = vpop.f32.mrb[0].mxu0
      %3519 = vmatprep.mubr.bf16.mxu0 0
      %3520 = vmatmul.mubr.bf16.gmra.mrb[0].mxu0 %v3397
      %v3521 = vpop.f32.mrb[0].mxu0
      %v3522 = vadd.f32 0.0, %v3521
      %v3523 = vpop.f32.mrb[0].mxu0
      %v3524 = vpop.f32.mrb[0].mxu0
      %v3525 = vadd.f32 0.0, %v3524
      %v3526 = vpop.f32.mrb[0].mxu0
      %3527 = vmatprep.mubr.bf16.mxu0 0
      %3528 = vmatmul.mubr.bf16.gmra.mrb[0].mxu0 %v3400
      %v3529 = vpop.f32.mrb[0].mxu0
      %v3530 = vadd.f32 0.0, %v3529
      %v3531 = vpop.f32.mrb[0].mxu0
      %v3532 = vpop.f32.mrb[0].mxu0
      %v3533 = vadd.f32 0.0, %v3532
      %v3534 = vpop.f32.mrb[0].mxu0
      %3535 = vmatprep.mubr.bf16.mxu0 0
      %3536 = vmatmul.mubr.bf16.gmra.mrb[0].mxu0 %v3403
      %v3537 = vpop.f32.mrb[0].mxu0
      %v3538 = vadd.f32 0.0, %v3537
      %v3539 = vpop.f32.mrb[0].mxu0
      %v3540 = vpop.f32.mrb[0].mxu0
      %v3541 = vadd.f32 0.0, %v3540
      %v3542 = vpop.f32.mrb[0].mxu0
      %3543 = vmatprep.mubr.bf16.mxu0 0
      %3544 = vmatmul.mubr.bf16.gmra.mrb[0].mxu0 %v3406
      %v3545 = vpop.f32.mrb[0].mxu0
      %v3546 = vadd.f32 0.0, %v3545
      %v3547 = vpop.f32.mrb[0].mxu0
      %v3548 = vpop.f32.mrb[0].mxu0
      %v3549 = vadd.f32 0.0, %v3548
      %v3550 = vpop.f32.mrb[0].mxu0
      %3551 = vmatprep.mubr.bf16.mxu0 0
      %3552 = vmatmul.mubr.bf16.gmra.mrb[0].mxu0 %v3409
      %v3553 = vpop.f32.mrb[0].mxu0
      %v3554 = vadd.f32 0.0, %v3553
      %v3555 = vpop.f32.mrb[0].mxu0
      %v3556 = vpop.f32.mrb[0].mxu0
      %v3557 = vadd.f32 0.0, %v3556
      %v3558 = vpop.f32.mrb[0].mxu0
      %3559 = vmatprep.mubr.bf16.mxu0 0
      %3560 = vmatmul.mubr.bf16.gmra.mrb[0].mxu0 %v3412
      %v3561 = vpop.f32.mrb[0].mxu0
      %v3562 = vadd.f32 0.0, %v3561
      %v3563 = vpop.f32.mrb[0].mxu0
      %v3564 = vpop.f32.mrb[0].mxu0
      %v3565 = vadd.f32 0.0, %v3564
      %v3566 = vpop.f32.mrb[0].mxu0
      %3567 = vmatprep.mubr.bf16.mxu0 0
      %3568 = vmatmul.mubr.bf16.gmra.mrb[0].mxu0 %v3415
      %v3569 = vpop.f32.mrb[0].mxu0
      %v3570 = vadd.f32 0.0, %v3569
      %v3571 = vpop.f32.mrb[0].mxu0
      %v3572 = vpop.f32.mrb[0].mxu0
      %v3573 = vadd.f32 0.0, %v3572
      %v3574 = vpop.f32.mrb[0].mxu0
      %3575 = vmatprep.mubr.bf16.mxu0 0
      %3576 = vmatmul.mubr.bf16.gmra.mrb[0].mxu0 %v3418
      %v3577 = vpop.f32.mrb[0].mxu0
      %v3578 = vadd.f32 0.0, %v3577
      %v3579 = vpop.f32.mrb[0].mxu0
      %v3580 = vpop.f32.mrb[0].mxu0
      %v3581 = vadd.f32 0.0, %v3580
      %v3582 = vpop.f32.mrb[0].mxu0
      %3583 = vdwg.mxu0
      %v3584 = vadd.f32 %v3225, %v3458
      %v3585 = vadd.f32 %v3226, %v3461
      %v3586 = vadd.f32 %v3227, %v3466
      %v3587 = vadd.f32 %v3228, %v3469
      %v3588 = vadd.f32 %v3229, %v3474
      %v3589 = vadd.f32 %v3230, %v3477
      %v3590 = vadd.f32 %v3231, %v3482
      %v3591 = vadd.f32 %v3232, %v3485
      %v3592 = vadd.f32 %v3233, %v3490
      %v3593 = vadd.f32 %v3234, %v3493
      %v3594 = vadd.f32 %v3235, %v3498
      %v3595 = vadd.f32 %v3236, %v3501
      %v3596 = vadd.f32 %v3237, %v3506
      %v3597 = vadd.f32 %v3238, %v3509
      %v3598 = vadd.f32 %v3239, %v3514
      %v3599 = vadd.f32 %v3240, %v3517
      %v3600 = vadd.f32 %v3241, %v3522
      %v3601 = vadd.f32 %v3242, %v3525
      %v3602 = vadd.f32 %v3243, %v3530
      %v3603 = vadd.f32 %v3244, %v3533
      %v3604 = vadd.f32 %v3245, %v3538
      %v3605 = vadd.f32 %v3246, %v3541
      %v3606 = vadd.f32 %v3247, %v3546
      %v3607 = vadd.f32 %v3248, %v3549
      %v3608 = vadd.f32 %v3249, %v3554
      %v3609 = vadd.f32 %v3250, %v3557
      %v3610 = vadd.f32 %v3251, %v3562
      %v3611 = vadd.f32 %v3252, %v3565
      %v3612 = vadd.f32 %v3253, %v3570
      %v3613 = vadd.f32 %v3254, %v3573
      %v3614 = vadd.f32 %v3255, %v3578
      %v3615 = vadd.f32 %v3256, %v3581
      %v3616 = vld [vmem:[%s3257] sm:$0xf]
      %v3617 = vld [vmem:[%s3257 + $0x4] sm:$0xf]
      %v3618 = vld [vmem:[%s3257 + $0x8] sm:$0x1]
      %v3619 = vld [vmem:[%s3257 + $0xc] sm:$0xf]
      %v3620 = vld [vmem:[%s3257 + $0x10] sm:$0xf]
      %v3621 = vld [vmem:[%s3257 + $0x14] sm:$0x1]
      %v3622 = vld [vmem:[%s3257 + $0x18] sm:$0xf]
      %v3623 = vld [vmem:[%s3257 + $0x1c] sm:$0xf]
      %v3624 = vld [vmem:[%s3257 + $0x20] sm:$0x1]
      %v3625 = vld [vmem:[%s3257 + $0x24] sm:$0xf]
      %v3626 = vld [vmem:[%s3257 + $0x28] sm:$0xf]
      %v3627 = vld [vmem:[%s3257 + $0x2c] sm:$0x1]
      %v3628 = vld [vmem:[%s3257 + $0x30] sm:$0xf]
      %v3629 = vld [vmem:[%s3257 + $0x34] sm:$0xf]
      %v3630 = vld [vmem:[%s3257 + $0x38] sm:$0x1]
      %v3631 = vld [vmem:[%s3257 + $0x3c] sm:$0xf]
      %v3632 = vld [vmem:[%s3257 + $0x40] sm:$0xf]
      %v3633 = vld [vmem:[%s3257 + $0x44] sm:$0x1]
      %v3634 = vld [vmem:[%s3257 + $0x48] sm:$0xf]
      %v3635 = vld [vmem:[%s3257 + $0x4c] sm:$0xf]
      %v3636 = vld [vmem:[%s3257 + $0x50] sm:$0x1]
      %v3637 = vld [vmem:[%s3257 + $0x54] sm:$0xf]
      %v3638 = vld [vmem:[%s3257 + $0x58] sm:$0xf]
      %v3639 = vld [vmem:[%s3257 + $0x5c] sm:$0x1]
      %v3640 = vld [vmem:[%s3257 + $0x60] sm:$0xf]
      %v3641 = vld [vmem:[%s3257 + $0x64] sm:$0xf]
      %v3642 = vld [vmem:[%s3257 + $0x68] sm:$0x1]
      %v3643 = vld [vmem:[%s3257 + $0x6c] sm:$0xf]
      %v3644 = vld [vmem:[%s3257 + $0x70] sm:$0xf]
      %v3645 = vld [vmem:[%s3257 + $0x74] sm:$0x1]
      %v3646 = vld [vmem:[%s3257 + $0x78] sm:$0xf]
      %v3647 = vld [vmem:[%s3257 + $0x7c] sm:$0xf]
      %v3648 = vld [vmem:[%s3257 + $0x80] sm:$0x1]
      %v3649 = vld [vmem:[%s3257 + $0x84] sm:$0xf]
      %v3650 = vld [vmem:[%s3257 + $0x88] sm:$0xf]
      %v3651 = vld [vmem:[%s3257 + $0x8c] sm:$0x1]
      %v3652 = vld [vmem:[%s3257 + $0x90] sm:$0xf]
      %v3653 = vld [vmem:[%s3257 + $0x94] sm:$0xf]
      %v3654 = vld [vmem:[%s3257 + $0x98] sm:$0x1]
      %v3655 = vld [vmem:[%s3257 + $0x9c] sm:$0xf]
      %v3656 = vld [vmem:[%s3257 + $0xa0] sm:$0xf]
      %v3657 = vld [vmem:[%s3257 + $0xa4] sm:$0x1]
      %v3658 = vld [vmem:[%s3257 + $0xa8] sm:$0xf]
      %v3659 = vld [vmem:[%s3257 + $0xac] sm:$0xf]
      %v3660 = vld [vmem:[%s3257 + $0xb0] sm:$0x1]
      %v3661 = vld [vmem:[%s3257 + $0xb4] sm:$0xf]
      %v3662 = vld [vmem:[%s3257 + $0xb8] sm:$0xf]
      %v3663 = vld [vmem:[%s3257 + $0xbc] sm:$0x1]
      %v3665 = vshrl.u32 %v3616, 16
      %v3667 = vrot.slane %v3665, 4
      %v3668 = vshll.u32 %v3616, 16
      %v3670 = vrot.slane %v3668, 5
      %v3671 = vor.u32 %v3667, %v3670
      %v3672 = vrot.slane %v3671, 4
      %v3674 = vshll.u32 %v3617, 16
      %v3676 = vrot.slane %v3674, 5
      %v3677 = vsel %vm304, %v3672, %v3676
      %v3678 = vshrl.u32 %v3617, 16
      %v3680 = vrot.slane %v3678, 4
      %v3681 = vor.u32 %v3680, %v3676
      %v3682 = vrot.slane %v3681, 4
      %v3684 = vshll.u32 %v3618, 16
      %v3686 = vrot.slane %v3684, 5
      %v3687 = vsel %vm304, %v3682, %v3686
      %v3689 = vshrl.u32 %v3619, 16
      %v3691 = vrot.slane %v3689, 4
      %v3692 = vshll.u32 %v3619, 16
      %v3694 = vrot.slane %v3692, 5
      %v3695 = vor.u32 %v3691, %v3694
      %v3696 = vrot.slane %v3695, 4
      %v3698 = vshll.u32 %v3620, 16
      %v3700 = vrot.slane %v3698, 5
      %v3701 = vsel %vm304, %v3696, %v3700
      %v3702 = vshrl.u32 %v3620, 16
      %v3704 = vrot.slane %v3702, 4
      %v3705 = vor.u32 %v3704, %v3700
      %v3706 = vrot.slane %v3705, 4
      %v3708 = vshll.u32 %v3621, 16
      %v3710 = vrot.slane %v3708, 5
      %v3711 = vsel %vm304, %v3706, %v3710
      %v3713 = vshrl.u32 %v3622, 16
      %v3715 = vrot.slane %v3713, 4
      %v3716 = vshll.u32 %v3622, 16
      %v3718 = vrot.slane %v3716, 5
      %v3719 = vor.u32 %v3715, %v3718
      %v3720 = vrot.slane %v3719, 4
      %v3722 = vshll.u32 %v3623, 16
      %v3724 = vrot.slane %v3722, 5
      %v3725 = vsel %vm304, %v3720, %v3724
      %v3726 = vshrl.u32 %v3623, 16
      %v3728 = vrot.slane %v3726, 4
      %v3729 = vor.u32 %v3728, %v3724
      %v3730 = vrot.slane %v3729, 4
      %v3732 = vshll.u32 %v3624, 16
      %v3734 = vrot.slane %v3732, 5
      %v3735 = vsel %vm304, %v3730, %v3734
      %v3737 = vshrl.u32 %v3625, 16
      %v3739 = vrot.slane %v3737, 4
      %v3740 = vshll.u32 %v3625, 16
      %v3742 = vrot.slane %v3740, 5
      %v3743 = vor.u32 %v3739, %v3742
      %v3744 = vrot.slane %v3743, 4
      %v3746 = vshll.u32 %v3626, 16
      %v3748 = vrot.slane %v3746, 5
      %v3749 = vsel %vm304, %v3744, %v3748
      %v3750 = vshrl.u32 %v3626, 16
      %v3752 = vrot.slane %v3750, 4
      %v3753 = vor.u32 %v3752, %v3748
      %v3754 = vrot.slane %v3753, 4
      %v3756 = vshll.u32 %v3627, 16
      %v3758 = vrot.slane %v3756, 5
      %v3759 = vsel %vm304, %v3754, %v3758
      %v3761 = vshrl.u32 %v3628, 16
      %v3763 = vrot.slane %v3761, 4
      %v3764 = vshll.u32 %v3628, 16
      %v3766 = vrot.slane %v3764, 5
      %v3767 = vor.u32 %v3763, %v3766
      %v3768 = vrot.slane %v3767, 4
      %v3770 = vshll.u32 %v3629, 16
      %v3772 = vrot.slane %v3770, 5
      %v3773 = vsel %vm304, %v3768, %v3772
      %v3774 = vshrl.u32 %v3629, 16
      %v3776 = vrot.slane %v3774, 4
      %v3777 = vor.u32 %v3776, %v3772
      %v3778 = vrot.slane %v3777, 4
      %v3780 = vshll.u32 %v3630, 16
      %v3782 = vrot.slane %v3780, 5
      %v3783 = vsel %vm304, %v3778, %v3782
      %v3785 = vshrl.u32 %v3631, 16
      %v3787 = vrot.slane %v3785, 4
      %v3788 = vshll.u32 %v3631, 16
      %v3790 = vrot.slane %v3788, 5
      %v3791 = vor.u32 %v3787, %v3790
      %v3792 = vrot.slane %v3791, 4
      %v3794 = vshll.u32 %v3632, 16
      %v3796 = vrot.slane %v3794, 5
      %v3797 = vsel %vm304, %v3792, %v3796
      %v3798 = vshrl.u32 %v3632, 16
      %v3800 = vrot.slane %v3798, 4
      %v3801 = vor.u32 %v3800, %v3796
      %v3802 = vrot.slane %v3801, 4
      %v3804 = vshll.u32 %v3633, 16
      %v3806 = vrot.slane %v3804, 5
      %v3807 = vsel %vm304, %v3802, %v3806
      %v3809 = vshrl.u32 %v3634, 16
      %v3811 = vrot.slane %v3809, 4
      %v3812 = vshll.u32 %v3634, 16
      %v3814 = vrot.slane %v3812, 5
      %v3815 = vor.u32 %v3811, %v3814
      %v3816 = vrot.slane %v3815, 4
      %v3818 = vshll.u32 %v3635, 16
      %v3820 = vrot.slane %v3818, 5
      %v3821 = vsel %vm304, %v3816, %v3820
      %v3822 = vshrl.u32 %v3635, 16
      %v3824 = vrot.slane %v3822, 4
      %v3825 = vor.u32 %v3824, %v3820
      %v3826 = vrot.slane %v3825, 4
      %v3828 = vshll.u32 %v3636, 16
      %v3830 = vrot.slane %v3828, 5
      %v3831 = vsel %vm304, %v3826, %v3830
      %v3833 = vshrl.u32 %v3637, 16
      %v3835 = vrot.slane %v3833, 4
      %v3836 = vshll.u32 %v3637, 16
      %v3838 = vrot.slane %v3836, 5
      %v3839 = vor.u32 %v3835, %v3838
      %v3840 = vrot.slane %v3839, 4
      %v3842 = vshll.u32 %v3638, 16
      %v3844 = vrot.slane %v3842, 5
      %v3845 = vsel %vm304, %v3840, %v3844
      %v3846 = vshrl.u32 %v3638, 16
      %v3848 = vrot.slane %v3846, 4
      %v3849 = vor.u32 %v3848, %v3844
      %v3850 = vrot.slane %v3849, 4
      %v3852 = vshll.u32 %v3639, 16
      %v3854 = vrot.slane %v3852, 5
      %v3855 = vsel %vm304, %v3850, %v3854
      %v3857 = vshrl.u32 %v3640, 16
      %v3859 = vrot.slane %v3857, 4
      %v3860 = vshll.u32 %v3640, 16
      %v3862 = vrot.slane %v3860, 5
      %v3863 = vor.u32 %v3859, %v3862
      %v3864 = vrot.slane %v3863, 4
      %v3866 = vshll.u32 %v3641, 16
      %v3868 = vrot.slane %v3866, 5
      %v3869 = vsel %vm304, %v3864, %v3868
      %v3870 = vshrl.u32 %v3641, 16
      %v3872 = vrot.slane %v3870, 4
      %v3873 = vor.u32 %v3872, %v3868
      %v3874 = vrot.slane %v3873, 4
      %v3876 = vshll.u32 %v3642, 16
      %v3878 = vrot.slane %v3876, 5
      %v3879 = vsel %vm304, %v3874, %v3878
      %v3881 = vshrl.u32 %v3643, 16
      %v3883 = vrot.slane %v3881, 4
      %v3884 = vshll.u32 %v3643, 16
      %v3886 = vrot.slane %v3884, 5
      %v3887 = vor.u32 %v3883, %v3886
      %v3888 = vrot.slane %v3887, 4
      %v3890 = vshll.u32 %v3644, 16
      %v3892 = vrot.slane %v3890, 5
      %v3893 = vsel %vm304, %v3888, %v3892
      %v3894 = vshrl.u32 %v3644, 16
      %v3896 = vrot.slane %v3894, 4
      %v3897 = vor.u32 %v3896, %v3892
      %v3898 = vrot.slane %v3897, 4
      %v3900 = vshll.u32 %v3645, 16
      %v3902 = vrot.slane %v3900, 5
      %v3903 = vsel %vm304, %v3898, %v3902
      %v3905 = vshrl.u32 %v3646, 16
      %v3907 = vrot.slane %v3905, 4
      %v3908 = vshll.u32 %v3646, 16
      %v3910 = vrot.slane %v3908, 5
      %v3911 = vor.u32 %v3907, %v3910
      %v3912 = vrot.slane %v3911, 4
      %v3914 = vshll.u32 %v3647, 16
      %v3916 = vrot.slane %v3914, 5
      %v3917 = vsel %vm304, %v3912, %v3916
      %v3918 = vshrl.u32 %v3647, 16
      %v3920 = vrot.slane %v3918, 4
      %v3921 = vor.u32 %v3920, %v3916
      %v3922 = vrot.slane %v3921, 4
      %v3924 = vshll.u32 %v3648, 16
      %v3926 = vrot.slane %v3924, 5
      %v3927 = vsel %vm304, %v3922, %v3926
      %v3929 = vshrl.u32 %v3649, 16
      %v3931 = vrot.slane %v3929, 4
      %v3932 = vshll.u32 %v3649, 16
      %v3934 = vrot.slane %v3932, 5
      %v3935 = vor.u32 %v3931, %v3934
      %v3936 = vrot.slane %v3935, 4
      %v3938 = vshll.u32 %v3650, 16
      %v3940 = vrot.slane %v3938, 5
      %v3941 = vsel %vm304, %v3936, %v3940
      %v3942 = vshrl.u32 %v3650, 16
      %v3944 = vrot.slane %v3942, 4
      %v3945 = vor.u32 %v3944, %v3940
      %v3946 = vrot.slane %v3945, 4
      %v3948 = vshll.u32 %v3651, 16
      %v3950 = vrot.slane %v3948, 5
      %v3951 = vsel %vm304, %v3946, %v3950
      %v3953 = vshrl.u32 %v3652, 16
      %v3955 = vrot.slane %v3953, 4
      %v3956 = vshll.u32 %v3652, 16
      %v3958 = vrot.slane %v3956, 5
      %v3959 = vor.u32 %v3955, %v3958
      %v3960 = vrot.slane %v3959, 4
      %v3962 = vshll.u32 %v3653, 16
      %v3964 = vrot.slane %v3962, 5
      %v3965 = vsel %vm304, %v3960, %v3964
      %v3966 = vshrl.u32 %v3653, 16
      %v3968 = vrot.slane %v3966, 4
      %v3969 = vor.u32 %v3968, %v3964
      %v3970 = vrot.slane %v3969, 4
      %v3972 = vshll.u32 %v3654, 16
      %v3974 = vrot.slane %v3972, 5
      %v3975 = vsel %vm304, %v3970, %v3974
      %v3977 = vshrl.u32 %v3655, 16
      %v3979 = vrot.slane %v3977, 4
      %v3980 = vshll.u32 %v3655, 16
      %v3982 = vrot.slane %v3980, 5
      %v3983 = vor.u32 %v3979, %v3982
      %v3984 = vrot.slane %v3983, 4
      %v3986 = vshll.u32 %v3656, 16
      %v3988 = vrot.slane %v3986, 5
      %v3989 = vsel %vm304, %v3984, %v3988
      %v3990 = vshrl.u32 %v3656, 16
      %v3992 = vrot.slane %v3990, 4
      %v3993 = vor.u32 %v3992, %v3988
      %v3994 = vrot.slane %v3993, 4
      %v3996 = vshll.u32 %v3657, 16
      %v3998 = vrot.slane %v3996, 5
      %v3999 = vsel %vm304, %v3994, %v3998
      %v4001 = vshrl.u32 %v3658, 16
      %v4003 = vrot.slane %v4001, 4
      %v4004 = vshll.u32 %v3658, 16
      %v4006 = vrot.slane %v4004, 5
      %v4007 = vor.u32 %v4003, %v4006
      %v4008 = vrot.slane %v4007, 4
      %v4010 = vshll.u32 %v3659, 16
      %v4012 = vrot.slane %v4010, 5
      %v4013 = vsel %vm304, %v4008, %v4012
      %v4014 = vshrl.u32 %v3659, 16
      %v4016 = vrot.slane %v4014, 4
      %v4017 = vor.u32 %v4016, %v4012
      %v4018 = vrot.slane %v4017, 4
      %v4020 = vshll.u32 %v3660, 16
      %v4022 = vrot.slane %v4020, 5
      %v4023 = vsel %vm304, %v4018, %v4022
      %v4025 = vshrl.u32 %v3661, 16
      %v4027 = vrot.slane %v4025, 4
      %v4028 = vshll.u32 %v3661, 16
      %v4030 = vrot.slane %v4028, 5
      %v4031 = vor.u32 %v4027, %v4030
      %v4032 = vrot.slane %v4031, 4
      %v4034 = vshll.u32 %v3662, 16
      %v4036 = vrot.slane %v4034, 5
      %v4037 = vsel %vm304, %v4032, %v4036
      %v4038 = vshrl.u32 %v3662, 16
      %v4040 = vrot.slane %v4038, 4
      %v4041 = vor.u32 %v4040, %v4036
      %v4042 = vrot.slane %v4041, 4
      %v4044 = vshll.u32 %v3663, 16
      %v4046 = vrot.slane %v4044, 5
      %v4047 = vsel %vm304, %v4042, %v4046
      %s4048 = scalar_lea.vmem %s237, 14
      %v4049 = vld [vmem:[%s4048] sm:$0x3]
      %v4050 = vunpack.c.l.b16 %v3677
      %v4051 = vunpack.c.l.b16 %v3687
      %v4052 = vunpack.c.l.b16 %v3701
      %v4053 = vunpack.c.l.b16 %v3711
      %v4054 = vunpack.c.l.b16 %v3725
      %v4055 = vunpack.c.l.b16 %v3735
      %v4056 = vunpack.c.l.b16 %v3749
      %v4057 = vunpack.c.l.b16 %v3759
      %v4058 = vunpack.c.l.b16 %v3773
      %v4059 = vunpack.c.l.b16 %v3783
      %v4060 = vunpack.c.l.b16 %v3797
      %v4061 = vunpack.c.l.b16 %v3807
      %v4062 = vunpack.c.l.b16 %v3821
      %v4063 = vunpack.c.l.b16 %v3831
      %v4064 = vunpack.c.l.b16 %v3845
      %v4065 = vunpack.c.l.b16 %v3855
      %v4066 = vunpack.c.l.b16 %v3869
      %v4067 = vunpack.c.l.b16 %v3879
      %v4068 = vunpack.c.l.b16 %v3893
      %v4069 = vunpack.c.l.b16 %v3903
      %v4070 = vunpack.c.l.b16 %v3917
      %v4071 = vunpack.c.l.b16 %v3927
      %v4072 = vunpack.c.l.b16 %v3941
      %v4073 = vunpack.c.l.b16 %v3951
      %v4074 = vunpack.c.l.b16 %v3965
      %v4075 = vunpack.c.l.b16 %v3975
      %v4076 = vunpack.c.l.b16 %v3989
      %v4077 = vunpack.c.l.b16 %v3999
      %v4078 = vunpack.c.l.b16 %v4013
      %v4079 = vunpack.c.l.b16 %v4023
      %v4080 = vunpack.c.l.b16 %v4037
      %v4081 = vunpack.c.l.b16 %v4047
      %v4082 = vpack.c.b16 %v4051, %v4050
      %v4083 = vpack.c.b16 %v4053, %v4052
      %v4084 = vpack.c.b16 %v4055, %v4054
      %v4085 = vpack.c.b16 %v4057, %v4056
      %v4086 = vpack.c.b16 %v4059, %v4058
      %v4087 = vpack.c.b16 %v4061, %v4060
      %v4088 = vpack.c.b16 %v4063, %v4062
      %v4089 = vpack.c.b16 %v4065, %v4064
      %v4090 = vpack.c.b16 %v4067, %v4066
      %v4091 = vpack.c.b16 %v4069, %v4068
      %v4092 = vpack.c.b16 %v4071, %v4070
      %v4093 = vpack.c.b16 %v4073, %v4072
      %v4094 = vpack.c.b16 %v4075, %v4074
      %v4095 = vpack.c.b16 %v4077, %v4076
      %v4096 = vpack.c.b16 %v4079, %v4078
      %v4097 = vpack.c.b16 %v4081, %v4080
      %v4099 = vsel %vm739, %v4082, 0
      %v4102 = vsel %vm739, %v4083, 0
      %v4105 = vsel %vm739, %v4084, 0
      %v4108 = vsel %vm739, %v4085, 0
      %v4111 = vsel %vm739, %v4086, 0
      %v4114 = vsel %vm739, %v4087, 0
      %v4117 = vsel %vm739, %v4088, 0
      %v4120 = vsel %vm739, %v4089, 0
      %v4123 = vsel %vm739, %v4090, 0
      %v4126 = vsel %vm739, %v4091, 0
      %v4129 = vsel %vm739, %v4092, 0
      %v4132 = vsel %vm739, %v4093, 0
      %v4135 = vsel %vm739, %v4094, 0
      %v4138 = vsel %vm739, %v4095, 0
      %v4141 = vsel %vm739, %v4096, 0
      %v4144 = vsel %vm739, %v4097, 0
      %v4147 = vsel %vm788, %v4049, 0
      %4149 = vmatprep.subr.bf16.mxu0 0
      %4150 = vmatpush1.bf16.msra.mxu0 %v4147
      %4151 = vmatprep.subr.bf16.mxu0 0
      %4152 = vmatpush1.bf16.msra.mxu0 0
      %4153 = vmatprep.subr.bf16.mxu0 0
      %4154 = vmatpush1.bf16.msra.mxu0 0
      %4155 = vmatprep.subr.bf16.mxu0 0
      %4156 = vmatpush1.bf16.msra.mxu0 0
      %4157 = vmatprep.subr.bf16.mxu0 0
      %4158 = vmatpush1.bf16.msra.mxu0 0
      %4159 = vmatprep.subr.bf16.mxu0 0
      %4160 = vmatpush1.bf16.msra.mxu0 0
      %4161 = vmatprep.subr.bf16.mxu0 0
      %4162 = vmatpush1.bf16.msra.mxu0 0
      %4163 = vmatprep.subr.bf16.mxu0 0
      %4164 = vmatpush1.bf16.msra.mxu0 0
      %4165 = vmatprep.subr.bf16.mxu0 0
      %4166 = vmatpush1.bf16.msra.mxu0 0
      %4167 = vmatprep.subr.bf16.mxu0 0
      %4168 = vmatpush1.bf16.msra.mxu0 0
      %4169 = vmatprep.subr.bf16.mxu0 0
      %4170 = vmatpush1.bf16.msra.mxu0 0
      %4171 = vmatprep.subr.bf16.mxu0 0
      %4172 = vmatpush1.bf16.msra.mxu0 0
      %4173 = vmatprep.subr.bf16.mxu0 0
      %4174 = vmatpush1.bf16.msra.mxu0 0
      %4175 = vmatprep.subr.bf16.mxu0 0
      %4176 = vmatpush1.bf16.msra.mxu0 0
      %4177 = vmatprep.subr.bf16.mxu0 0
      %4178 = vmatpush1.bf16.msra.mxu0 0
      %4179 = vmatprep.subr.bf16.mxu0 0
      %4180 = vmatpush1.bf16.msra.mxu0 0
      %4181 = vmatprep.mubr.bf16.mxu0 0
      %4182 = vmatmul.mubr.bf16.gmra.mrb[0].mxu0 %v4099
      %v4183 = vpop.f32.mrb[0].mxu0
      %v4184 = vadd.f32 0.0, %v4183
      %v4185 = vpop.f32.mrb[0].mxu0
      %v4186 = vpop.f32.mrb[0].mxu0
      %v4187 = vadd.f32 0.0, %v4186
      %v4188 = vpop.f32.mrb[0].mxu0
      %4189 = vmatprep.mubr.bf16.mxu0 0
      %4190 = vmatmul.mubr.bf16.gmra.mrb[0].mxu0 %v4102
      %v4191 = vpop.f32.mrb[0].mxu0
      %v4192 = vadd.f32 0.0, %v4191
      %v4193 = vpop.f32.mrb[0].mxu0
      %v4194 = vpop.f32.mrb[0].mxu0
      %v4195 = vadd.f32 0.0, %v4194
      %v4196 = vpop.f32.mrb[0].mxu0
      %4197 = vmatprep.mubr.bf16.mxu0 0
      %4198 = vmatmul.mubr.bf16.gmra.mrb[0].mxu0 %v4105
      %v4199 = vpop.f32.mrb[0].mxu0
      %v4200 = vadd.f32 0.0, %v4199
      %v4201 = vpop.f32.mrb[0].mxu0
      %v4202 = vpop.f32.mrb[0].mxu0
      %v4203 = vadd.f32 0.0, %v4202
      %v4204 = vpop.f32.mrb[0].mxu0
      %4205 = vmatprep.mubr.bf16.mxu0 0
      %4206 = vmatmul.mubr.bf16.gmra.mrb[0].mxu0 %v4108
      %v4207 = vpop.f32.mrb[0].mxu0
      %v4208 = vadd.f32 0.0, %v4207
      %v4209 = vpop.f32.mrb[0].mxu0
      %v4210 = vpop.f32.mrb[0].mxu0
      %v4211 = vadd.f32 0.0, %v4210
      %v4212 = vpop.f32.mrb[0].mxu0
      %4213 = vmatprep.mubr.bf16.mxu0 0
      %4214 = vmatmul.mubr.bf16.gmra.mrb[0].mxu0 %v4111
      %v4215 = vpop.f32.mrb[0].mxu0
      %v4216 = vadd.f32 0.0, %v4215
      %v4217 = vpop.f32.mrb[0].mxu0
      %v4218 = vpop.f32.mrb[0].mxu0
      %v4219 = vadd.f32 0.0, %v4218
      %v4220 = vpop.f32.mrb[0].mxu0
      %4221 = vmatprep.mubr.bf16.mxu0 0
      %4222 = vmatmul.mubr.bf16.gmra.mrb[0].mxu0 %v4114
      %v4223 = vpop.f32.mrb[0].mxu0
      %v4224 = vadd.f32 0.0, %v4223
      %v4225 = vpop.f32.mrb[0].mxu0
      %v4226 = vpop.f32.mrb[0].mxu0
      %v4227 = vadd.f32 0.0, %v4226
      %v4228 = vpop.f32.mrb[0].mxu0
      %4229 = vmatprep.mubr.bf16.mxu0 0
      %4230 = vmatmul.mubr.bf16.gmra.mrb[0].mxu0 %v4117
      %v4231 = vpop.f32.mrb[0].mxu0
      %v4232 = vadd.f32 0.0, %v4231
      %v4233 = vpop.f32.mrb[0].mxu0
      %v4234 = vpop.f32.mrb[0].mxu0
      %v4235 = vadd.f32 0.0, %v4234
      %v4236 = vpop.f32.mrb[0].mxu0
      %4237 = vmatprep.mubr.bf16.mxu0 0
      %4238 = vmatmul.mubr.bf16.gmra.mrb[0].mxu0 %v4120
      %v4239 = vpop.f32.mrb[0].mxu0
      %v4240 = vadd.f32 0.0, %v4239
      %v4241 = vpop.f32.mrb[0].mxu0
      %v4242 = vpop.f32.mrb[0].mxu0
      %v4243 = vadd.f32 0.0, %v4242
      %v4244 = vpop.f32.mrb[0].mxu0
      %4245 = vmatprep.mubr.bf16.mxu0 0
      %4246 = vmatmul.mubr.bf16.gmra.mrb[0].mxu0 %v4123
      %v4247 = vpop.f32.mrb[0].mxu0
      %v4248 = vadd.f32 0.0, %v4247
      %v4249 = vpop.f32.mrb[0].mxu0
      %v4250 = vpop.f32.mrb[0].mxu0
      %v4251 = vadd.f32 0.0, %v4250
      %v4252 = vpop.f32.mrb[0].mxu0
      %4253 = vmatprep.mubr.bf16.mxu0 0
      %4254 = vmatmul.mubr.bf16.gmra.mrb[0].mxu0 %v4126
      %v4255 = vpop.f32.mrb[0].mxu0
      %v4256 = vadd.f32 0.0, %v4255
      %v4257 = vpop.f32.mrb[0].mxu0
      %v4258 = vpop.f32.mrb[0].mxu0
      %v4259 = vadd.f32 0.0, %v4258
      %v4260 = vpop.f32.mrb[0].mxu0
      %4261 = vmatprep.mubr.bf16.mxu0 0
      %4262 = vmatmul.mubr.bf16.gmra.mrb[0].mxu0 %v4129
      %v4263 = vpop.f32.mrb[0].mxu0
      %v4264 = vadd.f32 0.0, %v4263
      %v4265 = vpop.f32.mrb[0].mxu0
      %v4266 = vpop.f32.mrb[0].mxu0
      %v4267 = vadd.f32 0.0, %v4266
      %v4268 = vpop.f32.mrb[0].mxu0
      %4269 = vmatprep.mubr.bf16.mxu0 0
      %4270 = vmatmul.mubr.bf16.gmra.mrb[0].mxu0 %v4132
      %v4271 = vpop.f32.mrb[0].mxu0
      %v4272 = vadd.f32 0.0, %v4271
      %v4273 = vpop.f32.mrb[0].mxu0
      %v4274 = vpop.f32.mrb[0].mxu0
      %v4275 = vadd.f32 0.0, %v4274
      %v4276 = vpop.f32.mrb[0].mxu0
      %4277 = vmatprep.mubr.bf16.mxu0 0
      %4278 = vmatmul.mubr.bf16.gmra.mrb[0].mxu0 %v4135
      %v4279 = vpop.f32.mrb[0].mxu0
      %v4280 = vadd.f32 0.0, %v4279
      %v4281 = vpop.f32.mrb[0].mxu0
      %v4282 = vpop.f32.mrb[0].mxu0
      %v4283 = vadd.f32 0.0, %v4282
      %v4284 = vpop.f32.mrb[0].mxu0
      %4285 = vmatprep.mubr.bf16.mxu0 0
      %4286 = vmatmul.mubr.bf16.gmra.mrb[0].mxu0 %v4138
      %v4287 = vpop.f32.mrb[0].mxu0
      %v4288 = vadd.f32 0.0, %v4287
      %v4289 = vpop.f32.mrb[0].mxu0
      %v4290 = vpop.f32.mrb[0].mxu0
      %v4291 = vadd.f32 0.0, %v4290
      %v4292 = vpop.f32.mrb[0].mxu0
      %4293 = vmatprep.mubr.bf16.mxu0 0
      %4294 = vmatmul.mubr.bf16.gmra.mrb[0].mxu0 %v4141
      %v4295 = vpop.f32.mrb[0].mxu0
      %v4296 = vadd.f32 0.0, %v4295
      %v4297 = vpop.f32.mrb[0].mxu0
      %v4298 = vpop.f32.mrb[0].mxu0
      %v4299 = vadd.f32 0.0, %v4298
      %v4300 = vpop.f32.mrb[0].mxu0
      %4301 = vmatprep.mubr.bf16.mxu0 0
      %4302 = vmatmul.mubr.bf16.gmra.mrb[0].mxu0 %v4144
      %v4303 = vpop.f32.mrb[0].mxu0
      %v4304 = vadd.f32 0.0, %v4303
      %v4305 = vpop.f32.mrb[0].mxu0
      %v4306 = vpop.f32.mrb[0].mxu0
      %v4307 = vadd.f32 0.0, %v4306
      %v4308 = vpop.f32.mrb[0].mxu0
      %4309 = vdwg.mxu0
      %v4310 = vadd.f32 %v3584, %v4184
      %v4311 = vadd.f32 %v3585, %v4187
      %v4312 = vadd.f32 %v3586, %v4192
      %v4313 = vadd.f32 %v3587, %v4195
      %v4314 = vadd.f32 %v3588, %v4200
      %v4315 = vadd.f32 %v3589, %v4203
      %v4316 = vadd.f32 %v3590, %v4208
      %v4317 = vadd.f32 %v3591, %v4211
      %v4318 = vadd.f32 %v3592, %v4216
      %v4319 = vadd.f32 %v3593, %v4219
      %v4320 = vadd.f32 %v3594, %v4224
      %v4321 = vadd.f32 %v3595, %v4227
      %v4322 = vadd.f32 %v3596, %v4232
      %v4323 = vadd.f32 %v3597, %v4235
      %v4324 = vadd.f32 %v3598, %v4240
      %v4325 = vadd.f32 %v3599, %v4243
      %v4326 = vadd.f32 %v3600, %v4248
      %v4327 = vadd.f32 %v3601, %v4251
      %v4328 = vadd.f32 %v3602, %v4256
      %v4329 = vadd.f32 %v3603, %v4259
      %v4330 = vadd.f32 %v3604, %v4264
      %v4331 = vadd.f32 %v3605, %v4267
      %v4332 = vadd.f32 %v3606, %v4272
      %v4333 = vadd.f32 %v3607, %v4275
      %v4334 = vadd.f32 %v3608, %v4280
      %v4335 = vadd.f32 %v3609, %v4283
      %v4336 = vadd.f32 %v3610, %v4288
      %v4337 = vadd.f32 %v3611, %v4291
      %v4338 = vadd.f32 %v3612, %v4296
      %v4339 = vadd.f32 %v3613, %v4299
      %v4340 = vadd.f32 %v3614, %v4304
      %v4341 = vadd.f32 %v3615, %v4307
      %v4342 = vld [vmem:[%s3257] sm:$0xe]
      %v4343 = vld [vmem:[%s3257 + $0xc] sm:$0xe]
      %v4344 = vld [vmem:[%s3257 + $0x18] sm:$0xe]
      %v4345 = vld [vmem:[%s3257 + $0x24] sm:$0xe]
      %v4346 = vld [vmem:[%s3257 + $0x30] sm:$0xe]
      %v4347 = vld [vmem:[%s3257 + $0x3c] sm:$0xe]
      %v4348 = vld [vmem:[%s3257 + $0x48] sm:$0xe]
      %v4349 = vld [vmem:[%s3257 + $0x54] sm:$0xe]
      %v4350 = vld [vmem:[%s3257 + $0x60] sm:$0xe]
      %v4351 = vld [vmem:[%s3257 + $0x6c] sm:$0xe]
      %v4352 = vld [vmem:[%s3257 + $0x78] sm:$0xe]
      %v4353 = vld [vmem:[%s3257 + $0x84] sm:$0xe]
      %v4354 = vld [vmem:[%s3257 + $0x90] sm:$0xe]
      %v4355 = vld [vmem:[%s3257 + $0x9c] sm:$0xe]
      %v4356 = vld [vmem:[%s3257 + $0xa8] sm:$0xe]
      %v4357 = vld [vmem:[%s3257 + $0xb4] sm:$0xe]
      %v4406 = vrot.slane %v4342, 5
      %v4407 = vrot.slane %v4406, 4
      %v4408 = vrot.slane %v3617, 5
      %v4409 = vsel %vm1295, %v4407, %v4408
      %v4410 = vrot.slane %v4408, 4
      %v4411 = vrot.slane %v3618, 5
      %v4412 = vsel %vm1295, %v4410, %v4411
      %v4413 = vrot.slane %v4343, 5
      %v4414 = vrot.slane %v4413, 4
      %v4415 = vrot.slane %v3620, 5
      %v4416 = vsel %vm1295, %v4414, %v4415
      %v4417 = vrot.slane %v4415, 4
      %v4418 = vrot.slane %v3621, 5
      %v4419 = vsel %vm1295, %v4417, %v4418
      %v4420 = vrot.slane %v4344, 5
      %v4421 = vrot.slane %v4420, 4
      %v4422 = vrot.slane %v3623, 5
      %v4423 = vsel %vm1295, %v4421, %v4422
      %v4424 = vrot.slane %v4422, 4
      %v4425 = vrot.slane %v3624, 5
      %v4426 = vsel %vm1295, %v4424, %v4425
      %v4427 = vrot.slane %v4345, 5
      %v4428 = vrot.slane %v4427, 4
      %v4429 = vrot.slane %v3626, 5
      %v4430 = vsel %vm1295, %v4428, %v4429
      %v4431 = vrot.slane %v4429, 4
      %v4432 = vrot.slane %v3627, 5
      %v4433 = vsel %vm1295, %v4431, %v4432
      %v4434 = vrot.slane %v4346, 5
      %v4435 = vrot.slane %v4434, 4
      %v4436 = vrot.slane %v3629, 5
      %v4437 = vsel %vm1295, %v4435, %v4436
      %v4438 = vrot.slane %v4436, 4
      %v4439 = vrot.slane %v3630, 5
      %v4440 = vsel %vm1295, %v4438, %v4439
      %v4441 = vrot.slane %v4347, 5
      %v4442 = vrot.slane %v4441, 4
      %v4443 = vrot.slane %v3632, 5
      %v4444 = vsel %vm1295, %v4442, %v4443
      %v4445 = vrot.slane %v4443, 4
      %v4446 = vrot.slane %v3633, 5
      %v4447 = vsel %vm1295, %v4445, %v4446
      %v4448 = vrot.slane %v4348, 5
      %v4449 = vrot.slane %v4448, 4
      %v4450 = vrot.slane %v3635, 5
      %v4451 = vsel %vm1295, %v4449, %v4450
      %v4452 = vrot.slane %v4450, 4
      %v4453 = vrot.slane %v3636, 5
      %v4454 = vsel %vm1295, %v4452, %v4453
      %v4455 = vrot.slane %v4349, 5
      %v4456 = vrot.slane %v4455, 4
      %v4457 = vrot.slane %v3638, 5
      %v4458 = vsel %vm1295, %v4456, %v4457
      %v4459 = vrot.slane %v4457, 4
      %v4460 = vrot.slane %v3639, 5
      %v4461 = vsel %vm1295, %v4459, %v4460
      %v4462 = vrot.slane %v4350, 5
      %v4463 = vrot.slane %v4462, 4
      %v4464 = vrot.slane %v3641, 5
      %v4465 = vsel %vm1295, %v4463, %v4464
      %v4466 = vrot.slane %v4464, 4
      %v4467 = vrot.slane %v3642, 5
      %v4468 = vsel %vm1295, %v4466, %v4467
      %v4469 = vrot.slane %v4351, 5
      %v4470 = vrot.slane %v4469, 4
      %v4471 = vrot.slane %v3644, 5
      %v4472 = vsel %vm1295, %v4470, %v4471
      %v4473 = vrot.slane %v4471, 4
      %v4474 = vrot.slane %v3645, 5
      %v4475 = vsel %vm1295, %v4473, %v4474
      %v4476 = vrot.slane %v4352, 5
      %v4477 = vrot.slane %v4476, 4
      %v4478 = vrot.slane %v3647, 5
      %v4479 = vsel %vm1295, %v4477, %v4478
      %v4480 = vrot.slane %v4478, 4
      %v4481 = vrot.slane %v3648, 5
      %v4482 = vsel %vm1295, %v4480, %v4481
      %v4483 = vrot.slane %v4353, 5
      %v4484 = vrot.slane %v4483, 4
      %v4485 = vrot.slane %v3650, 5
      %v4486 = vsel %vm1295, %v4484, %v4485
      %v4487 = vrot.slane %v4485, 4
      %v4488 = vrot.slane %v3651, 5
      %v4489 = vsel %vm1295, %v4487, %v4488
      %v4490 = vrot.slane %v4354, 5
      %v4491 = vrot.slane %v4490, 4
      %v4492 = vrot.slane %v3653, 5
      %v4493 = vsel %vm1295, %v4491, %v4492
      %v4494 = vrot.slane %v4492, 4
      %v4495 = vrot.slane %v3654, 5
      %v4496 = vsel %vm1295, %v4494, %v4495
      %v4497 = vrot.slane %v4355, 5
      %v4498 = vrot.slane %v4497, 4
      %v4499 = vrot.slane %v3656, 5
      %v4500 = vsel %vm1295, %v4498, %v4499
      %v4501 = vrot.slane %v4499, 4
      %v4502 = vrot.slane %v3657, 5
      %v4503 = vsel %vm1295, %v4501, %v4502
      %v4504 = vrot.slane %v4356, 5
      %v4505 = vrot.slane %v4504, 4
      %v4506 = vrot.slane %v3659, 5
      %v4507 = vsel %vm1295, %v4505, %v4506
      %v4508 = vrot.slane %v4506, 4
      %v4509 = vrot.slane %v3660, 5
      %v4510 = vsel %vm1295, %v4508, %v4509
      %v4511 = vrot.slane %v4357, 5
      %v4512 = vrot.slane %v4511, 4
      %v4513 = vrot.slane %v3662, 5
      %v4514 = vsel %vm1295, %v4512, %v4513
      %v4515 = vrot.slane %v4513, 4
      %v4516 = vrot.slane %v3663, 5
      %v4517 = vsel %vm1295, %v4515, %v4516
      %s4518 = scalar_lea.vmem %s237, 16
      %v4519 = vld [vmem:[%s4518] sm:$0x3]
      %v4520 = vunpack.c.l.b16 %v4409
      %v4521 = vunpack.c.l.b16 %v4412
      %v4522 = vunpack.c.l.b16 %v4416
      %v4523 = vunpack.c.l.b16 %v4419
      %v4524 = vunpack.c.l.b16 %v4423
      %v4525 = vunpack.c.l.b16 %v4426
      %v4526 = vunpack.c.l.b16 %v4430
      %v4527 = vunpack.c.l.b16 %v4433
      %v4528 = vunpack.c.l.b16 %v4437
      %v4529 = vunpack.c.l.b16 %v4440
      %v4530 = vunpack.c.l.b16 %v4444
      %v4531 = vunpack.c.l.b16 %v4447
      %v4532 = vunpack.c.l.b16 %v4451
      %v4533 = vunpack.c.l.b16 %v4454
      %v4534 = vunpack.c.l.b16 %v4458
      %v4535 = vunpack.c.l.b16 %v4461
      %v4536 = vunpack.c.l.b16 %v4465
      %v4537 = vunpack.c.l.b16 %v4468
      %v4538 = vunpack.c.l.b16 %v4472
      %v4539 = vunpack.c.l.b16 %v4475
      %v4540 = vunpack.c.l.b16 %v4479
      %v4541 = vunpack.c.l.b16 %v4482
      %v4542 = vunpack.c.l.b16 %v4486
      %v4543 = vunpack.c.l.b16 %v4489
      %v4544 = vunpack.c.l.b16 %v4493
      %v4545 = vunpack.c.l.b16 %v4496
      %v4546 = vunpack.c.l.b16 %v4500
      %v4547 = vunpack.c.l.b16 %v4503
      %v4548 = vunpack.c.l.b16 %v4507
      %v4549 = vunpack.c.l.b16 %v4510
      %v4550 = vunpack.c.l.b16 %v4514
      %v4551 = vunpack.c.l.b16 %v4517
      %v4552 = vpack.c.b16 %v4521, %v4520
      %v4553 = vpack.c.b16 %v4523, %v4522
      %v4554 = vpack.c.b16 %v4525, %v4524
      %v4555 = vpack.c.b16 %v4527, %v4526
      %v4556 = vpack.c.b16 %v4529, %v4528
      %v4557 = vpack.c.b16 %v4531, %v4530
      %v4558 = vpack.c.b16 %v4533, %v4532
      %v4559 = vpack.c.b16 %v4535, %v4534
      %v4560 = vpack.c.b16 %v4537, %v4536
      %v4561 = vpack.c.b16 %v4539, %v4538
      %v4562 = vpack.c.b16 %v4541, %v4540
      %v4563 = vpack.c.b16 %v4543, %v4542
      %v4564 = vpack.c.b16 %v4545, %v4544
      %v4565 = vpack.c.b16 %v4547, %v4546
      %v4566 = vpack.c.b16 %v4549, %v4548
      %v4567 = vpack.c.b16 %v4551, %v4550
      %v4569 = vsel %vm739, %v4552, 0
      %v4572 = vsel %vm739, %v4553, 0
      %v4575 = vsel %vm739, %v4554, 0
      %v4578 = vsel %vm739, %v4555, 0
      %v4581 = vsel %vm739, %v4556, 0
      %v4584 = vsel %vm739, %v4557, 0
      %v4587 = vsel %vm739, %v4558, 0
      %v4590 = vsel %vm739, %v4559, 0
      %v4593 = vsel %vm739, %v4560, 0
      %v4596 = vsel %vm739, %v4561, 0
      %v4599 = vsel %vm739, %v4562, 0
      %v4602 = vsel %vm739, %v4563, 0
      %v4605 = vsel %vm739, %v4564, 0
      %v4608 = vsel %vm739, %v4565, 0
      %v4611 = vsel %vm739, %v4566, 0
      %v4614 = vsel %vm739, %v4567, 0
      %v4617 = vsel %vm788, %v4519, 0
      %4619 = vmatprep.subr.bf16.mxu0 0
      %4620 = vmatpush1.bf16.msra.mxu0 %v4617
      %4621 = vmatprep.subr.bf16.mxu0 0
      %4622 = vmatpush1.bf16.msra.mxu0 0
      %4623 = vmatprep.subr.bf16.mxu0 0
      %4624 = vmatpush1.bf16.msra.mxu0 0
      %4625 = vmatprep.subr.bf16.mxu0 0
      %4626 = vmatpush1.bf16.msra.mxu0 0
      %4627 = vmatprep.subr.bf16.mxu0 0
      %4628 = vmatpush1.bf16.msra.mxu0 0
      %4629 = vmatprep.subr.bf16.mxu0 0
      %4630 = vmatpush1.bf16.msra.mxu0 0
      %4631 = vmatprep.subr.bf16.mxu0 0
      %4632 = vmatpush1.bf16.msra.mxu0 0
      %4633 = vmatprep.subr.bf16.mxu0 0
      %4634 = vmatpush1.bf16.msra.mxu0 0
      %4635 = vmatprep.subr.bf16.mxu0 0
      %4636 = vmatpush1.bf16.msra.mxu0 0
      %4637 = vmatprep.subr.bf16.mxu0 0
      %4638 = vmatpush1.bf16.msra.mxu0 0
      %4639 = vmatprep.subr.bf16.mxu0 0
      %4640 = vmatpush1.bf16.msra.mxu0 0
      %4641 = vmatprep.subr.bf16.mxu0 0
      %4642 = vmatpush1.bf16.msra.mxu0 0
      %4643 = vmatprep.subr.bf16.mxu0 0
      %4644 = vmatpush1.bf16.msra.mxu0 0
      %4645 = vmatprep.subr.bf16.mxu0 0
      %4646 = vmatpush1.bf16.msra.mxu0 0
      %4647 = vmatprep.subr.bf16.mxu0 0
      %4648 = vmatpush1.bf16.msra.mxu0 0
      %4649 = vmatprep.subr.bf16.mxu0 0
      %4650 = vmatpush1.bf16.msra.mxu0 0
      %4651 = vmatprep.mubr.bf16.mxu0 0
      %4652 = vmatmul.mubr.bf16.gmra.mrb[0].mxu0 %v4569
      %v4653 = vpop.f32.mrb[0].mxu0
      %v4654 = vadd.f32 0.0, %v4653
      %v4655 = vpop.f32.mrb[0].mxu0
      %v4656 = vpop.f32.mrb[0].mxu0
      %v4657 = vadd.f32 0.0, %v4656
      %v4658 = vpop.f32.mrb[0].mxu0
      %4659 = vmatprep.mubr.bf16.mxu0 0
      %4660 = vmatmul.mubr.bf16.gmra.mrb[0].mxu0 %v4572
      %v4661 = vpop.f32.mrb[0].mxu0
      %v4662 = vadd.f32 0.0, %v4661
      %v4663 = vpop.f32.mrb[0].mxu0
      %v4664 = vpop.f32.mrb[0].mxu0
      %v4665 = vadd.f32 0.0, %v4664
      %v4666 = vpop.f32.mrb[0].mxu0
      %4667 = vmatprep.mubr.bf16.mxu0 0
      %4668 = vmatmul.mubr.bf16.gmra.mrb[0].mxu0 %v4575
      %v4669 = vpop.f32.mrb[0].mxu0
      %v4670 = vadd.f32 0.0, %v4669
      %v4671 = vpop.f32.mrb[0].mxu0
      %v4672 = vpop.f32.mrb[0].mxu0
      %v4673 = vadd.f32 0.0, %v4672
      %v4674 = vpop.f32.mrb[0].mxu0
      %4675 = vmatprep.mubr.bf16.mxu0 0
      %4676 = vmatmul.mubr.bf16.gmra.mrb[0].mxu0 %v4578
      %v4677 = vpop.f32.mrb[0].mxu0
      %v4678 = vadd.f32 0.0, %v4677
      %v4679 = vpop.f32.mrb[0].mxu0
      %v4680 = vpop.f32.mrb[0].mxu0
      %v4681 = vadd.f32 0.0, %v4680
      %v4682 = vpop.f32.mrb[0].mxu0
      %4683 = vmatprep.mubr.bf16.mxu0 0
      %4684 = vmatmul.mubr.bf16.gmra.mrb[0].mxu0 %v4581
      %v4685 = vpop.f32.mrb[0].mxu0
      %v4686 = vadd.f32 0.0, %v4685
      %v4687 = vpop.f32.mrb[0].mxu0
      %v4688 = vpop.f32.mrb[0].mxu0
      %v4689 = vadd.f32 0.0, %v4688
      %v4690 = vpop.f32.mrb[0].mxu0
      %4691 = vmatprep.mubr.bf16.mxu0 0
      %4692 = vmatmul.mubr.bf16.gmra.mrb[0].mxu0 %v4584
      %v4693 = vpop.f32.mrb[0].mxu0
      %v4694 = vadd.f32 0.0, %v4693
      %v4695 = vpop.f32.mrb[0].mxu0
      %v4696 = vpop.f32.mrb[0].mxu0
      %v4697 = vadd.f32 0.0, %v4696
      %v4698 = vpop.f32.mrb[0].mxu0
      %4699 = vmatprep.mubr.bf16.mxu0 0
      %4700 = vmatmul.mubr.bf16.gmra.mrb[0].mxu0 %v4587
      %v4701 = vpop.f32.mrb[0].mxu0
      %v4702 = vadd.f32 0.0, %v4701
      %v4703 = vpop.f32.mrb[0].mxu0
      %v4704 = vpop.f32.mrb[0].mxu0
      %v4705 = vadd.f32 0.0, %v4704
      %v4706 = vpop.f32.mrb[0].mxu0
      %4707 = vmatprep.mubr.bf16.mxu0 0
      %4708 = vmatmul.mubr.bf16.gmra.mrb[0].mxu0 %v4590
      %v4709 = vpop.f32.mrb[0].mxu0
      %v4710 = vadd.f32 0.0, %v4709
      %v4711 = vpop.f32.mrb[0].mxu0
      %v4712 = vpop.f32.mrb[0].mxu0
      %v4713 = vadd.f32 0.0, %v4712
      %v4714 = vpop.f32.mrb[0].mxu0
      %4715 = vmatprep.mubr.bf16.mxu0 0
      %4716 = vmatmul.mubr.bf16.gmra.mrb[0].mxu0 %v4593
      %v4717 = vpop.f32.mrb[0].mxu0
      %v4718 = vadd.f32 0.0, %v4717
      %v4719 = vpop.f32.mrb[0].mxu0
      %v4720 = vpop.f32.mrb[0].mxu0
      %v4721 = vadd.f32 0.0, %v4720
      %v4722 = vpop.f32.mrb[0].mxu0
      %4723 = vmatprep.mubr.bf16.mxu0 0
      %4724 = vmatmul.mubr.bf16.gmra.mrb[0].mxu0 %v4596
      %v4725 = vpop.f32.mrb[0].mxu0
      %v4726 = vadd.f32 0.0, %v4725
      %v4727 = vpop.f32.mrb[0].mxu0
      %v4728 = vpop.f32.mrb[0].mxu0
      %v4729 = vadd.f32 0.0, %v4728
      %v4730 = vpop.f32.mrb[0].mxu0
      %4731 = vmatprep.mubr.bf16.mxu0 0
      %4732 = vmatmul.mubr.bf16.gmra.mrb[0].mxu0 %v4599
      %v4733 = vpop.f32.mrb[0].mxu0
      %v4734 = vadd.f32 0.0, %v4733
      %v4735 = vpop.f32.mrb[0].mxu0
      %v4736 = vpop.f32.mrb[0].mxu0
      %v4737 = vadd.f32 0.0, %v4736
      %v4738 = vpop.f32.mrb[0].mxu0
      %4739 = vmatprep.mubr.bf16.mxu0 0
      %4740 = vmatmul.mubr.bf16.gmra.mrb[0].mxu0 %v4602
      %v4741 = vpop.f32.mrb[0].mxu0
      %v4742 = vadd.f32 0.0, %v4741
      %v4743 = vpop.f32.mrb[0].mxu0
      %v4744 = vpop.f32.mrb[0].mxu0
      %v4745 = vadd.f32 0.0, %v4744
      %v4746 = vpop.f32.mrb[0].mxu0
      %4747 = vmatprep.mubr.bf16.mxu0 0
      %4748 = vmatmul.mubr.bf16.gmra.mrb[0].mxu0 %v4605
      %v4749 = vpop.f32.mrb[0].mxu0
      %v4750 = vadd.f32 0.0, %v4749
      %v4751 = vpop.f32.mrb[0].mxu0
      %v4752 = vpop.f32.mrb[0].mxu0
      %v4753 = vadd.f32 0.0, %v4752
      %v4754 = vpop.f32.mrb[0].mxu0
      %4755 = vmatprep.mubr.bf16.mxu0 0
      %4756 = vmatmul.mubr.bf16.gmra.mrb[0].mxu0 %v4608
      %v4757 = vpop.f32.mrb[0].mxu0
      %v4758 = vadd.f32 0.0, %v4757
      %v4759 = vpop.f32.mrb[0].mxu0
      %v4760 = vpop.f32.mrb[0].mxu0
      %v4761 = vadd.f32 0.0, %v4760
      %v4762 = vpop.f32.mrb[0].mxu0
      %4763 = vmatprep.mubr.bf16.mxu0 0
      %4764 = vmatmul.mubr.bf16.gmra.mrb[0].mxu0 %v4611
      %v4765 = vpop.f32.mrb[0].mxu0
      %v4766 = vadd.f32 0.0, %v4765
      %v4767 = vpop.f32.mrb[0].mxu0
      %v4768 = vpop.f32.mrb[0].mxu0
      %v4769 = vadd.f32 0.0, %v4768
      %v4770 = vpop.f32.mrb[0].mxu0
      %4771 = vmatprep.mubr.bf16.mxu0 0
      %4772 = vmatmul.mubr.bf16.gmra.mrb[0].mxu0 %v4614
      %v4773 = vpop.f32.mrb[0].mxu0
      %v4774 = vadd.f32 0.0, %v4773
      %v4775 = vpop.f32.mrb[0].mxu0
      %v4776 = vpop.f32.mrb[0].mxu0
      %v4777 = vadd.f32 0.0, %v4776
      %v4778 = vpop.f32.mrb[0].mxu0
      %4779 = vdwg.mxu0
      %v4780 = vadd.f32 %v4310, %v4654
      %v4781 = vadd.f32 %v4311, %v4657
      %v4782 = vadd.f32 %v4312, %v4662
      %v4783 = vadd.f32 %v4313, %v4665
      %v4784 = vadd.f32 %v4314, %v4670
      %v4785 = vadd.f32 %v4315, %v4673
      %v4786 = vadd.f32 %v4316, %v4678
      %v4787 = vadd.f32 %v4317, %v4681
      %v4788 = vadd.f32 %v4318, %v4686
      %v4789 = vadd.f32 %v4319, %v4689
      %v4790 = vadd.f32 %v4320, %v4694
      %v4791 = vadd.f32 %v4321, %v4697
      %v4792 = vadd.f32 %v4322, %v4702
      %v4793 = vadd.f32 %v4323, %v4705
      %v4794 = vadd.f32 %v4324, %v4710
      %v4795 = vadd.f32 %v4325, %v4713
      %v4796 = vadd.f32 %v4326, %v4718
      %v4797 = vadd.f32 %v4327, %v4721
      %v4798 = vadd.f32 %v4328, %v4726
      %v4799 = vadd.f32 %v4329, %v4729
      %v4800 = vadd.f32 %v4330, %v4734
      %v4801 = vadd.f32 %v4331, %v4737
      %v4802 = vadd.f32 %v4332, %v4742
      %v4803 = vadd.f32 %v4333, %v4745
      %v4804 = vadd.f32 %v4334, %v4750
      %v4805 = vadd.f32 %v4335, %v4753
      %v4806 = vadd.f32 %v4336, %v4758
      %v4807 = vadd.f32 %v4337, %v4761
      %v4808 = vadd.f32 %v4338, %v4766
      %v4809 = vadd.f32 %v4339, %v4769
      %v4810 = vadd.f32 %v4340, %v4774
      %v4811 = vadd.f32 %v4341, %v4777
      %v4812 = vpack.c.bf16 %v4781, %v4780
      %v4813 = vpack.c.bf16 %v4783, %v4782
      %v4814 = vpack.c.bf16 %v4785, %v4784
      %v4815 = vpack.c.bf16 %v4787, %v4786
      %v4816 = vpack.c.bf16 %v4789, %v4788
      %v4817 = vpack.c.bf16 %v4791, %v4790
      %v4818 = vpack.c.bf16 %v4793, %v4792
      %v4819 = vpack.c.bf16 %v4795, %v4794
      %v4820 = vpack.c.bf16 %v4797, %v4796
      %v4821 = vpack.c.bf16 %v4799, %v4798
      %v4822 = vpack.c.bf16 %v4801, %v4800
      %v4823 = vpack.c.bf16 %v4803, %v4802
      %v4824 = vpack.c.bf16 %v4805, %v4804
      %v4825 = vpack.c.bf16 %v4807, %v4806
      %v4826 = vpack.c.bf16 %v4809, %v4808
      %v4827 = vpack.c.bf16 %v4811, %v4810
      %v4844 = vunpack.c.l.b16 %v4812
      %v4845 = vunpack.c.h.b16 %v4812
      %v4846 = vunpack.c.l.b16 %v4813
      %v4847 = vunpack.c.h.b16 %v4813
      %v4848 = vunpack.c.l.b16 %v4814
      %v4849 = vunpack.c.h.b16 %v4814
      %v4850 = vunpack.c.l.b16 %v4815
      %v4851 = vunpack.c.h.b16 %v4815
      %v4852 = vunpack.c.l.b16 %v4816
      %v4853 = vunpack.c.h.b16 %v4816
      %v4854 = vunpack.c.l.b16 %v4817
      %v4855 = vunpack.c.h.b16 %v4817
      %v4856 = vunpack.c.l.b16 %v4818
      %v4857 = vunpack.c.h.b16 %v4818
      %v4858 = vunpack.c.l.b16 %v4819
      %v4859 = vunpack.c.h.b16 %v4819
      %v4860 = vunpack.c.l.b16 %v4820
      %v4861 = vunpack.c.h.b16 %v4820
      %v4862 = vunpack.c.l.b16 %v4821
      %v4863 = vunpack.c.h.b16 %v4821
      %v4864 = vunpack.c.l.b16 %v4822
      %v4865 = vunpack.c.h.b16 %v4822
      %v4866 = vunpack.c.l.b16 %v4823
      %v4867 = vunpack.c.h.b16 %v4823
      %v4868 = vunpack.c.l.b16 %v4824
      %v4869 = vunpack.c.h.b16 %v4824
      %v4870 = vunpack.c.l.b16 %v4825
      %v4871 = vunpack.c.h.b16 %v4825
      %v4872 = vunpack.c.l.b16 %v4826
      %v4873 = vunpack.c.h.b16 %v4826
      %v4874 = vunpack.c.l.b16 %v4827
      %v4875 = vunpack.c.h.b16 %v4827
      %v4876 = vpack.c.b16 %v4844, %v4844
      %v4877 = vpack.c.b16 %v4845, %v4845
      %v4878 = vpack.c.b16 %v4846, %v4846
      %v4879 = vpack.c.b16 %v4847, %v4847
      %v4880 = vpack.c.b16 %v4848, %v4848
      %v4881 = vpack.c.b16 %v4849, %v4849
      %v4882 = vpack.c.b16 %v4850, %v4850
      %v4883 = vpack.c.b16 %v4851, %v4851
      %v4884 = vpack.c.b16 %v4852, %v4852
      %v4885 = vpack.c.b16 %v4853, %v4853
      %v4886 = vpack.c.b16 %v4854, %v4854
      %v4887 = vpack.c.b16 %v4855, %v4855
      %v4888 = vpack.c.b16 %v4856, %v4856
      %v4889 = vpack.c.b16 %v4857, %v4857
      %v4890 = vpack.c.b16 %v4858, %v4858
      %v4891 = vpack.c.b16 %v4859, %v4859
      %v4892 = vpack.c.b16 %v4860, %v4860
      %v4893 = vpack.c.b16 %v4861, %v4861
      %v4894 = vpack.c.b16 %v4862, %v4862
      %v4895 = vpack.c.b16 %v4863, %v4863
      %v4896 = vpack.c.b16 %v4864, %v4864
      %v4897 = vpack.c.b16 %v4865, %v4865
      %v4898 = vpack.c.b16 %v4866, %v4866
      %v4899 = vpack.c.b16 %v4867, %v4867
      %v4900 = vpack.c.b16 %v4868, %v4868
      %v4901 = vpack.c.b16 %v4869, %v4869
      %v4902 = vpack.c.b16 %v4870, %v4870
      %v4903 = vpack.c.b16 %v4871, %v4871
      %v4904 = vpack.c.b16 %v4872, %v4872
      %v4905 = vpack.c.b16 %v4873, %v4873
      %v4906 = vpack.c.b16 %v4874, %v4874
      %v4907 = vpack.c.b16 %v4875, %v4875
      %4940 = vst [vmem:[%s245] sm:$0xf] %v4876
      %4941 = vst [vmem:[%s245 + $0x4] sm:$0xf] %v4877
      %4942 = vst [vmem:[%s245 + $0x8] sm:$0xf] %v4878
      %4943 = vst [vmem:[%s245 + $0xc] sm:$0xf] %v4879
      %4944 = vst [vmem:[%s245 + $0x10] sm:$0xf] %v4880
      %4945 = vst [vmem:[%s245 + $0x14] sm:$0xf] %v4881
      %4946 = vst [vmem:[%s245 + $0x18] sm:$0xf] %v4882
      %4947 = vst [vmem:[%s245 + $0x1c] sm:$0xf] %v4883
      %4948 = vst [vmem:[%s245 + $0x20] sm:$0xf] %v4884
      %4949 = vst [vmem:[%s245 + $0x24] sm:$0xf] %v4885
      %4950 = vst [vmem:[%s245 + $0x28] sm:$0xf] %v4886
      %4951 = vst [vmem:[%s245 + $0x2c] sm:$0xf] %v4887
      %4952 = vst [vmem:[%s245 + $0x30] sm:$0xf] %v4888
      %4953 = vst [vmem:[%s245 + $0x34] sm:$0xf] %v4889
      %4954 = vst [vmem:[%s245 + $0x38] sm:$0xf] %v4890
      %4955 = vst [vmem:[%s245 + $0x3c] sm:$0xf] %v4891
      %4956 = vst [vmem:[%s245 + $0x40] sm:$0xf] %v4892
      %4957 = vst [vmem:[%s245 + $0x44] sm:$0xf] %v4893
      %4958 = vst [vmem:[%s245 + $0x48] sm:$0xf] %v4894
      %4959 = vst [vmem:[%s245 + $0x4c] sm:$0xf] %v4895
      %4960 = vst [vmem:[%s245 + $0x50] sm:$0xf] %v4896
      %4961 = vst [vmem:[%s245 + $0x54] sm:$0xf] %v4897
      %4962 = vst [vmem:[%s245 + $0x58] sm:$0xf] %v4898
      %4963 = vst [vmem:[%s245 + $0x5c] sm:$0xf] %v4899
      %4964 = vst [vmem:[%s245 + $0x60] sm:$0xf] %v4900
      %4965 = vst [vmem:[%s245 + $0x64] sm:$0xf] %v4901
      %4966 = vst [vmem:[%s245 + $0x68] sm:$0xf] %v4902
      %4967 = vst [vmem:[%s245 + $0x6c] sm:$0xf] %v4903
      %4968 = vst [vmem:[%s245 + $0x70] sm:$0xf] %v4904
      %4969 = vst [vmem:[%s245 + $0x74] sm:$0xf] %v4905
      %4970 = vst [vmem:[%s245 + $0x78] sm:$0xf] %v4906
      %4971 = vst [vmem:[%s245 + $0x7c] sm:$0xf] %v4907
      %v4972 = vadd.f32 %v4780, %v4781
      %v4973 = vadd.f32 %v4972, %v4782
      %v4974 = vadd.f32 %v4973, %v4783
      %v4975 = vadd.f32 %v4974, %v4784
      %v4976 = vadd.f32 %v4975, %v4785
      %v4977 = vadd.f32 %v4976, %v4786
      %v4978 = vadd.f32 %v4977, %v4787
      %v4979 = vadd.f32 %v4978, %v4788
      %v4980 = vadd.f32 %v4979, %v4789
      %v4981 = vadd.f32 %v4980, %v4790
      %v4982 = vadd.f32 %v4981, %v4791
      %v4983 = vadd.f32 %v4982, %v4792
      %v4984 = vadd.f32 %v4983, %v4793
      %v4985 = vadd.f32 %v4984, %v4794
      %v4986 = vadd.f32 %v4985, %v4795
      %v4987 = vadd.f32 %v4986, %v4796
      %v4988 = vadd.f32 %v4987, %v4797
      %v4989 = vadd.f32 %v4988, %v4798
      %v4990 = vadd.f32 %v4989, %v4799
      %v4991 = vadd.f32 %v4990, %v4800
      %v4992 = vadd.f32 %v4991, %v4801
      %v4993 = vadd.f32 %v4992, %v4802
      %v4994 = vadd.f32 %v4993, %v4803
      %v4995 = vadd.f32 %v4994, %v4804
      %v4996 = vadd.f32 %v4995, %v4805
      %v4997 = vadd.f32 %v4996, %v4806
      %v4998 = vadd.f32 %v4997, %v4807
      %v4999 = vadd.f32 %v4998, %v4808
      %v5000 = vadd.f32 %v4999, %v4809
      %v5001 = vadd.f32 %v5000, %v4810
      %v5002 = vadd.f32 %v5001, %v4811
      %v5003 = vmul.f32 %v4780, %v4780
      %v5004 = vmul.f32 %v4781, %v4781
      %v5005 = vmul.f32 %v4782, %v4782
      %v5006 = vmul.f32 %v4783, %v4783
      %v5007 = vmul.f32 %v4784, %v4784
      %v5008 = vmul.f32 %v4785, %v4785
      %v5009 = vmul.f32 %v4786, %v4786
      %v5010 = vmul.f32 %v4787, %v4787
      %v5011 = vmul.f32 %v4788, %v4788
      %v5012 = vmul.f32 %v4789, %v4789
      %v5013 = vmul.f32 %v4790, %v4790
      %v5014 = vmul.f32 %v4791, %v4791
      %v5015 = vmul.f32 %v4792, %v4792
      %v5016 = vmul.f32 %v4793, %v4793
      %v5017 = vmul.f32 %v4794, %v4794
      %v5018 = vmul.f32 %v4795, %v4795
      %v5019 = vmul.f32 %v4796, %v4796
      %v5020 = vmul.f32 %v4797, %v4797
      %v5021 = vmul.f32 %v4798, %v4798
      %v5022 = vmul.f32 %v4799, %v4799
      %v5023 = vmul.f32 %v4800, %v4800
      %v5024 = vmul.f32 %v4801, %v4801
      %v5025 = vmul.f32 %v4802, %v4802
      %v5026 = vmul.f32 %v4803, %v4803
      %v5027 = vmul.f32 %v4804, %v4804
      %v5028 = vmul.f32 %v4805, %v4805
      %v5029 = vmul.f32 %v4806, %v4806
      %v5030 = vmul.f32 %v4807, %v4807
      %v5031 = vmul.f32 %v4808, %v4808
      %v5032 = vmul.f32 %v4809, %v4809
      %v5033 = vmul.f32 %v4810, %v4810
      %v5034 = vmul.f32 %v4811, %v4811
      %v5035 = vadd.f32 %v5003, %v5004
      %v5036 = vadd.f32 %v5035, %v5005
      %v5037 = vadd.f32 %v5036, %v5006
      %v5038 = vadd.f32 %v5037, %v5007
      %v5039 = vadd.f32 %v5038, %v5008
      %v5040 = vadd.f32 %v5039, %v5009
      %v5041 = vadd.f32 %v5040, %v5010
      %v5042 = vadd.f32 %v5041, %v5011
      %v5043 = vadd.f32 %v5042, %v5012
      %v5044 = vadd.f32 %v5043, %v5013
      %v5045 = vadd.f32 %v5044, %v5014
      %v5046 = vadd.f32 %v5045, %v5015
      %v5047 = vadd.f32 %v5046, %v5016
      %v5048 = vadd.f32 %v5047, %v5017
      %v5049 = vadd.f32 %v5048, %v5018
      %v5050 = vadd.f32 %v5049, %v5019
      %v5051 = vadd.f32 %v5050, %v5020
      %v5052 = vadd.f32 %v5051, %v5021
      %v5053 = vadd.f32 %v5052, %v5022
      %v5054 = vadd.f32 %v5053, %v5023
      %v5055 = vadd.f32 %v5054, %v5024
      %v5056 = vadd.f32 %v5055, %v5025
      %v5057 = vadd.f32 %v5056, %v5026
      %v5058 = vadd.f32 %v5057, %v5027
      %v5059 = vadd.f32 %v5058, %v5028
      %v5060 = vadd.f32 %v5059, %v5029
      %v5061 = vadd.f32 %v5060, %v5030
      %v5062 = vadd.f32 %v5061, %v5031
      %v5063 = vadd.f32 %v5062, %v5032
      %v5064 = vadd.f32 %v5063, %v5033
      %v5065 = vadd.f32 %v5064, %v5034
      %p5066 = scmp.eq.s32.totalorder %s21, 0
      // Predicated region
      $region29: #{conv_block_forward.2} parent=27 // pred_check
        %p5067 = pneg %p5066
      $region30: #{conv_block_forward.2} parent=27 // pred_check_branch
        %5069 = sbr.rel (%p5067) target = $region32
      $region31: #{conv_block_forward.2} parent=27 // pred_region
        %5070 = vst [vmem:[#allocation2] sm:$0xff] 0.0
        %5071 = vst [vmem:[#allocation3] sm:$0xff] 0.0
      $region32: #{conv_block_forward.2} parent=27 // pred_fallthru
        _
      %v5072 = vld [vmem:[#allocation2] sm:$0xff]
      %v5073 = vadd.f32 %v5072, %v5002
      %5074 = vst [vmem:[#allocation2] sm:$0xff] %v5073
      %v5075 = vld [vmem:[#allocation3] sm:$0xff]
      %v5076 = vadd.f32 %v5075, %v5065
      %5077 = vst [vmem:[#allocation3] sm:$0xff] %v5076
      %p5078 = scmp.eq.s32.totalorder %s21, 1
      // Predicated region
      $region33: #{conv_block_forward.2} parent=27 // pred_check
        %p5079 = pneg %p5078
      $region34: #{conv_block_forward.2} parent=27 // pred_check_branch
        %5081 = sbr.rel (%p5079) target = $region36
      $region35: #{conv_block_forward.2} parent=27 // pred_region
        %v5082 = vld [vmem:[#allocation2] sm:$0xff]
        %v5083 = vrot.slane %v5082, 4
        %v5084 = vadd.f32 %v5082, %v5083
        %v5085 = vrot.slane %v5084, 2
        %v5086 = vadd.f32 %v5084, %v5085
        %v5087 = vrot.slane %v5086, 1
        %v5088 = vadd.f32 %v5086, %v5087
        %v5089 = vld [vmem:[#allocation3] sm:$0xff]
        %v5090 = vrot.slane %v5089, 4
        %v5091 = vadd.f32 %v5089, %v5090
        %v5092 = vrot.slane %v5091, 2
        %v5093 = vadd.f32 %v5091, %v5092
        %v5094 = vrot.slane %v5093, 1
        %v5095 = vadd.f32 %v5093, %v5094
        %v5096 = vmul.f32 %v5088, 0.001953125
        %v5097 = vmul.f32 %v5095, 0.001953125
        %v5098 = vmul.f32 %v5096, %v5096
        %v5099 = vsub.f32 %v5097, %v5098
        %v5100 = vmax.f32 %v5099, 0.0
        %5101 = vst [vmem:[%s248] sm:$0x1] %v5096
        %v5102 = vadd.f32 %v5100, 1e-05
        %v5103 = vrsqrt.pop %v5102
        %5104 = vst [vmem:[%s251] sm:$0x1] %v5103
      $region36: #{conv_block_forward.2} parent=27 // pred_fallthru
        _
      %p5105 = scmp.lt.s32.totalorder %s21, 1
      %s5106 = scalar_select %p5105, %s21, 1
      %p5107 = scmp.lt.s32.totalorder %s20, 0
      %s5108 = scalar_select %p5107, %s20, 0
      %s5109 = smul.addr %s5106, 32
      %s5110 = sadd.s32 %s5108, %s5109
      %s5111 = smul.addr %s5110, 4
      %s5112 = scalar_lea.vmem %s2, %s5111
      %p5113 = scmp.lt.s32.totalorder %s20, 0
      %s5114 = scalar_select %p5113, %s20, 0
      %s5115 = scalar_lea.vmem %s3, %s5114
      %p5116 = scmp.lt.s32.totalorder %s20, 0
      %s5117 = scalar_select %p5116, %s20, 0
      %s5118 = scalar_lea.vmem %s4, %s5117
      // Predicated region
      $region37: #{conv_block_forward.2} parent=27 // pred_check
        %p5119 = pneg %p100
      $region38: #{conv_block_forward.2} parent=27 // pred_check_branch
        %5121 = sbr.rel (%p5119) target = $region40
      $region39: #{conv_block_forward.2} parent=27 // pred_region
        _
      $region40: #{conv_block_forward.2} parent=27 // pred_fallthru
        _
      // Predicated region
      $region41: #{conv_block_forward.2} parent=27 // pred_check
        %p5122 = pneg %p126
      $region42: #{conv_block_forward.2} parent=27 // pred_check_branch
        %5124 = sbr.rel (%p5122) target = $region44
      $region43: #{conv_block_forward.2} parent=27 // pred_region
        _
      $region44: #{conv_block_forward.2} parent=27 // pred_fallthru
        _
      // Predicated region
      $region45: #{conv_block_forward.2} parent=27 // pred_check
        %p5125 = pneg %p152
      $region46: #{conv_block_forward.2} parent=27 // pred_check_branch
        %5127 = sbr.rel (%p5125) target = $region48
      $region47: #{conv_block_forward.2} parent=27 // pred_region
        _
      $region48: #{conv_block_forward.2} parent=27 // pred_fallthru
        _
      // Predicated region
      $region49: #{conv_block_forward.2} parent=27 // pred_check
        %p5128 = pneg %p126
      $region50: #{conv_block_forward.2} parent=27 // pred_check_branch
        %5130 = sbr.rel (%p5128) target = $region52
      $region51: #{conv_block_forward.2} parent=27 // pred_region
        %p5131 = scmp.lt.s32.totalorder %s20, 0
        %s5132 = scalar_select %p5131, %s20, 0
        %s5133 = scalar_lea.vmem %s3, %s5132
      $region52: #{conv_block_forward.2} parent=27 // pred_fallthru
        _
      // Predicated region
      $region53: #{conv_block_forward.2} parent=27 // pred_check
        %p5134 = pneg %p152
      $region54: #{conv_block_forward.2} parent=27 // pred_check_branch
        %5136 = sbr.rel (%p5134) target = $region56
      $region55: #{conv_block_forward.2} parent=27 // pred_region
        %p5137 = scmp.lt.s32.totalorder %s20, 0
        %s5138 = scalar_select %p5137, %s20, 0
        %s5139 = scalar_lea.vmem %s4, %s5138
      $region56: #{conv_block_forward.2} parent=27 // pred_fallthru
        _
    $region28: #{conv_block_forward.2} parent=5 // pred_fallthru
      _
    %p5140 = scmp.le.s32.totalorder 2, %s11
    // Predicated region
    $region57: #{conv_block_forward.2} parent=5 // pred_check
      %p5141 = pneg %p5140
    $region58: #{conv_block_forward.2} parent=5 // pred_check_branch
      %5143 = sbr.rel (%p5141) target = $region60
    $region59: #{conv_block_forward.2} parent=5 // pred_region
      %s5144 = ssub.s32 %s11, 2
      // Predicated region
      $region61: #{conv_block_forward.2} parent=59 // pred_check
        %p5145 = pneg %p106
      $region62: #{conv_block_forward.2} parent=59 // pred_check_branch
        %5147 = sbr.rel (%p5145) target = $region64
      $region63: #{conv_block_forward.2} parent=59 // pred_region
        %p5148 = scmp.lt.s32.totalorder %s23, 1
        %s5149 = scalar_select %p5148, %s23, 1
        %p5150 = scmp.lt.s32.totalorder %s22, 0
        %s5151 = scalar_select %p5150, %s22, 0
        %s5152 = smul.addr %s5149, 32
        %s5153 = sadd.s32 %s5151, %s5152
        %s5154 = smul.addr %s5153, 4
        %s5155 = scalar_lea.vmem %s2, %s5154
      $region64: #{conv_block_forward.2} parent=59 // pred_fallthru
        _
    $region60: #{conv_block_forward.2} parent=5 // pred_fallthru
      _
  $region6: #{conv_block_forward.2} parent=0 // loop_footer
    %s15 = sadd.s32 1, %s11
  $region7: #{conv_block_forward.2} parent=0 // loop_footer_branch
    %10 = sbr.rel target = $region3
  $region8: #{conv_block_forward.2} parent=0 // loop_exit
    _

</llo_original>
